<compile_context>
chip_gen: v7x
topology: tpu7x:2x2x1
jax: 0.10.0
libtpu: 0.0.40
codegen_flags: <defaults>
</compile_context>

<pallas_src>
import functools
import math

import jax
import jax.numpy as jnp
from jax.experimental import pallas as pl
from jax.experimental.pallas import tpu as pltpu


_PARALLEL = pltpu.CompilerParams(dimension_semantics=("parallel",))


# ----------------------------------------------------------------------------
# In-kernel helpers (operate on values already loaded from refs)
# ----------------------------------------------------------------------------
def _adaln_modulate(x_f32, emb, nw, nb, d_model):
    """AdaLayerNorm: LN(x) * (1 + scale) + shift, scale/shift = Linear(SiLU(emb)).

    x_f32: (L, D) f32, emb: (1, D), nw: (D, 2D), nb: (1, 2D).
    The conditioning matmul is (1, D) @ (D, 2D) -> tiny, kept in f32.
    """
    e = emb.astype(jnp.float32)
    e = e * jax.nn.sigmoid(e)                                    # SiLU
    cond = jnp.dot(e, nw.astype(jnp.float32),
                   preferred_element_type=jnp.float32) + nb.astype(jnp.float32)
    scale = cond[:, :d_model]                                    # (1, D)
    shift = cond[:, d_model:]                                    # (1, D)
    mu = jnp.mean(x_f32, axis=-1, keepdims=True)
    var = jnp.mean(jnp.square(x_f32 - mu), axis=-1, keepdims=True)
    xn = (x_f32 - mu) * jax.lax.rsqrt(var + 1e-5)                # elementwise_affine=False
    return xn * (1.0 + scale) + shift


def _linear_bf16(x_f32, w, b):
    """bf16 MXU matmul with f32 accumulation + f32 bias."""
    return jnp.dot(x_f32.astype(jnp.bfloat16), w.astype(jnp.bfloat16),
                   preferred_element_type=jnp.float32) + b.astype(jnp.float32)


def _mha(q, k, v, mask, res, wo, bo, num_heads):
    """Masked multi-head attention + output projection + residual add.

    q: (Lq, D) f32 (already scaled by 1/sqrt(hd) via folded weights),
    k/v: (Lk, D) f32, mask: (1 or Lq, Lk) float (1.0 = attend),
    res: (Lq, D) f32, wo: (D, D), bo: (1, D).
    Heads are an unrolled static loop over lane slices; the O-projection is
    accumulated per head so the output stays lane-dense.
    """
    _, D = q.shape
    hd = D // num_heads
    keep = mask > 0.5
    acc = res + bo.astype(jnp.float32)                            # fold bias + residual
    for h in range(num_heads):
        lo = h * hd
        qh = q[:, lo:lo + hd].astype(jnp.bfloat16)                # (Lq, hd)
        kh = k[:, lo:lo + hd].astype(jnp.bfloat16)                # (Lk, hd)
        vh = v[:, lo:lo + hd].astype(jnp.bfloat16)                # (Lk, hd)
        # q @ k.T without materializing a transpose (NT dimension numbers).
        s = jax.lax.dot_general(qh, kh, (((1,), (1,)), ((), ())),
                                preferred_element_type=jnp.float32)   # (Lq, Lk)
        s = jnp.where(keep, s, -1e30)                             # masked_fill(~mask, -inf)
        s = s - jnp.max(s, axis=-1, keepdims=True)
        p = jnp.exp(s)
        p = p * pl.reciprocal(jnp.sum(p, axis=-1, keepdims=True), approx=True)
        ctx = jnp.dot(p.astype(jnp.bfloat16), vh,
                      preferred_element_type=jnp.float32)         # (Lq, hd)
        acc = acc + jnp.dot(ctx.astype(jnp.bfloat16),
                            wo[lo:lo + hd, :].astype(jnp.bfloat16),
                            preferred_element_type=jnp.float32)
    return acc


# ----------------------------------------------------------------------------
# Fully fused DecoderLayer kernel (one grid step = one batch element)
# ----------------------------------------------------------------------------
def _decoder_layer_kernel(x_ref, enc_ref, tmask_ref, smask_ref,
                          e1_ref, e2_ref, e3_ref,
                          n1w_ref, n1b_ref, n2w_ref, n2b_ref, n3w_ref, n3b_ref,
                          wqkv_ref, bqkv_ref, wso_ref, bso_ref,
                          cwq_ref, cbq_ref, cwkv_ref, cbkv_ref, cwo_ref, cbo_ref,
                          w1_ref, b1_ref, w2_ref, b2_ref,
                          o_ref, *, num_heads, d_model):
    D = d_model
    x = x_ref[...].astype(jnp.float32)                            # (L, D)

    # ---- self-attention block: AdaLN1 + packed QKV + MHA + O-proj + residual ----
    y = _adaln_modulate(x, e1_ref[...], n1w_ref[...], n1b_ref[...], D)
    qkv = _linear_bf16(y, wqkv_ref[...], bqkv_ref[...])           # (L, 3D) packed
    x = _mha(qkv[:, :D], qkv[:, D:2 * D], qkv[:, 2 * D:],
             tmask_ref[...], x, wso_ref[...], bso_ref[...], num_heads)

    # ---- cross-attention block: AdaLN2 + Q proj, packed KV of enc_out, MHA ----
    y = _adaln_modulate(x, e2_ref[...], n2w_ref[...], n2b_ref[...], D)
    q = _linear_bf16(y, cwq_ref[...], cbq_ref[...])               # (L, D), scale folded
    enc = enc_ref[...].astype(jnp.float32)                        # (S, D)
    kv = _linear_bf16(enc, cwkv_ref[...], cbkv_ref[...])          # (S, 2D) packed
    x = _mha(q, kv[:, :D], kv[:, D:], smask_ref[...], x,
             cwo_ref[...], cbo_ref[...], num_heads)

    # ---- feed-forward block: AdaLN3 + Linear + GELU + Linear + residual ----
    y = _adaln_modulate(x, e3_ref[...], n3w_ref[...], n3b_ref[...], D)
    h = _linear_bf16(y, w1_ref[...], b1_ref[...])                 # (L, M)
    # TODO(synk): PyTorch nn.GELU() defaults to the exact erf form; tanh approximation used here.
    h = 0.5 * h * (1.0 + jnp.tanh(0.7978845608028654 * (h + 0.044715 * h * h * h)))
    o = _linear_bf16(h, w2_ref[...], b2_ref[...])                 # (L, D)
    o_ref[...] = (x + o).astype(o_ref.dtype)                      # residual fused


# ----------------------------------------------------------------------------
# pallas_call wrapper (grid over batch; weights stay resident across steps)
# ----------------------------------------------------------------------------
def _batched(trailing):
    """Block over the (squeezed) leading batch dim; trailing dims full-extent."""
    n = len(trailing)
    return pl.BlockSpec((None,) + trailing, lambda b, _n=n: (b,) + (0,) * _n)


def _const(shape):
    """Full-extent weight block, same block for every grid step (fetched once)."""
    n = len(shape)
    return pl.BlockSpec(shape, lambda b, _n=n: (0,) * _n)


def decoder_layer(params, x, enc_out, tgt_mask, src_mask, t, num_heads):
    B, L, D = x.shape
    S = enc_out.shape[1]

    # Compact masks: (B, 1, 1, Lk) or (B, 1, Lq, Lk) -> (B, mq, Lk); the kernel
    # broadcasts over heads/queries in-register (never materialized in HBM).
    tmask = tgt_mask.astype(jnp.float32).reshape(B, -1, L)
    smask = src_mask.astype(jnp.float32).reshape(B, -1, S)
    mq_t, mq_s = tmask.shape[1], smask.shape[1]

    # Timestep-embedding rows for the three AdaLayerNorms (tiny gather, glue).
    e1 = jnp.take(params["norm1"]["emb"], t, axis=0)[:, None, :]  # (B, 1, D)
    e2 = jnp.take(params["norm2"]["emb"], t, axis=0)[:, None, :]
    e3 = jnp.take(params["norm3"]["emb"], t, axis=0)[:, None, :]

    n1, n2, n3 = params["norm1"], params["norm2"], params["norm3"]
    sa, ca, ff = params["self_attn"], params["cross_attn"], params["ffn"]
    M = ff["w1"].shape[1]

    return pl.pallas_call(
        functools.partial(_decoder_layer_kernel, num_heads=num_heads, d_model=D),
        out_shape=jax.ShapeDtypeStruct((B, L, D), jnp.float32),
        grid=(B,),
        in_specs=[
            _batched((L, D)),            # x
            _batched((S, D)),            # enc_out
            _batched((mq_t, L)),         # tgt mask
            _batched((mq_s, S)),         # src mask
            _batched((1, D)),            # emb row 1
            _batched((1, D)),            # emb row 2
            _batched((1, D)),            # emb row 3
            _const((D, 2 * D)), _const((1, 2 * D)),   # norm1 linear
            _const((D, 2 * D)), _const((1, 2 * D)),   # norm2 linear
            _const((D, 2 * D)), _const((1, 2 * D)),   # norm3 linear
            _const((D, 3 * D)), _const((1, 3 * D)),   # self-attn packed QKV
            _const((D, D)), _const((1, D)),           # self-attn O
            _const((D, D)), _const((1, D)),           # cross-attn Q
            _const((D, 2 * D)), _const((1, 2 * D)),   # cross-attn packed KV
            _const((D, D)), _const((1, D)),           # cross-attn O
            _const((D, M)), _const((1, M)),           # ffn l1
            _const((M, D)), _const((1, D)),           # ffn l2
        ],
        out_specs=_batched((L, D)),
        compiler_params=_PARALLEL,
    )(x, enc_out, tmask, smask, e1, e2, e3,
      n1["w"], n1["b"], n2["w"], n2["b"], n3["w"], n3["b"],
      sa["wqkv"], sa["bqkv"], sa["wo"], sa["bo"],
      ca["wq"], ca["bq"], ca["wkv"], ca["bkv"], ca["wo"], ca["bo"],
      ff["w1"], ff["b1"], ff["w2"], ff["b2"])


# ----------------------------------------------------------------------------
# Deterministic parameter init (weights packed/fused at init time)
# ----------------------------------------------------------------------------
def _init_linear(key, din, dout):
    kw, kb = jax.random.split(key)
    w = jax.random.normal(kw, (din, dout), jnp.float32) * 0.02
    b = jax.random.normal(kb, (1, dout), jnp.float32) * 0.01
    return w, b


def init_decoder_layer(key, dim, heads, mlp_dim, diffusion_steps):
    hd = dim // heads
    inv = 1.0 / math.sqrt(hd)
    ks = jax.random.split(key, 16)
    norms = []
    for i in range(3):
        emb = jax.random.normal(ks[i], (diffusion_steps, dim), jnp.float32) * 0.02
        w, b = _init_linear(ks[3 + i], dim, 2 * dim)
        norms.append({"emb": emb, "w": w, "b": b})
    wq, bq = _init_linear(ks[6], dim, dim)
    wk, bk = _init_linear(ks[7], dim, dim)
    wv, bv = _init_linear(ks[8], dim, dim)
    wso, bso = _init_linear(ks[9], dim, dim)
    cq, cbq = _init_linear(ks[10], dim, dim)
    ck, cbk = _init_linear(ks[11], dim, dim)
    cv, cbv = _init_linear(ks[12], dim, dim)
    wco, bco = _init_linear(ks[13], dim, dim)
    w1, b1 = _init_linear(ks[14], dim, mlp_dim)
    w2, b2 = _init_linear(ks[15], mlp_dim, dim)
    return {
        "norm1": norms[0], "norm2": norms[1], "norm3": norms[2],
        "self_attn": {
            # packed QKV weight; 1/sqrt(head_size) folded into the Q slice
            "wqkv": jnp.concatenate([wq * inv, wk, wv], axis=1),   # (D, 3D)
            "bqkv": jnp.concatenate([bq * inv, bk, bv], axis=1),   # (1, 3D)
            "wo": wso, "bo": bso,
        },
        "cross_attn": {
            "wq": cq * inv, "bq": cbq * inv,                       # (D, D)
            "wkv": jnp.concatenate([ck, cv], axis=1),              # (D, 2D)
            "bkv": jnp.concatenate([cbk, cbv], axis=1),            # (1, 2D)
            "wo": wco, "bo": bco,
        },
        "ffn": {"w1": w1, "b1": b1, "w2": w2, "b2": b2},
    }


# ----------------------------------------------------------------------------
# Main
# ----------------------------------------------------------------------------
if __name__ == "__main__":
    DIM, HEADS, MLP, STEPS = 32, 4, 64, 100
    B, L, S = 2, 8, 8

    key = jax.random.PRNGKey(0)
    kp, kx, ke = jax.random.split(key, 3)
    params = init_decoder_layer(kp, DIM, HEADS, MLP, STEPS)

    x = jax.random.normal(kx, (B, L, DIM), jnp.float32)
    enc_out = jax.random.normal(ke, (B, S, DIM), jnp.float32)

    # padding masks (True = attend); second batch element has trailing pads
    tgt_lens = jnp.array([8, 6])
    src_lens = jnp.array([8, 7])
    tgt_mask = (jnp.arange(L)[None, :] < tgt_lens[:, None])[:, None, None, :]
    src_mask = (jnp.arange(S)[None, :] < src_lens[:, None])[:, None, None, :]
    t = jnp.array([3, 57], dtype=jnp.int32)

    fwd = jax.jit(functools.partial(decoder_layer, num_heads=HEADS))
    out = fwd(params, x, enc_out, tgt_mask, src_mask, t)
    jax.block_until_ready(out)
    assert out.shape == (B, L, DIM) and out.dtype == jnp.float32
    print("KERNEL_OK")
</pallas_src>

<mosaic_0001>
module attributes {stable_mosaic.version = 11 : i64} {
  func.func @_decoder_layer_kernel(%arg0: i32, %arg1: memref<1x8x32xf32, #tpu.memory_space<vmem>>, %arg2: memref<1x8x32xf32, #tpu.memory_space<vmem>>, %arg3: memref<1x1x8xf32, #tpu.memory_space<vmem>>, %arg4: memref<1x1x8xf32, #tpu.memory_space<vmem>>, %arg5: memref<1x1x32xf32, #tpu.memory_space<vmem>>, %arg6: memref<1x1x32xf32, #tpu.memory_space<vmem>>, %arg7: memref<1x1x32xf32, #tpu.memory_space<vmem>>, %arg8: memref<32x64xf32, #tpu.memory_space<vmem>>, %arg9: memref<1x64xf32, #tpu.memory_space<vmem>>, %arg10: memref<32x64xf32, #tpu.memory_space<vmem>>, %arg11: memref<1x64xf32, #tpu.memory_space<vmem>>, %arg12: memref<32x64xf32, #tpu.memory_space<vmem>>, %arg13: memref<1x64xf32, #tpu.memory_space<vmem>>, %arg14: memref<32x96xf32, #tpu.memory_space<vmem>>, %arg15: memref<1x96xf32, #tpu.memory_space<vmem>>, %arg16: memref<32x32xf32, #tpu.memory_space<vmem>>, %arg17: memref<1x32xf32, #tpu.memory_space<vmem>>, %arg18: memref<32x32xf32, #tpu.memory_space<vmem>>, %arg19: memref<1x32xf32, #tpu.memory_space<vmem>>, %arg20: memref<32x64xf32, #tpu.memory_space<vmem>>, %arg21: memref<1x64xf32, #tpu.memory_space<vmem>>, %arg22: memref<32x32xf32, #tpu.memory_space<vmem>>, %arg23: memref<1x32xf32, #tpu.memory_space<vmem>>, %arg24: memref<32x64xf32, #tpu.memory_space<vmem>>, %arg25: memref<1x64xf32, #tpu.memory_space<vmem>>, %arg26: memref<64x32xf32, #tpu.memory_space<vmem>>, %arg27: memref<1x32xf32, #tpu.memory_space<vmem>>, %arg28: memref<1x8x32xf32, #tpu.memory_space<vmem>>) attributes {dimension_semantics = [#tpu.dimension_semantics<parallel>], iteration_bounds = array<i64: 2>, scalar_prefetch = 0 : i64, scratch_operands = 0 : i64, tpu.core_type = #tpu.core_type<tc>, window_params = [{transform_indices = @transform_0, window_bounds = array<i64: 1, 8, 32>}, {transform_indices = @transform_1, window_bounds = array<i64: 1, 8, 32>}, {transform_indices = @transform_2, window_bounds = array<i64: 1, 1, 8>}, {transform_indices = @transform_3, window_bounds = array<i64: 1, 1, 8>}, {transform_indices = @transform_4, window_bounds = array<i64: 1, 1, 32>}, {transform_indices = @transform_5, window_bounds = array<i64: 1, 1, 32>}, {transform_indices = @transform_6, window_bounds = array<i64: 1, 1, 32>}, {pipeline_mode = #tpu.pipeline_mode<synchronous>, transform_indices = @transform_7, window_bounds = array<i64: 32, 64>}, {pipeline_mode = #tpu.pipeline_mode<synchronous>, transform_indices = @transform_8, window_bounds = array<i64: 1, 64>}, {pipeline_mode = #tpu.pipeline_mode<synchronous>, transform_indices = @transform_9, window_bounds = array<i64: 32, 64>}, {pipeline_mode = #tpu.pipeline_mode<synchronous>, transform_indices = @transform_10, window_bounds = array<i64: 1, 64>}, {pipeline_mode = #tpu.pipeline_mode<synchronous>, transform_indices = @transform_11, window_bounds = array<i64: 32, 64>}, {pipeline_mode = #tpu.pipeline_mode<synchronous>, transform_indices = @transform_12, window_bounds = array<i64: 1, 64>}, {pipeline_mode = #tpu.pipeline_mode<synchronous>, transform_indices = @transform_13, window_bounds = array<i64: 32, 96>}, {pipeline_mode = #tpu.pipeline_mode<synchronous>, transform_indices = @transform_14, window_bounds = array<i64: 1, 96>}, {pipeline_mode = #tpu.pipeline_mode<synchronous>, transform_indices = @transform_15, window_bounds = array<i64: 32, 32>}, {pipeline_mode = #tpu.pipeline_mode<synchronous>, transform_indices = @transform_16, window_bounds = array<i64: 1, 32>}, {pipeline_mode = #tpu.pipeline_mode<synchronous>, transform_indices = @transform_17, window_bounds = array<i64: 32, 32>}, {pipeline_mode = #tpu.pipeline_mode<synchronous>, transform_indices = @transform_18, window_bounds = array<i64: 1, 32>}, {pipeline_mode = #tpu.pipeline_mode<synchronous>, transform_indices = @transform_19, window_bounds = array<i64: 32, 64>}, {pipeline_mode = #tpu.pipeline_mode<synchronous>, transform_indices = @transform_20, window_bounds = array<i64: 1, 64>}, {pipeline_mode = #tpu.pipeline_mode<synchronous>, transform_indices = @transform_21, window_bounds = array<i64: 32, 32>}, {pipeline_mode = #tpu.pipeline_mode<synchronous>, transform_indices = @transform_22, window_bounds = array<i64: 1, 32>}, {pipeline_mode = #tpu.pipeline_mode<synchronous>, transform_indices = @transform_23, window_bounds = array<i64: 32, 64>}, {pipeline_mode = #tpu.pipeline_mode<synchronous>, transform_indices = @transform_24, window_bounds = array<i64: 1, 64>}, {pipeline_mode = #tpu.pipeline_mode<synchronous>, transform_indices = @transform_25, window_bounds = array<i64: 64, 32>}, {pipeline_mode = #tpu.pipeline_mode<synchronous>, transform_indices = @transform_26, window_bounds = array<i64: 1, 32>}, {transform_indices = @transform_27, window_bounds = array<i64: 1, 8, 32>}]} {
    %c0 = arith.constant 0 : index
    %c0_0 = arith.constant 0 : index
    %c0_1 = arith.constant 0 : index
    %0 = vector.load %arg1[%c0, %c0_0, %c0_1] : memref<1x8x32xf32, #tpu.memory_space<vmem>>, vector<1x8x32xf32>
    %1 = vector.shape_cast %0 : vector<1x8x32xf32> to vector<8x32xf32>
    %c0_2 = arith.constant 0 : index
    %c0_3 = arith.constant 0 : index
    %c0_4 = arith.constant 0 : index
    %2 = vector.load %arg5[%c0_2, %c0_3, %c0_4] : memref<1x1x32xf32, #tpu.memory_space<vmem>>, vector<1x1x32xf32>
    %3 = vector.shape_cast %2 : vector<1x1x32xf32> to vector<1x32xf32>
    %c0_5 = arith.constant 0 : index
    %c0_6 = arith.constant 0 : index
    %4 = vector.load %arg8[%c0_5, %c0_6] : memref<32x64xf32, #tpu.memory_space<vmem>>, vector<32x64xf32>
    %c0_7 = arith.constant 0 : index
    %c0_8 = arith.constant 0 : index
    %5 = vector.load %arg9[%c0_7, %c0_8] : memref<1x64xf32, #tpu.memory_space<vmem>>, vector<1x64xf32>
    %6 = arith.negf %3 : vector<1x32xf32>
    %7 = math.exp %6 : vector<1x32xf32>
    %cst = arith.constant 1.000000e+00 : f32
    %8 = vector.broadcast %cst : f32 to vector<1x32xf32>
    %9 = arith.addf %8, %7 : vector<1x32xf32>
    %10 = arith.divf %8, %9 : vector<1x32xf32>
    %11 = arith.mulf %3, %10 : vector<1x32xf32>
    %cst_9 = arith.constant dense<0.000000e+00> : vector<1x64xf32>
    %12 = tpu.matmul %11, %4, %cst_9 {dimension_numbers = #tpu.dot_dimension_numbers<[1], [0], [0], [1], [0, 0, 1, 1], [], []>} : vector<1x32xf32>, vector<32x64xf32>, vector<1x64xf32> -> vector<1x64xf32>
    %13 = arith.addf %12, %5 : vector<1x64xf32>
    %14 = vector.extract_strided_slice %13 {offsets = [0, 0], sizes = [1, 32], strides = [1, 1]} : vector<1x64xf32> to vector<1x32xf32>
    %15 = vector.extract_strided_slice %13 {offsets = [0, 32], sizes = [1, 32], strides = [1, 1]} : vector<1x64xf32> to vector<1x32xf32>
    %cst_10 = arith.constant dense<0.000000e+00> : vector<8xf32>
    %16 = vector.multi_reduction <add>, %1, %cst_10 [1] : vector<8x32xf32> to vector<8xf32>
    %17 = vector.shape_cast %16 : vector<8xf32> to vector<8x1xf32>
    %cst_11 = arith.constant 3.200000e+01 : f32
    %18 = vector.broadcast %cst_11 : f32 to vector<8x1xf32>
    %19 = arith.divf %17, %18 : vector<8x1xf32>
    %20 = vector.broadcast %19 : vector<8x1xf32> to vector<8x32xf32>
    %21 = arith.subf %1, %20 : vector<8x32xf32>
    %22 = arith.mulf %21, %21 : vector<8x32xf32>
    %cst_12 = arith.constant dense<0.000000e+00> : vector<8xf32>
    %23 = vector.multi_reduction <add>, %22, %cst_12 [1] : vector<8x32xf32> to vector<8xf32>
    %24 = vector.shape_cast %23 : vector<8xf32> to vector<8x1xf32>
    %cst_13 = arith.constant 3.200000e+01 : f32
    %25 = vector.broadcast %cst_13 : f32 to vector<8x1xf32>
    %26 = arith.divf %24, %25 : vector<8x1xf32>
    %27 = vector.broadcast %19 : vector<8x1xf32> to vector<8x32xf32>
    %28 = arith.subf %1, %27 : vector<8x32xf32>
    %cst_14 = arith.constant 9.99999974E-6 : f32
    %29 = vector.broadcast %cst_14 : f32 to vector<8x1xf32>
    %30 = arith.addf %26, %29 : vector<8x1xf32>
    %31 = math.rsqrt %30 : vector<8x1xf32>
    %32 = vector.broadcast %31 : vector<8x1xf32> to vector<8x32xf32>
    %33 = arith.mulf %28, %32 : vector<8x32xf32>
    %cst_15 = arith.constant 1.000000e+00 : f32
    %34 = vector.broadcast %cst_15 : f32 to vector<1x32xf32>
    %35 = arith.addf %34, %14 : vector<1x32xf32>
    %36 = vector.broadcast %35 : vector<1x32xf32> to vector<8x32xf32>
    %37 = arith.mulf %33, %36 : vector<8x32xf32>
    %38 = vector.broadcast %15 : vector<1x32xf32> to vector<8x32xf32>
    %39 = arith.addf %37, %38 : vector<8x32xf32>
    %c0_16 = arith.constant 0 : index
    %c0_17 = arith.constant 0 : index
    %40 = vector.load %arg14[%c0_16, %c0_17] : memref<32x96xf32, #tpu.memory_space<vmem>>, vector<32x96xf32>
    %c0_18 = arith.constant 0 : index
    %c0_19 = arith.constant 0 : index
    %41 = vector.load %arg15[%c0_18, %c0_19] : memref<1x96xf32, #tpu.memory_space<vmem>>, vector<1x96xf32>
    %42 = arith.truncf %39 : vector<8x32xf32> to vector<8x32xbf16>
    %43 = arith.truncf %40 : vector<32x96xf32> to vector<32x96xbf16>
    %cst_20 = arith.constant dense<0.000000e+00> : vector<8x96xf32>
    %44 = tpu.matmul %42, %43, %cst_20 {dimension_numbers = #tpu.dot_dimension_numbers<[1], [0], [0], [1], [0, 0, 1, 1], [], []>} : vector<8x32xbf16>, vector<32x96xbf16>, vector<8x96xf32> -> vector<8x96xf32>
    %45 = vector.broadcast %41 : vector<1x96xf32> to vector<8x96xf32>
    %46 = arith.addf %44, %45 : vector<8x96xf32>
    %47 = vector.extract_strided_slice %46 {offsets = [0, 0], sizes = [8, 32], strides = [1, 1]} : vector<8x96xf32> to vector<8x32xf32>
    %48 = vector.extract_strided_slice %46 {offsets = [0, 32], sizes = [8, 32], strides = [1, 1]} : vector<8x96xf32> to vector<8x32xf32>
    %49 = vector.extract_strided_slice %46 {offsets = [0, 64], sizes = [8, 32], strides = [1, 1]} : vector<8x96xf32> to vector<8x32xf32>
    %c0_21 = arith.constant 0 : index
    %c0_22 = arith.constant 0 : index
    %c0_23 = arith.constant 0 : index
    %50 = vector.load %arg3[%c0_21, %c0_22, %c0_23] : memref<1x1x8xf32, #tpu.memory_space<vmem>>, vector<1x1x8xf32>
    %51 = vector.shape_cast %50 : vector<1x1x8xf32> to vector<1x8xf32>
    %c0_24 = arith.constant 0 : index
    %c0_25 = arith.constant 0 : index
    %52 = vector.load %arg16[%c0_24, %c0_25] : memref<32x32xf32, #tpu.memory_space<vmem>>, vector<32x32xf32>
    %c0_26 = arith.constant 0 : index
    %c0_27 = arith.constant 0 : index
    %53 = vector.load %arg17[%c0_26, %c0_27] : memref<1x32xf32, #tpu.memory_space<vmem>>, vector<1x32xf32>
    %cst_28 = arith.constant 5.000000e-01 : f32
    %54 = vector.broadcast %cst_28 : f32 to vector<1x8xf32>
    %55 = arith.cmpf ogt, %51, %54 : vector<1x8xf32>
    %56 = vector.broadcast %53 : vector<1x32xf32> to vector<8x32xf32>
    %57 = arith.addf %1, %56 : vector<8x32xf32>
    %58 = vector.extract_strided_slice %47 {offsets = [0, 0], sizes = [8, 8], strides = [1, 1]} : vector<8x32xf32> to vector<8x8xf32>
    %59 = arith.truncf %58 : vector<8x8xf32> to vector<8x8xbf16>
    %60 = vector.extract_strided_slice %48 {offsets = [0, 0], sizes = [8, 8], strides = [1, 1]} : vector<8x32xf32> to vector<8x8xf32>
    %61 = arith.truncf %60 : vector<8x8xf32> to vector<8x8xbf16>
    %62 = vector.extract_strided_slice %49 {offsets = [0, 0], sizes = [8, 8], strides = [1, 1]} : vector<8x32xf32> to vector<8x8xf32>
    %63 = arith.truncf %62 : vector<8x8xf32> to vector<8x8xbf16>
    %cst_29 = arith.constant dense<0.000000e+00> : vector<8x8xf32>
    %64 = tpu.matmul %59, %61, %cst_29 {dimension_numbers = #tpu.dot_dimension_numbers<[1], [1], [0], [0], [0, 0, 1, 0], [], []>} : vector<8x8xbf16>, vector<8x8xbf16>, vector<8x8xf32> -> vector<8x8xf32>
    %cst_30 = arith.constant -1.000000e+30 : f32
    %65 = vector.shape_cast %55 : vector<1x8xi1> to vector<1x8xi1>
    %66 = vector.broadcast %65 : vector<1x8xi1> to vector<8x8xi1>
    %67 = vector.broadcast %cst_30 : f32 to vector<8x8xf32>
    %68 = arith.select %66, %64, %67 : vector<8x8xi1>, vector<8x8xf32>
    %cst_31 = arith.constant dense<0xFF800000> : vector<8xf32>
    %69 = vector.multi_reduction <maximumf>, %68, %cst_31 [1] : vector<8x8xf32> to vector<8xf32>
    %70 = vector.shape_cast %69 : vector<8xf32> to vector<8x1xf32>
    %71 = vector.broadcast %70 : vector<8x1xf32> to vector<8x8xf32>
    %72 = arith.subf %68, %71 : vector<8x8xf32>
    %73 = math.exp %72 : vector<8x8xf32>
    %cst_32 = arith.constant dense<0.000000e+00> : vector<8xf32>
    %74 = vector.multi_reduction <add>, %73, %cst_32 [1] : vector<8x8xf32> to vector<8xf32>
    %75 = vector.shape_cast %74 : vector<8xf32> to vector<8x1xf32>
    %76 = tpu.reciprocal %75 {approx = true} : vector<8x1xf32> -> vector<8x1xf32>
    %77 = vector.broadcast %76 : vector<8x1xf32> to vector<8x8xf32>
    %78 = arith.mulf %73, %77 : vector<8x8xf32>
    %79 = arith.truncf %78 : vector<8x8xf32> to vector<8x8xbf16>
    %cst_33 = arith.constant dense<0.000000e+00> : vector<8x8xf32>
    %80 = tpu.matmul %79, %63, %cst_33 {dimension_numbers = #tpu.dot_dimension_numbers<[1], [0], [0], [1], [0, 0, 1, 1], [], []>} : vector<8x8xbf16>, vector<8x8xbf16>, vector<8x8xf32> -> vector<8x8xf32>
    %81 = arith.truncf %80 : vector<8x8xf32> to vector<8x8xbf16>
    %82 = vector.extract_strided_slice %52 {offsets = [0, 0], sizes = [8, 32], strides = [1, 1]} : vector<32x32xf32> to vector<8x32xf32>
    %83 = arith.truncf %82 : vector<8x32xf32> to vector<8x32xbf16>
    %cst_34 = arith.constant dense<0.000000e+00> : vector<8x32xf32>
    %84 = tpu.matmul %81, %83, %cst_34 {dimension_numbers = #tpu.dot_dimension_numbers<[1], [0], [0], [1], [0, 0, 1, 1], [], []>} : vector<8x8xbf16>, vector<8x32xbf16>, vector<8x32xf32> -> vector<8x32xf32>
    %85 = arith.addf %57, %84 : vector<8x32xf32>
    %86 = vector.extract_strided_slice %47 {offsets = [0, 8], sizes = [8, 8], strides = [1, 1]} : vector<8x32xf32> to vector<8x8xf32>
    %87 = arith.truncf %86 : vector<8x8xf32> to vector<8x8xbf16>
    %88 = vector.extract_strided_slice %48 {offsets = [0, 8], sizes = [8, 8], strides = [1, 1]} : vector<8x32xf32> to vector<8x8xf32>
    %89 = arith.truncf %88 : vector<8x8xf32> to vector<8x8xbf16>
    %90 = vector.extract_strided_slice %49 {offsets = [0, 8], sizes = [8, 8], strides = [1, 1]} : vector<8x32xf32> to vector<8x8xf32>
    %91 = arith.truncf %90 : vector<8x8xf32> to vector<8x8xbf16>
    %cst_35 = arith.constant dense<0.000000e+00> : vector<8x8xf32>
    %92 = tpu.matmul %87, %89, %cst_35 {dimension_numbers = #tpu.dot_dimension_numbers<[1], [1], [0], [0], [0, 0, 1, 0], [], []>} : vector<8x8xbf16>, vector<8x8xbf16>, vector<8x8xf32> -> vector<8x8xf32>
    %cst_36 = arith.constant -1.000000e+30 : f32
    %93 = vector.shape_cast %55 : vector<1x8xi1> to vector<1x8xi1>
    %94 = vector.broadcast %93 : vector<1x8xi1> to vector<8x8xi1>
    %95 = vector.broadcast %cst_36 : f32 to vector<8x8xf32>
    %96 = arith.select %94, %92, %95 : vector<8x8xi1>, vector<8x8xf32>
    %cst_37 = arith.constant dense<0xFF800000> : vector<8xf32>
    %97 = vector.multi_reduction <maximumf>, %96, %cst_37 [1] : vector<8x8xf32> to vector<8xf32>
    %98 = vector.shape_cast %97 : vector<8xf32> to vector<8x1xf32>
    %99 = vector.broadcast %98 : vector<8x1xf32> to vector<8x8xf32>
    %100 = arith.subf %96, %99 : vector<8x8xf32>
    %101 = math.exp %100 : vector<8x8xf32>
    %cst_38 = arith.constant dense<0.000000e+00> : vector<8xf32>
    %102 = vector.multi_reduction <add>, %101, %cst_38 [1] : vector<8x8xf32> to vector<8xf32>
    %103 = vector.shape_cast %102 : vector<8xf32> to vector<8x1xf32>
    %104 = tpu.reciprocal %103 {approx = true} : vector<8x1xf32> -> vector<8x1xf32>
    %105 = vector.broadcast %104 : vector<8x1xf32> to vector<8x8xf32>
    %106 = arith.mulf %101, %105 : vector<8x8xf32>
    %107 = arith.truncf %106 : vector<8x8xf32> to vector<8x8xbf16>
    %cst_39 = arith.constant dense<0.000000e+00> : vector<8x8xf32>
    %108 = tpu.matmul %107, %91, %cst_39 {dimension_numbers = #tpu.dot_dimension_numbers<[1], [0], [0], [1], [0, 0, 1, 1], [], []>} : vector<8x8xbf16>, vector<8x8xbf16>, vector<8x8xf32> -> vector<8x8xf32>
    %109 = arith.truncf %108 : vector<8x8xf32> to vector<8x8xbf16>
    %110 = vector.extract_strided_slice %52 {offsets = [8, 0], sizes = [8, 32], strides = [1, 1]} : vector<32x32xf32> to vector<8x32xf32>
    %111 = arith.truncf %110 : vector<8x32xf32> to vector<8x32xbf16>
    %cst_40 = arith.constant dense<0.000000e+00> : vector<8x32xf32>
    %112 = tpu.matmul %109, %111, %cst_40 {dimension_numbers = #tpu.dot_dimension_numbers<[1], [0], [0], [1], [0, 0, 1, 1], [], []>} : vector<8x8xbf16>, vector<8x32xbf16>, vector<8x32xf32> -> vector<8x32xf32>
    %113 = arith.addf %85, %112 : vector<8x32xf32>
    %114 = vector.extract_strided_slice %47 {offsets = [0, 16], sizes = [8, 8], strides = [1, 1]} : vector<8x32xf32> to vector<8x8xf32>
    %115 = arith.truncf %114 : vector<8x8xf32> to vector<8x8xbf16>
    %116 = vector.extract_strided_slice %48 {offsets = [0, 16], sizes = [8, 8], strides = [1, 1]} : vector<8x32xf32> to vector<8x8xf32>
    %117 = arith.truncf %116 : vector<8x8xf32> to vector<8x8xbf16>
    %118 = vector.extract_strided_slice %49 {offsets = [0, 16], sizes = [8, 8], strides = [1, 1]} : vector<8x32xf32> to vector<8x8xf32>
    %119 = arith.truncf %118 : vector<8x8xf32> to vector<8x8xbf16>
    %cst_41 = arith.constant dense<0.000000e+00> : vector<8x8xf32>
    %120 = tpu.matmul %115, %117, %cst_41 {dimension_numbers = #tpu.dot_dimension_numbers<[1], [1], [0], [0], [0, 0, 1, 0], [], []>} : vector<8x8xbf16>, vector<8x8xbf16>, vector<8x8xf32> -> vector<8x8xf32>
    %cst_42 = arith.constant -1.000000e+30 : f32
    %121 = vector.shape_cast %55 : vector<1x8xi1> to vector<1x8xi1>
    %122 = vector.broadcast %121 : vector<1x8xi1> to vector<8x8xi1>
    %123 = vector.broadcast %cst_42 : f32 to vector<8x8xf32>
    %124 = arith.select %122, %120, %123 : vector<8x8xi1>, vector<8x8xf32>
    %cst_43 = arith.constant dense<0xFF800000> : vector<8xf32>
    %125 = vector.multi_reduction <maximumf>, %124, %cst_43 [1] : vector<8x8xf32> to vector<8xf32>
    %126 = vector.shape_cast %125 : vector<8xf32> to vector<8x1xf32>
    %127 = vector.broadcast %126 : vector<8x1xf32> to vector<8x8xf32>
    %128 = arith.subf %124, %127 : vector<8x8xf32>
    %129 = math.exp %128 : vector<8x8xf32>
    %cst_44 = arith.constant dense<0.000000e+00> : vector<8xf32>
    %130 = vector.multi_reduction <add>, %129, %cst_44 [1] : vector<8x8xf32> to vector<8xf32>
    %131 = vector.shape_cast %130 : vector<8xf32> to vector<8x1xf32>
    %132 = tpu.reciprocal %131 {approx = true} : vector<8x1xf32> -> vector<8x1xf32>
    %133 = vector.broadcast %132 : vector<8x1xf32> to vector<8x8xf32>
    %134 = arith.mulf %129, %133 : vector<8x8xf32>
    %135 = arith.truncf %134 : vector<8x8xf32> to vector<8x8xbf16>
    %cst_45 = arith.constant dense<0.000000e+00> : vector<8x8xf32>
    %136 = tpu.matmul %135, %119, %cst_45 {dimension_numbers = #tpu.dot_dimension_numbers<[1], [0], [0], [1], [0, 0, 1, 1], [], []>} : vector<8x8xbf16>, vector<8x8xbf16>, vector<8x8xf32> -> vector<8x8xf32>
    %137 = arith.truncf %136 : vector<8x8xf32> to vector<8x8xbf16>
    %138 = vector.extract_strided_slice %52 {offsets = [16, 0], sizes = [8, 32], strides = [1, 1]} : vector<32x32xf32> to vector<8x32xf32>
    %139 = arith.truncf %138 : vector<8x32xf32> to vector<8x32xbf16>
    %cst_46 = arith.constant dense<0.000000e+00> : vector<8x32xf32>
    %140 = tpu.matmul %137, %139, %cst_46 {dimension_numbers = #tpu.dot_dimension_numbers<[1], [0], [0], [1], [0, 0, 1, 1], [], []>} : vector<8x8xbf16>, vector<8x32xbf16>, vector<8x32xf32> -> vector<8x32xf32>
    %141 = arith.addf %113, %140 : vector<8x32xf32>
    %142 = vector.extract_strided_slice %47 {offsets = [0, 24], sizes = [8, 8], strides = [1, 1]} : vector<8x32xf32> to vector<8x8xf32>
    %143 = arith.truncf %142 : vector<8x8xf32> to vector<8x8xbf16>
    %144 = vector.extract_strided_slice %48 {offsets = [0, 24], sizes = [8, 8], strides = [1, 1]} : vector<8x32xf32> to vector<8x8xf32>
    %145 = arith.truncf %144 : vector<8x8xf32> to vector<8x8xbf16>
    %146 = vector.extract_strided_slice %49 {offsets = [0, 24], sizes = [8, 8], strides = [1, 1]} : vector<8x32xf32> to vector<8x8xf32>
    %147 = arith.truncf %146 : vector<8x8xf32> to vector<8x8xbf16>
    %cst_47 = arith.constant dense<0.000000e+00> : vector<8x8xf32>
    %148 = tpu.matmul %143, %145, %cst_47 {dimension_numbers = #tpu.dot_dimension_numbers<[1], [1], [0], [0], [0, 0, 1, 0], [], []>} : vector<8x8xbf16>, vector<8x8xbf16>, vector<8x8xf32> -> vector<8x8xf32>
    %cst_48 = arith.constant -1.000000e+30 : f32
    %149 = vector.shape_cast %55 : vector<1x8xi1> to vector<1x8xi1>
    %150 = vector.broadcast %149 : vector<1x8xi1> to vector<8x8xi1>
    %151 = vector.broadcast %cst_48 : f32 to vector<8x8xf32>
    %152 = arith.select %150, %148, %151 : vector<8x8xi1>, vector<8x8xf32>
    %cst_49 = arith.constant dense<0xFF800000> : vector<8xf32>
    %153 = vector.multi_reduction <maximumf>, %152, %cst_49 [1] : vector<8x8xf32> to vector<8xf32>
    %154 = vector.shape_cast %153 : vector<8xf32> to vector<8x1xf32>
    %155 = vector.broadcast %154 : vector<8x1xf32> to vector<8x8xf32>
    %156 = arith.subf %152, %155 : vector<8x8xf32>
    %157 = math.exp %156 : vector<8x8xf32>
    %cst_50 = arith.constant dense<0.000000e+00> : vector<8xf32>
    %158 = vector.multi_reduction <add>, %157, %cst_50 [1] : vector<8x8xf32> to vector<8xf32>
    %159 = vector.shape_cast %158 : vector<8xf32> to vector<8x1xf32>
    %160 = tpu.reciprocal %159 {approx = true} : vector<8x1xf32> -> vector<8x1xf32>
    %161 = vector.broadcast %160 : vector<8x1xf32> to vector<8x8xf32>
    %162 = arith.mulf %157, %161 : vector<8x8xf32>
    %163 = arith.truncf %162 : vector<8x8xf32> to vector<8x8xbf16>
    %cst_51 = arith.constant dense<0.000000e+00> : vector<8x8xf32>
    %164 = tpu.matmul %163, %147, %cst_51 {dimension_numbers = #tpu.dot_dimension_numbers<[1], [0], [0], [1], [0, 0, 1, 1], [], []>} : vector<8x8xbf16>, vector<8x8xbf16>, vector<8x8xf32> -> vector<8x8xf32>
    %165 = arith.truncf %164 : vector<8x8xf32> to vector<8x8xbf16>
    %166 = vector.extract_strided_slice %52 {offsets = [24, 0], sizes = [8, 32], strides = [1, 1]} : vector<32x32xf32> to vector<8x32xf32>
    %167 = arith.truncf %166 : vector<8x32xf32> to vector<8x32xbf16>
    %cst_52 = arith.constant dense<0.000000e+00> : vector<8x32xf32>
    %168 = tpu.matmul %165, %167, %cst_52 {dimension_numbers = #tpu.dot_dimension_numbers<[1], [0], [0], [1], [0, 0, 1, 1], [], []>} : vector<8x8xbf16>, vector<8x32xbf16>, vector<8x32xf32> -> vector<8x32xf32>
    %169 = arith.addf %141, %168 : vector<8x32xf32>
    %c0_53 = arith.constant 0 : index
    %c0_54 = arith.constant 0 : index
    %c0_55 = arith.constant 0 : index
    %170 = vector.load %arg6[%c0_53, %c0_54, %c0_55] : memref<1x1x32xf32, #tpu.memory_space<vmem>>, vector<1x1x32xf32>
    %171 = vector.shape_cast %170 : vector<1x1x32xf32> to vector<1x32xf32>
    %c0_56 = arith.constant 0 : index
    %c0_57 = arith.constant 0 : index
    %172 = vector.load %arg10[%c0_56, %c0_57] : memref<32x64xf32, #tpu.memory_space<vmem>>, vector<32x64xf32>
    %c0_58 = arith.constant 0 : index
    %c0_59 = arith.constant 0 : index
    %173 = vector.load %arg11[%c0_58, %c0_59] : memref<1x64xf32, #tpu.memory_space<vmem>>, vector<1x64xf32>
    %174 = arith.negf %171 : vector<1x32xf32>
    %175 = math.exp %174 : vector<1x32xf32>
    %cst_60 = arith.constant 1.000000e+00 : f32
    %176 = vector.broadcast %cst_60 : f32 to vector<1x32xf32>
    %177 = arith.addf %176, %175 : vector<1x32xf32>
    %178 = arith.divf %176, %177 : vector<1x32xf32>
    %179 = arith.mulf %171, %178 : vector<1x32xf32>
    %cst_61 = arith.constant dense<0.000000e+00> : vector<1x64xf32>
    %180 = tpu.matmul %179, %172, %cst_61 {dimension_numbers = #tpu.dot_dimension_numbers<[1], [0], [0], [1], [0, 0, 1, 1], [], []>} : vector<1x32xf32>, vector<32x64xf32>, vector<1x64xf32> -> vector<1x64xf32>
    %181 = arith.addf %180, %173 : vector<1x64xf32>
    %182 = vector.extract_strided_slice %181 {offsets = [0, 0], sizes = [1, 32], strides = [1, 1]} : vector<1x64xf32> to vector<1x32xf32>
    %183 = vector.extract_strided_slice %181 {offsets = [0, 32], sizes = [1, 32], strides = [1, 1]} : vector<1x64xf32> to vector<1x32xf32>
    %cst_62 = arith.constant dense<0.000000e+00> : vector<8xf32>
    %184 = vector.multi_reduction <add>, %169, %cst_62 [1] : vector<8x32xf32> to vector<8xf32>
    %185 = vector.shape_cast %184 : vector<8xf32> to vector<8x1xf32>
    %cst_63 = arith.constant 3.200000e+01 : f32
    %186 = vector.broadcast %cst_63 : f32 to vector<8x1xf32>
    %187 = arith.divf %185, %186 : vector<8x1xf32>
    %188 = vector.broadcast %187 : vector<8x1xf32> to vector<8x32xf32>
    %189 = arith.subf %169, %188 : vector<8x32xf32>
    %190 = arith.mulf %189, %189 : vector<8x32xf32>
    %cst_64 = arith.constant dense<0.000000e+00> : vector<8xf32>
    %191 = vector.multi_reduction <add>, %190, %cst_64 [1] : vector<8x32xf32> to vector<8xf32>
    %192 = vector.shape_cast %191 : vector<8xf32> to vector<8x1xf32>
    %cst_65 = arith.constant 3.200000e+01 : f32
    %193 = vector.broadcast %cst_65 : f32 to vector<8x1xf32>
    %194 = arith.divf %192, %193 : vector<8x1xf32>
    %195 = vector.broadcast %187 : vector<8x1xf32> to vector<8x32xf32>
    %196 = arith.subf %169, %195 : vector<8x32xf32>
    %cst_66 = arith.constant 9.99999974E-6 : f32
    %197 = vector.broadcast %cst_66 : f32 to vector<8x1xf32>
    %198 = arith.addf %194, %197 : vector<8x1xf32>
    %199 = math.rsqrt %198 : vector<8x1xf32>
    %200 = vector.broadcast %199 : vector<8x1xf32> to vector<8x32xf32>
    %201 = arith.mulf %196, %200 : vector<8x32xf32>
    %cst_67 = arith.constant 1.000000e+00 : f32
    %202 = vector.broadcast %cst_67 : f32 to vector<1x32xf32>
    %203 = arith.addf %202, %182 : vector<1x32xf32>
    %204 = vector.broadcast %203 : vector<1x32xf32> to vector<8x32xf32>
    %205 = arith.mulf %201, %204 : vector<8x32xf32>
    %206 = vector.broadcast %183 : vector<1x32xf32> to vector<8x32xf32>
    %207 = arith.addf %205, %206 : vector<8x32xf32>
    %c0_68 = arith.constant 0 : index
    %c0_69 = arith.constant 0 : index
    %208 = vector.load %arg18[%c0_68, %c0_69] : memref<32x32xf32, #tpu.memory_space<vmem>>, vector<32x32xf32>
    %c0_70 = arith.constant 0 : index
    %c0_71 = arith.constant 0 : index
    %209 = vector.load %arg19[%c0_70, %c0_71] : memref<1x32xf32, #tpu.memory_space<vmem>>, vector<1x32xf32>
    %210 = arith.truncf %207 : vector<8x32xf32> to vector<8x32xbf16>
    %211 = arith.truncf %208 : vector<32x32xf32> to vector<32x32xbf16>
    %cst_72 = arith.constant dense<0.000000e+00> : vector<8x32xf32>
    %212 = tpu.matmul %210, %211, %cst_72 {dimension_numbers = #tpu.dot_dimension_numbers<[1], [0], [0], [1], [0, 0, 1, 1], [], []>} : vector<8x32xbf16>, vector<32x32xbf16>, vector<8x32xf32> -> vector<8x32xf32>
    %213 = vector.broadcast %209 : vector<1x32xf32> to vector<8x32xf32>
    %214 = arith.addf %212, %213 : vector<8x32xf32>
    %c0_73 = arith.constant 0 : index
    %c0_74 = arith.constant 0 : index
    %c0_75 = arith.constant 0 : index
    %215 = vector.load %arg2[%c0_73, %c0_74, %c0_75] : memref<1x8x32xf32, #tpu.memory_space<vmem>>, vector<1x8x32xf32>
    %216 = vector.shape_cast %215 : vector<1x8x32xf32> to vector<8x32xf32>
    %c0_76 = arith.constant 0 : index
    %c0_77 = arith.constant 0 : index
    %217 = vector.load %arg20[%c0_76, %c0_77] : memref<32x64xf32, #tpu.memory_space<vmem>>, vector<32x64xf32>
    %c0_78 = arith.constant 0 : index
    %c0_79 = arith.constant 0 : index
    %218 = vector.load %arg21[%c0_78, %c0_79] : memref<1x64xf32, #tpu.memory_space<vmem>>, vector<1x64xf32>
    %219 = arith.truncf %216 : vector<8x32xf32> to vector<8x32xbf16>
    %220 = arith.truncf %217 : vector<32x64xf32> to vector<32x64xbf16>
    %cst_80 = arith.constant dense<0.000000e+00> : vector<8x64xf32>
    %221 = tpu.matmul %219, %220, %cst_80 {dimension_numbers = #tpu.dot_dimension_numbers<[1], [0], [0], [1], [0, 0, 1, 1], [], []>} : vector<8x32xbf16>, vector<32x64xbf16>, vector<8x64xf32> -> vector<8x64xf32>
    %222 = vector.broadcast %218 : vector<1x64xf32> to vector<8x64xf32>
    %223 = arith.addf %221, %222 : vector<8x64xf32>
    %224 = vector.extract_strided_slice %223 {offsets = [0, 0], sizes = [8, 32], strides = [1, 1]} : vector<8x64xf32> to vector<8x32xf32>
    %225 = vector.extract_strided_slice %223 {offsets = [0, 32], sizes = [8, 32], strides = [1, 1]} : vector<8x64xf32> to vector<8x32xf32>
    %c0_81 = arith.constant 0 : index
    %c0_82 = arith.constant 0 : index
    %c0_83 = arith.constant 0 : index
    %226 = vector.load %arg4[%c0_81, %c0_82, %c0_83] : memref<1x1x8xf32, #tpu.memory_space<vmem>>, vector<1x1x8xf32>
    %227 = vector.shape_cast %226 : vector<1x1x8xf32> to vector<1x8xf32>
    %c0_84 = arith.constant 0 : index
    %c0_85 = arith.constant 0 : index
    %228 = vector.load %arg22[%c0_84, %c0_85] : memref<32x32xf32, #tpu.memory_space<vmem>>, vector<32x32xf32>
    %c0_86 = arith.constant 0 : index
    %c0_87 = arith.constant 0 : index
    %229 = vector.load %arg23[%c0_86, %c0_87] : memref<1x32xf32, #tpu.memory_space<vmem>>, vector<1x32xf32>
    %cst_88 = arith.constant 5.000000e-01 : f32
    %230 = vector.broadcast %cst_88 : f32 to vector<1x8xf32>
    %231 = arith.cmpf ogt, %227, %230 : vector<1x8xf32>
    %232 = vector.broadcast %229 : vector<1x32xf32> to vector<8x32xf32>
    %233 = arith.addf %169, %232 : vector<8x32xf32>
    %234 = vector.extract_strided_slice %214 {offsets = [0, 0], sizes = [8, 8], strides = [1, 1]} : vector<8x32xf32> to vector<8x8xf32>
    %235 = arith.truncf %234 : vector<8x8xf32> to vector<8x8xbf16>
    %236 = vector.extract_strided_slice %224 {offsets = [0, 0], sizes = [8, 8], strides = [1, 1]} : vector<8x32xf32> to vector<8x8xf32>
    %237 = arith.truncf %236 : vector<8x8xf32> to vector<8x8xbf16>
    %238 = vector.extract_strided_slice %225 {offsets = [0, 0], sizes = [8, 8], strides = [1, 1]} : vector<8x32xf32> to vector<8x8xf32>
    %239 = arith.truncf %238 : vector<8x8xf32> to vector<8x8xbf16>
    %cst_89 = arith.constant dense<0.000000e+00> : vector<8x8xf32>
    %240 = tpu.matmul %235, %237, %cst_89 {dimension_numbers = #tpu.dot_dimension_numbers<[1], [1], [0], [0], [0, 0, 1, 0], [], []>} : vector<8x8xbf16>, vector<8x8xbf16>, vector<8x8xf32> -> vector<8x8xf32>
    %cst_90 = arith.constant -1.000000e+30 : f32
    %241 = vector.shape_cast %231 : vector<1x8xi1> to vector<1x8xi1>
    %242 = vector.broadcast %241 : vector<1x8xi1> to vector<8x8xi1>
    %243 = vector.broadcast %cst_90 : f32 to vector<8x8xf32>
    %244 = arith.select %242, %240, %243 : vector<8x8xi1>, vector<8x8xf32>
    %cst_91 = arith.constant dense<0xFF800000> : vector<8xf32>
    %245 = vector.multi_reduction <maximumf>, %244, %cst_91 [1] : vector<8x8xf32> to vector<8xf32>
    %246 = vector.shape_cast %245 : vector<8xf32> to vector<8x1xf32>
    %247 = vector.broadcast %246 : vector<8x1xf32> to vector<8x8xf32>
    %248 = arith.subf %244, %247 : vector<8x8xf32>
    %249 = math.exp %248 : vector<8x8xf32>
    %cst_92 = arith.constant dense<0.000000e+00> : vector<8xf32>
    %250 = vector.multi_reduction <add>, %249, %cst_92 [1] : vector<8x8xf32> to vector<8xf32>
    %251 = vector.shape_cast %250 : vector<8xf32> to vector<8x1xf32>
    %252 = tpu.reciprocal %251 {approx = true} : vector<8x1xf32> -> vector<8x1xf32>
    %253 = vector.broadcast %252 : vector<8x1xf32> to vector<8x8xf32>
    %254 = arith.mulf %249, %253 : vector<8x8xf32>
    %255 = arith.truncf %254 : vector<8x8xf32> to vector<8x8xbf16>
    %cst_93 = arith.constant dense<0.000000e+00> : vector<8x8xf32>
    %256 = tpu.matmul %255, %239, %cst_93 {dimension_numbers = #tpu.dot_dimension_numbers<[1], [0], [0], [1], [0, 0, 1, 1], [], []>} : vector<8x8xbf16>, vector<8x8xbf16>, vector<8x8xf32> -> vector<8x8xf32>
    %257 = arith.truncf %256 : vector<8x8xf32> to vector<8x8xbf16>
    %258 = vector.extract_strided_slice %228 {offsets = [0, 0], sizes = [8, 32], strides = [1, 1]} : vector<32x32xf32> to vector<8x32xf32>
    %259 = arith.truncf %258 : vector<8x32xf32> to vector<8x32xbf16>
    %cst_94 = arith.constant dense<0.000000e+00> : vector<8x32xf32>
    %260 = tpu.matmul %257, %259, %cst_94 {dimension_numbers = #tpu.dot_dimension_numbers<[1], [0], [0], [1], [0, 0, 1, 1], [], []>} : vector<8x8xbf16>, vector<8x32xbf16>, vector<8x32xf32> -> vector<8x32xf32>
    %261 = arith.addf %233, %260 : vector<8x32xf32>
    %262 = vector.extract_strided_slice %214 {offsets = [0, 8], sizes = [8, 8], strides = [1, 1]} : vector<8x32xf32> to vector<8x8xf32>
    %263 = arith.truncf %262 : vector<8x8xf32> to vector<8x8xbf16>
    %264 = vector.extract_strided_slice %224 {offsets = [0, 8], sizes = [8, 8], strides = [1, 1]} : vector<8x32xf32> to vector<8x8xf32>
    %265 = arith.truncf %264 : vector<8x8xf32> to vector<8x8xbf16>
    %266 = vector.extract_strided_slice %225 {offsets = [0, 8], sizes = [8, 8], strides = [1, 1]} : vector<8x32xf32> to vector<8x8xf32>
    %267 = arith.truncf %266 : vector<8x8xf32> to vector<8x8xbf16>
    %cst_95 = arith.constant dense<0.000000e+00> : vector<8x8xf32>
    %268 = tpu.matmul %263, %265, %cst_95 {dimension_numbers = #tpu.dot_dimension_numbers<[1], [1], [0], [0], [0, 0, 1, 0], [], []>} : vector<8x8xbf16>, vector<8x8xbf16>, vector<8x8xf32> -> vector<8x8xf32>
    %cst_96 = arith.constant -1.000000e+30 : f32
    %269 = vector.shape_cast %231 : vector<1x8xi1> to vector<1x8xi1>
    %270 = vector.broadcast %269 : vector<1x8xi1> to vector<8x8xi1>
    %271 = vector.broadcast %cst_96 : f32 to vector<8x8xf32>
    %272 = arith.select %270, %268, %271 : vector<8x8xi1>, vector<8x8xf32>
    %cst_97 = arith.constant dense<0xFF800000> : vector<8xf32>
    %273 = vector.multi_reduction <maximumf>, %272, %cst_97 [1] : vector<8x8xf32> to vector<8xf32>
    %274 = vector.shape_cast %273 : vector<8xf32> to vector<8x1xf32>
    %275 = vector.broadcast %274 : vector<8x1xf32> to vector<8x8xf32>
    %276 = arith.subf %272, %275 : vector<8x8xf32>
    %277 = math.exp %276 : vector<8x8xf32>
    %cst_98 = arith.constant dense<0.000000e+00> : vector<8xf32>
    %278 = vector.multi_reduction <add>, %277, %cst_98 [1] : vector<8x8xf32> to vector<8xf32>
    %279 = vector.shape_cast %278 : vector<8xf32> to vector<8x1xf32>
    %280 = tpu.reciprocal %279 {approx = true} : vector<8x1xf32> -> vector<8x1xf32>
    %281 = vector.broadcast %280 : vector<8x1xf32> to vector<8x8xf32>
    %282 = arith.mulf %277, %281 : vector<8x8xf32>
    %283 = arith.truncf %282 : vector<8x8xf32> to vector<8x8xbf16>
    %cst_99 = arith.constant dense<0.000000e+00> : vector<8x8xf32>
    %284 = tpu.matmul %283, %267, %cst_99 {dimension_numbers = #tpu.dot_dimension_numbers<[1], [0], [0], [1], [0, 0, 1, 1], [], []>} : vector<8x8xbf16>, vector<8x8xbf16>, vector<8x8xf32> -> vector<8x8xf32>
    %285 = arith.truncf %284 : vector<8x8xf32> to vector<8x8xbf16>
    %286 = vector.extract_strided_slice %228 {offsets = [8, 0], sizes = [8, 32], strides = [1, 1]} : vector<32x32xf32> to vector<8x32xf32>
    %287 = arith.truncf %286 : vector<8x32xf32> to vector<8x32xbf16>
    %cst_100 = arith.constant dense<0.000000e+00> : vector<8x32xf32>
    %288 = tpu.matmul %285, %287, %cst_100 {dimension_numbers = #tpu.dot_dimension_numbers<[1], [0], [0], [1], [0, 0, 1, 1], [], []>} : vector<8x8xbf16>, vector<8x32xbf16>, vector<8x32xf32> -> vector<8x32xf32>
    %289 = arith.addf %261, %288 : vector<8x32xf32>
    %290 = vector.extract_strided_slice %214 {offsets = [0, 16], sizes = [8, 8], strides = [1, 1]} : vector<8x32xf32> to vector<8x8xf32>
    %291 = arith.truncf %290 : vector<8x8xf32> to vector<8x8xbf16>
    %292 = vector.extract_strided_slice %224 {offsets = [0, 16], sizes = [8, 8], strides = [1, 1]} : vector<8x32xf32> to vector<8x8xf32>
    %293 = arith.truncf %292 : vector<8x8xf32> to vector<8x8xbf16>
    %294 = vector.extract_strided_slice %225 {offsets = [0, 16], sizes = [8, 8], strides = [1, 1]} : vector<8x32xf32> to vector<8x8xf32>
    %295 = arith.truncf %294 : vector<8x8xf32> to vector<8x8xbf16>
    %cst_101 = arith.constant dense<0.000000e+00> : vector<8x8xf32>
    %296 = tpu.matmul %291, %293, %cst_101 {dimension_numbers = #tpu.dot_dimension_numbers<[1], [1], [0], [0], [0, 0, 1, 0], [], []>} : vector<8x8xbf16>, vector<8x8xbf16>, vector<8x8xf32> -> vector<8x8xf32>
    %cst_102 = arith.constant -1.000000e+30 : f32
    %297 = vector.shape_cast %231 : vector<1x8xi1> to vector<1x8xi1>
    %298 = vector.broadcast %297 : vector<1x8xi1> to vector<8x8xi1>
    %299 = vector.broadcast %cst_102 : f32 to vector<8x8xf32>
    %300 = arith.select %298, %296, %299 : vector<8x8xi1>, vector<8x8xf32>
    %cst_103 = arith.constant dense<0xFF800000> : vector<8xf32>
    %301 = vector.multi_reduction <maximumf>, %300, %cst_103 [1] : vector<8x8xf32> to vector<8xf32>
    %302 = vector.shape_cast %301 : vector<8xf32> to vector<8x1xf32>
    %303 = vector.broadcast %302 : vector<8x1xf32> to vector<8x8xf32>
    %304 = arith.subf %300, %303 : vector<8x8xf32>
    %305 = math.exp %304 : vector<8x8xf32>
    %cst_104 = arith.constant dense<0.000000e+00> : vector<8xf32>
    %306 = vector.multi_reduction <add>, %305, %cst_104 [1] : vector<8x8xf32> to vector<8xf32>
    %307 = vector.shape_cast %306 : vector<8xf32> to vector<8x1xf32>
    %308 = tpu.reciprocal %307 {approx = true} : vector<8x1xf32> -> vector<8x1xf32>
    %309 = vector.broadcast %308 : vector<8x1xf32> to vector<8x8xf32>
    %310 = arith.mulf %305, %309 : vector<8x8xf32>
    %311 = arith.truncf %310 : vector<8x8xf32> to vector<8x8xbf16>
    %cst_105 = arith.constant dense<0.000000e+00> : vector<8x8xf32>
    %312 = tpu.matmul %311, %295, %cst_105 {dimension_numbers = #tpu.dot_dimension_numbers<[1], [0], [0], [1], [0, 0, 1, 1], [], []>} : vector<8x8xbf16>, vector<8x8xbf16>, vector<8x8xf32> -> vector<8x8xf32>
    %313 = arith.truncf %312 : vector<8x8xf32> to vector<8x8xbf16>
    %314 = vector.extract_strided_slice %228 {offsets = [16, 0], sizes = [8, 32], strides = [1, 1]} : vector<32x32xf32> to vector<8x32xf32>
    %315 = arith.truncf %314 : vector<8x32xf32> to vector<8x32xbf16>
    %cst_106 = arith.constant dense<0.000000e+00> : vector<8x32xf32>
    %316 = tpu.matmul %313, %315, %cst_106 {dimension_numbers = #tpu.dot_dimension_numbers<[1], [0], [0], [1], [0, 0, 1, 1], [], []>} : vector<8x8xbf16>, vector<8x32xbf16>, vector<8x32xf32> -> vector<8x32xf32>
    %317 = arith.addf %289, %316 : vector<8x32xf32>
    %318 = vector.extract_strided_slice %214 {offsets = [0, 24], sizes = [8, 8], strides = [1, 1]} : vector<8x32xf32> to vector<8x8xf32>
    %319 = arith.truncf %318 : vector<8x8xf32> to vector<8x8xbf16>
    %320 = vector.extract_strided_slice %224 {offsets = [0, 24], sizes = [8, 8], strides = [1, 1]} : vector<8x32xf32> to vector<8x8xf32>
    %321 = arith.truncf %320 : vector<8x8xf32> to vector<8x8xbf16>
    %322 = vector.extract_strided_slice %225 {offsets = [0, 24], sizes = [8, 8], strides = [1, 1]} : vector<8x32xf32> to vector<8x8xf32>
    %323 = arith.truncf %322 : vector<8x8xf32> to vector<8x8xbf16>
    %cst_107 = arith.constant dense<0.000000e+00> : vector<8x8xf32>
    %324 = tpu.matmul %319, %321, %cst_107 {dimension_numbers = #tpu.dot_dimension_numbers<[1], [1], [0], [0], [0, 0, 1, 0], [], []>} : vector<8x8xbf16>, vector<8x8xbf16>, vector<8x8xf32> -> vector<8x8xf32>
    %cst_108 = arith.constant -1.000000e+30 : f32
    %325 = vector.shape_cast %231 : vector<1x8xi1> to vector<1x8xi1>
    %326 = vector.broadcast %325 : vector<1x8xi1> to vector<8x8xi1>
    %327 = vector.broadcast %cst_108 : f32 to vector<8x8xf32>
    %328 = arith.select %326, %324, %327 : vector<8x8xi1>, vector<8x8xf32>
    %cst_109 = arith.constant dense<0xFF800000> : vector<8xf32>
    %329 = vector.multi_reduction <maximumf>, %328, %cst_109 [1] : vector<8x8xf32> to vector<8xf32>
    %330 = vector.shape_cast %329 : vector<8xf32> to vector<8x1xf32>
    %331 = vector.broadcast %330 : vector<8x1xf32> to vector<8x8xf32>
    %332 = arith.subf %328, %331 : vector<8x8xf32>
    %333 = math.exp %332 : vector<8x8xf32>
    %cst_110 = arith.constant dense<0.000000e+00> : vector<8xf32>
    %334 = vector.multi_reduction <add>, %333, %cst_110 [1] : vector<8x8xf32> to vector<8xf32>
    %335 = vector.shape_cast %334 : vector<8xf32> to vector<8x1xf32>
    %336 = tpu.reciprocal %335 {approx = true} : vector<8x1xf32> -> vector<8x1xf32>
    %337 = vector.broadcast %336 : vector<8x1xf32> to vector<8x8xf32>
    %338 = arith.mulf %333, %337 : vector<8x8xf32>
    %339 = arith.truncf %338 : vector<8x8xf32> to vector<8x8xbf16>
    %cst_111 = arith.constant dense<0.000000e+00> : vector<8x8xf32>
    %340 = tpu.matmul %339, %323, %cst_111 {dimension_numbers = #tpu.dot_dimension_numbers<[1], [0], [0], [1], [0, 0, 1, 1], [], []>} : vector<8x8xbf16>, vector<8x8xbf16>, vector<8x8xf32> -> vector<8x8xf32>
    %341 = arith.truncf %340 : vector<8x8xf32> to vector<8x8xbf16>
    %342 = vector.extract_strided_slice %228 {offsets = [24, 0], sizes = [8, 32], strides = [1, 1]} : vector<32x32xf32> to vector<8x32xf32>
    %343 = arith.truncf %342 : vector<8x32xf32> to vector<8x32xbf16>
    %cst_112 = arith.constant dense<0.000000e+00> : vector<8x32xf32>
    %344 = tpu.matmul %341, %343, %cst_112 {dimension_numbers = #tpu.dot_dimension_numbers<[1], [0], [0], [1], [0, 0, 1, 1], [], []>} : vector<8x8xbf16>, vector<8x32xbf16>, vector<8x32xf32> -> vector<8x32xf32>
    %345 = arith.addf %317, %344 : vector<8x32xf32>
    %c0_113 = arith.constant 0 : index
    %c0_114 = arith.constant 0 : index
    %c0_115 = arith.constant 0 : index
    %346 = vector.load %arg7[%c0_113, %c0_114, %c0_115] : memref<1x1x32xf32, #tpu.memory_space<vmem>>, vector<1x1x32xf32>
    %347 = vector.shape_cast %346 : vector<1x1x32xf32> to vector<1x32xf32>
    %c0_116 = arith.constant 0 : index
    %c0_117 = arith.constant 0 : index
    %348 = vector.load %arg12[%c0_116, %c0_117] : memref<32x64xf32, #tpu.memory_space<vmem>>, vector<32x64xf32>
    %c0_118 = arith.constant 0 : index
    %c0_119 = arith.constant 0 : index
    %349 = vector.load %arg13[%c0_118, %c0_119] : memref<1x64xf32, #tpu.memory_space<vmem>>, vector<1x64xf32>
    %350 = arith.negf %347 : vector<1x32xf32>
    %351 = math.exp %350 : vector<1x32xf32>
    %cst_120 = arith.constant 1.000000e+00 : f32
    %352 = vector.broadcast %cst_120 : f32 to vector<1x32xf32>
    %353 = arith.addf %352, %351 : vector<1x32xf32>
    %354 = arith.divf %352, %353 : vector<1x32xf32>
    %355 = arith.mulf %347, %354 : vector<1x32xf32>
    %cst_121 = arith.constant dense<0.000000e+00> : vector<1x64xf32>
    %356 = tpu.matmul %355, %348, %cst_121 {dimension_numbers = #tpu.dot_dimension_numbers<[1], [0], [0], [1], [0, 0, 1, 1], [], []>} : vector<1x32xf32>, vector<32x64xf32>, vector<1x64xf32> -> vector<1x64xf32>
    %357 = arith.addf %356, %349 : vector<1x64xf32>
    %358 = vector.extract_strided_slice %357 {offsets = [0, 0], sizes = [1, 32], strides = [1, 1]} : vector<1x64xf32> to vector<1x32xf32>
    %359 = vector.extract_strided_slice %357 {offsets = [0, 32], sizes = [1, 32], strides = [1, 1]} : vector<1x64xf32> to vector<1x32xf32>
    %cst_122 = arith.constant dense<0.000000e+00> : vector<8xf32>
    %360 = vector.multi_reduction <add>, %345, %cst_122 [1] : vector<8x32xf32> to vector<8xf32>
    %361 = vector.shape_cast %360 : vector<8xf32> to vector<8x1xf32>
    %cst_123 = arith.constant 3.200000e+01 : f32
    %362 = vector.broadcast %cst_123 : f32 to vector<8x1xf32>
    %363 = arith.divf %361, %362 : vector<8x1xf32>
    %364 = vector.broadcast %363 : vector<8x1xf32> to vector<8x32xf32>
    %365 = arith.subf %345, %364 : vector<8x32xf32>
    %366 = arith.mulf %365, %365 : vector<8x32xf32>
    %cst_124 = arith.constant dense<0.000000e+00> : vector<8xf32>
    %367 = vector.multi_reduction <add>, %366, %cst_124 [1] : vector<8x32xf32> to vector<8xf32>
    %368 = vector.shape_cast %367 : vector<8xf32> to vector<8x1xf32>
    %cst_125 = arith.constant 3.200000e+01 : f32
    %369 = vector.broadcast %cst_125 : f32 to vector<8x1xf32>
    %370 = arith.divf %368, %369 : vector<8x1xf32>
    %371 = vector.broadcast %363 : vector<8x1xf32> to vector<8x32xf32>
    %372 = arith.subf %345, %371 : vector<8x32xf32>
    %cst_126 = arith.constant 9.99999974E-6 : f32
    %373 = vector.broadcast %cst_126 : f32 to vector<8x1xf32>
    %374 = arith.addf %370, %373 : vector<8x1xf32>
    %375 = math.rsqrt %374 : vector<8x1xf32>
    %376 = vector.broadcast %375 : vector<8x1xf32> to vector<8x32xf32>
    %377 = arith.mulf %372, %376 : vector<8x32xf32>
    %cst_127 = arith.constant 1.000000e+00 : f32
    %378 = vector.broadcast %cst_127 : f32 to vector<1x32xf32>
    %379 = arith.addf %378, %358 : vector<1x32xf32>
    %380 = vector.broadcast %379 : vector<1x32xf32> to vector<8x32xf32>
    %381 = arith.mulf %377, %380 : vector<8x32xf32>
    %382 = vector.broadcast %359 : vector<1x32xf32> to vector<8x32xf32>
    %383 = arith.addf %381, %382 : vector<8x32xf32>
    %c0_128 = arith.constant 0 : index
    %c0_129 = arith.constant 0 : index
    %384 = vector.load %arg24[%c0_128, %c0_129] : memref<32x64xf32, #tpu.memory_space<vmem>>, vector<32x64xf32>
    %c0_130 = arith.constant 0 : index
    %c0_131 = arith.constant 0 : index
    %385 = vector.load %arg25[%c0_130, %c0_131] : memref<1x64xf32, #tpu.memory_space<vmem>>, vector<1x64xf32>
    %386 = arith.truncf %383 : vector<8x32xf32> to vector<8x32xbf16>
    %387 = arith.truncf %384 : vector<32x64xf32> to vector<32x64xbf16>
    %cst_132 = arith.constant dense<0.000000e+00> : vector<8x64xf32>
    %388 = tpu.matmul %386, %387, %cst_132 {dimension_numbers = #tpu.dot_dimension_numbers<[1], [0], [0], [1], [0, 0, 1, 1], [], []>} : vector<8x32xbf16>, vector<32x64xbf16>, vector<8x64xf32> -> vector<8x64xf32>
    %389 = vector.broadcast %385 : vector<1x64xf32> to vector<8x64xf32>
    %390 = arith.addf %388, %389 : vector<8x64xf32>
    %cst_133 = arith.constant 5.000000e-01 : f32
    %391 = vector.broadcast %cst_133 : f32 to vector<8x64xf32>
    %392 = arith.mulf %391, %390 : vector<8x64xf32>
    %cst_134 = arith.constant 4.471500e-02 : f32
    %393 = vector.broadcast %cst_134 : f32 to vector<8x64xf32>
    %394 = arith.mulf %393, %390 : vector<8x64xf32>
    %395 = arith.mulf %394, %390 : vector<8x64xf32>
    %396 = arith.mulf %395, %390 : vector<8x64xf32>
    %397 = arith.addf %390, %396 : vector<8x64xf32>
    %cst_135 = arith.constant 0.797884583 : f32
    %398 = vector.broadcast %cst_135 : f32 to vector<8x64xf32>
    %399 = arith.mulf %398, %397 : vector<8x64xf32>
    %400 = math.tanh %399 : vector<8x64xf32>
    %cst_136 = arith.constant 1.000000e+00 : f32
    %401 = vector.broadcast %cst_136 : f32 to vector<8x64xf32>
    %402 = arith.addf %401, %400 : vector<8x64xf32>
    %403 = arith.mulf %392, %402 : vector<8x64xf32>
    %c0_137 = arith.constant 0 : index
    %c0_138 = arith.constant 0 : index
    %404 = vector.load %arg26[%c0_137, %c0_138] : memref<64x32xf32, #tpu.memory_space<vmem>>, vector<64x32xf32>
    %c0_139 = arith.constant 0 : index
    %c0_140 = arith.constant 0 : index
    %405 = vector.load %arg27[%c0_139, %c0_140] : memref<1x32xf32, #tpu.memory_space<vmem>>, vector<1x32xf32>
    %406 = arith.truncf %403 : vector<8x64xf32> to vector<8x64xbf16>
    %407 = arith.truncf %404 : vector<64x32xf32> to vector<64x32xbf16>
    %cst_141 = arith.constant dense<0.000000e+00> : vector<8x32xf32>
    %408 = tpu.matmul %406, %407, %cst_141 {dimension_numbers = #tpu.dot_dimension_numbers<[1], [0], [0], [1], [0, 0, 1, 1], [], []>} : vector<8x64xbf16>, vector<64x32xbf16>, vector<8x32xf32> -> vector<8x32xf32>
    %409 = vector.broadcast %405 : vector<1x32xf32> to vector<8x32xf32>
    %410 = arith.addf %408, %409 : vector<8x32xf32>
    %411 = arith.addf %345, %410 : vector<8x32xf32>
    %c0_142 = arith.constant 0 : index
    %c0_143 = arith.constant 0 : index
    %c0_144 = arith.constant 0 : index
    %412 = vector.load %arg28[%c0_142, %c0_143, %c0_144] : memref<1x8x32xf32, #tpu.memory_space<vmem>>, vector<1x8x32xf32>
    %413 = vector.shape_cast %412 : vector<1x8x32xf32> to vector<8x32xf32>
    %414 = vector.shape_cast %411 : vector<8x32xf32> to vector<1x8x32xf32>
    tpu.vector_store %arg28[%c0_142, %c0_143, %c0_144], %414 {strides = array<i32>} : memref<1x8x32xf32, #tpu.memory_space<vmem>>, vector<1x8x32xf32>,
    return
  }
  func.func @transform_0(%arg0: i32) -> (i32, i32, i32) {
    %c0_i32 = arith.constant 0 : i32
    %c0_i32_0 = arith.constant 0 : i32
    %c0_i32_1 = arith.constant 0 : i32
    return %arg0, %c0_i32, %c0_i32_0 : i32, i32, i32
  }
  func.func @transform_1(%arg0: i32) -> (i32, i32, i32) {
    %c0_i32 = arith.constant 0 : i32
    %c0_i32_0 = arith.constant 0 : i32
    %c0_i32_1 = arith.constant 0 : i32
    return %arg0, %c0_i32, %c0_i32_0 : i32, i32, i32
  }
  func.func @transform_2(%arg0: i32) -> (i32, i32, i32) {
    %c0_i32 = arith.constant 0 : i32
    %c0_i32_0 = arith.constant 0 : i32
    %c0_i32_1 = arith.constant 0 : i32
    return %arg0, %c0_i32, %c0_i32_0 : i32, i32, i32
  }
  func.func @transform_3(%arg0: i32) -> (i32, i32, i32) {
    %c0_i32 = arith.constant 0 : i32
    %c0_i32_0 = arith.constant 0 : i32
    %c0_i32_1 = arith.constant 0 : i32
    return %arg0, %c0_i32, %c0_i32_0 : i32, i32, i32
  }
  func.func @transform_4(%arg0: i32) -> (i32, i32, i32) {
    %c0_i32 = arith.constant 0 : i32
    %c0_i32_0 = arith.constant 0 : i32
    %c0_i32_1 = arith.constant 0 : i32
    return %arg0, %c0_i32, %c0_i32_0 : i32, i32, i32
  }
  func.func @transform_5(%arg0: i32) -> (i32, i32, i32) {
    %c0_i32 = arith.constant 0 : i32
    %c0_i32_0 = arith.constant 0 : i32
    %c0_i32_1 = arith.constant 0 : i32
    return %arg0, %c0_i32, %c0_i32_0 : i32, i32, i32
  }
  func.func @transform_6(%arg0: i32) -> (i32, i32, i32) {
    %c0_i32 = arith.constant 0 : i32
    %c0_i32_0 = arith.constant 0 : i32
    %c0_i32_1 = arith.constant 0 : i32
    return %arg0, %c0_i32, %c0_i32_0 : i32, i32, i32
  }
  func.func @transform_7(%arg0: i32) -> (i32, i32) {
    %c0_i32 = arith.constant 0 : i32
    %c0_i32_0 = arith.constant 0 : i32
    %c0_i32_1 = arith.constant 0 : i32
    return %c0_i32, %c0_i32_0 : i32, i32
  }
  func.func @transform_8(%arg0: i32) -> (i32, i32) {
    %c0_i32 = arith.constant 0 : i32
    %c0_i32_0 = arith.constant 0 : i32
    %c0_i32_1 = arith.constant 0 : i32
    return %c0_i32, %c0_i32_0 : i32, i32
  }
  func.func @transform_9(%arg0: i32) -> (i32, i32) {
    %c0_i32 = arith.constant 0 : i32
    %c0_i32_0 = arith.constant 0 : i32
    %c0_i32_1 = arith.constant 0 : i32
    return %c0_i32, %c0_i32_0 : i32, i32
  }
  func.func @transform_10(%arg0: i32) -> (i32, i32) {
    %c0_i32 = arith.constant 0 : i32
    %c0_i32_0 = arith.constant 0 : i32
    %c0_i32_1 = arith.constant 0 : i32
    return %c0_i32, %c0_i32_0 : i32, i32
  }
  func.func @transform_11(%arg0: i32) -> (i32, i32) {
    %c0_i32 = arith.constant 0 : i32
    %c0_i32_0 = arith.constant 0 : i32
    %c0_i32_1 = arith.constant 0 : i32
    return %c0_i32, %c0_i32_0 : i32, i32
  }
  func.func @transform_12(%arg0: i32) -> (i32, i32) {
    %c0_i32 = arith.constant 0 : i32
    %c0_i32_0 = arith.constant 0 : i32
    %c0_i32_1 = arith.constant 0 : i32
    return %c0_i32, %c0_i32_0 : i32, i32
  }
  func.func @transform_13(%arg0: i32) -> (i32, i32) {
    %c0_i32 = arith.constant 0 : i32
    %c0_i32_0 = arith.constant 0 : i32
    %c0_i32_1 = arith.constant 0 : i32
    return %c0_i32, %c0_i32_0 : i32, i32
  }
  func.func @transform_14(%arg0: i32) -> (i32, i32) {
    %c0_i32 = arith.constant 0 : i32
    %c0_i32_0 = arith.constant 0 : i32
    %c0_i32_1 = arith.constant 0 : i32
    return %c0_i32, %c0_i32_0 : i32, i32
  }
  func.func @transform_15(%arg0: i32) -> (i32, i32) {
    %c0_i32 = arith.constant 0 : i32
    %c0_i32_0 = arith.constant 0 : i32
    %c0_i32_1 = arith.constant 0 : i32
    return %c0_i32, %c0_i32_0 : i32, i32
  }
  func.func @transform_16(%arg0: i32) -> (i32, i32) {
    %c0_i32 = arith.constant 0 : i32
    %c0_i32_0 = arith.constant 0 : i32
    %c0_i32_1 = arith.constant 0 : i32
    return %c0_i32, %c0_i32_0 : i32, i32
  }
  func.func @transform_17(%arg0: i32) -> (i32, i32) {
    %c0_i32 = arith.constant 0 : i32
    %c0_i32_0 = arith.constant 0 : i32
    %c0_i32_1 = arith.constant 0 : i32
    return %c0_i32, %c0_i32_0 : i32, i32
  }
  func.func @transform_18(%arg0: i32) -> (i32, i32) {
    %c0_i32 = arith.constant 0 : i32
    %c0_i32_0 = arith.constant 0 : i32
    %c0_i32_1 = arith.constant 0 : i32
    return %c0_i32, %c0_i32_0 : i32, i32
  }
  func.func @transform_19(%arg0: i32) -> (i32, i32) {
    %c0_i32 = arith.constant 0 : i32
    %c0_i32_0 = arith.constant 0 : i32
    %c0_i32_1 = arith.constant 0 : i32
    return %c0_i32, %c0_i32_0 : i32, i32
  }
  func.func @transform_20(%arg0: i32) -> (i32, i32) {
    %c0_i32 = arith.constant 0 : i32
    %c0_i32_0 = arith.constant 0 : i32
    %c0_i32_1 = arith.constant 0 : i32
    return %c0_i32, %c0_i32_0 : i32, i32
  }
  func.func @transform_21(%arg0: i32) -> (i32, i32) {
    %c0_i32 = arith.constant 0 : i32
    %c0_i32_0 = arith.constant 0 : i32
    %c0_i32_1 = arith.constant 0 : i32
    return %c0_i32, %c0_i32_0 : i32, i32
  }
  func.func @transform_22(%arg0: i32) -> (i32, i32) {
    %c0_i32 = arith.constant 0 : i32
    %c0_i32_0 = arith.constant 0 : i32
    %c0_i32_1 = arith.constant 0 : i32
    return %c0_i32, %c0_i32_0 : i32, i32
  }
  func.func @transform_23(%arg0: i32) -> (i32, i32) {
    %c0_i32 = arith.constant 0 : i32
    %c0_i32_0 = arith.constant 0 : i32
    %c0_i32_1 = arith.constant 0 : i32
    return %c0_i32, %c0_i32_0 : i32, i32
  }
  func.func @transform_24(%arg0: i32) -> (i32, i32) {
    %c0_i32 = arith.constant 0 : i32
    %c0_i32_0 = arith.constant 0 : i32
    %c0_i32_1 = arith.constant 0 : i32
    return %c0_i32, %c0_i32_0 : i32, i32
  }
  func.func @transform_25(%arg0: i32) -> (i32, i32) {
    %c0_i32 = arith.constant 0 : i32
    %c0_i32_0 = arith.constant 0 : i32
    %c0_i32_1 = arith.constant 0 : i32
    return %c0_i32, %c0_i32_0 : i32, i32
  }
  func.func @transform_26(%arg0: i32) -> (i32, i32) {
    %c0_i32 = arith.constant 0 : i32
    %c0_i32_0 = arith.constant 0 : i32
    %c0_i32_1 = arith.constant 0 : i32
    return %c0_i32, %c0_i32_0 : i32, i32
  }
  func.func @transform_27(%arg0: i32) -> (i32, i32, i32) {
    %c0_i32 = arith.constant 0 : i32
    %c0_i32_0 = arith.constant 0 : i32
    %c0_i32_1 = arith.constant 0 : i32
    return %arg0, %c0_i32, %c0_i32_0 : i32, i32, i32
  }
}

</mosaic_0001>

<llo_original>
// kernel: decoder_layer.1
$region0: #{decoder_layer.1}
  #allocation0 [shape = 'u32[]', space=smem, size = 0x4, offset = 0x4, fixed_abs, tag = 'smem constant byte address 0x4 - core index']
  #allocation1 [shape = 'u32[144,128]{1,0:T(1,128)}', space=vmem, size = 0x12000, scoped, tag = 'internal scratch']
  %s0 = inlined_call_operand.vmem [shape: f32[2,8,32], index: 0, kind: input, shape index: {}]
  %s1 = inlined_call_operand.vmem [shape: f32[2,8,32], index: 1, kind: input, shape index: {}]
  %s2 = inlined_call_operand.vmem [shape: f32[2,1,8], index: 2, kind: input, shape index: {}]
  %s3 = inlined_call_operand.vmem [shape: f32[2,1,8], index: 3, kind: input, shape index: {}]
  %s4 = inlined_call_operand.vmem [shape: f32[2,1,32], index: 4, kind: input, shape index: {}]
  %s5 = inlined_call_operand.vmem [shape: f32[2,1,32], index: 5, kind: input, shape index: {}]
  %s6 = inlined_call_operand.vmem [shape: f32[2,1,32], index: 6, kind: input, shape index: {}]
  %s7 = inlined_call_operand.vmem [shape: f32[32,64], index: 7, kind: input, shape index: {}]
  %s8 = inlined_call_operand.vmem [shape: f32[1,64], index: 8, kind: input, shape index: {}]
  %s9 = inlined_call_operand.vmem [shape: f32[32,64], index: 9, kind: input, shape index: {}]
  %s10 = inlined_call_operand.vmem [shape: f32[1,64], index: 10, kind: input, shape index: {}]
  %s11 = inlined_call_operand.vmem [shape: f32[32,64], index: 11, kind: input, shape index: {}]
  %s12 = inlined_call_operand.vmem [shape: f32[1,64], index: 12, kind: input, shape index: {}]
  %s13 = inlined_call_operand.vmem [shape: f32[32,96], index: 13, kind: input, shape index: {}]
  %s14 = inlined_call_operand.vmem [shape: f32[1,96], index: 14, kind: input, shape index: {}]
  %s15 = inlined_call_operand.vmem [shape: f32[32,32], index: 15, kind: input, shape index: {}]
  %s16 = inlined_call_operand.vmem [shape: f32[1,32], index: 16, kind: input, shape index: {}]
  %s17 = inlined_call_operand.vmem [shape: f32[32,32], index: 17, kind: input, shape index: {}]
  %s18 = inlined_call_operand.vmem [shape: f32[1,32], index: 18, kind: input, shape index: {}]
  %s19 = inlined_call_operand.vmem [shape: f32[32,64], index: 19, kind: input, shape index: {}]
  %s20 = inlined_call_operand.vmem [shape: f32[1,64], index: 20, kind: input, shape index: {}]
  %s21 = inlined_call_operand.vmem [shape: f32[32,32], index: 21, kind: input, shape index: {}]
  %s22 = inlined_call_operand.vmem [shape: f32[1,32], index: 22, kind: input, shape index: {}]
  %s23 = inlined_call_operand.vmem [shape: f32[32,64], index: 23, kind: input, shape index: {}]
  %s24 = inlined_call_operand.vmem [shape: f32[1,64], index: 24, kind: input, shape index: {}]
  %s25 = inlined_call_operand.vmem [shape: f32[64,32], index: 25, kind: input, shape index: {}]
  %s26 = inlined_call_operand.vmem [shape: f32[1,32], index: 26, kind: input, shape index: {}]
  %s27 = inlined_call_operand.hbm [shape: f32[2,8,32], index: 27, kind: output, shape index: {}]
  %s28 = sld [smem:[#allocation0]]
  $region141: #{decoder_layer.1} parent=0
    _
  %s30 = ssub.s32 1, %s28
  %s31 = scalar_select 0, %s30, %s28
  $region1: #{decoder_layer.1} parent=0
    #allocation2 [shape = 'u8[8192]{0}', space=vmem, size = 0x2000, scoped, tag = 'output window, operand 0']
    #allocation3 [shape = 's32[2]{0}', space=sflag, size = 0x8, scoped, tag = 'scoped memory for decoder_layer.1']
    %32 = vsyncpa [#allocation3], 0
    %s33 = scalar_lea.sflag [#allocation3], 1
    %34 = vsyncpa %s33, 0
    loop: start=0, step=1, limit=4
    $region2: #{decoder_layer.1} parent=1 // loop_pre_header
      _
    $region3: #{decoder_layer.1} parent=1 // loop_header
      %s36 = sphi 0, %s40
      %p37 = scmp.ge.s32.totalorder %s36, 4
      %s46 = sphi 0, %s48
      %s49 = sphi 0, %s46
      %s50 = sphi 0, %s49
      %s66 = sphi 0, %s50
      %s72 = sphi 0, %s74
      %s75 = sphi 0, %s72
      %s76 = sphi 0, %s75
      %s92 = sphi 0, %s76
      %s98 = sphi 0, %s100
      %s101 = sphi 0, %s98
      %s102 = sphi 0, %s101
      %s118 = sphi 0, %s102
      %s124 = sphi 0, %s126
      %s127 = sphi 0, %s124
      %s128 = sphi 0, %s127
      %s144 = sphi 0, %s128
      %s150 = sphi 0, %s152
      %s153 = sphi 0, %s150
      %s154 = sphi 0, %s153
      %s170 = sphi 0, %s154
      %s176 = sphi 0, %s178
      %s179 = sphi 0, %s176
      %s180 = sphi 0, %s179
      %s196 = sphi 0, %s180
      %s202 = sphi 0, %s204
      %s205 = sphi 0, %s202
      %s206 = sphi 0, %s205
      %s222 = sphi 0, %s206
      %s226 = sphi 0, %s226
      %s228 = sphi 0, %s226
      %s229 = sphi 0, %s228
      %s243 = sphi 0, %s229
      %s247 = sphi 0, %s247
      %s249 = sphi 0, %s247
      %s250 = sphi 0, %s249
      %s264 = sphi 0, %s250
      %s268 = sphi 0, %s268
      %s270 = sphi 0, %s268
      %s271 = sphi 0, %s270
      %s285 = sphi 0, %s271
      %s289 = sphi 0, %s289
      %s291 = sphi 0, %s289
      %s292 = sphi 0, %s291
      %s306 = sphi 0, %s292
      %s310 = sphi 0, %s310
      %s312 = sphi 0, %s310
      %s313 = sphi 0, %s312
      %s327 = sphi 0, %s313
      %s331 = sphi 0, %s331
      %s333 = sphi 0, %s331
      %s334 = sphi 0, %s333
      %s348 = sphi 0, %s334
      %s352 = sphi 0, %s352
      %s354 = sphi 0, %s352
      %s355 = sphi 0, %s354
      %s369 = sphi 0, %s355
      %s373 = sphi 0, %s373
      %s375 = sphi 0, %s373
      %s376 = sphi 0, %s375
      %s390 = sphi 0, %s376
      %s394 = sphi 0, %s394
      %s396 = sphi 0, %s394
      %s397 = sphi 0, %s396
      %s411 = sphi 0, %s397
      %s415 = sphi 0, %s415
      %s417 = sphi 0, %s415
      %s418 = sphi 0, %s417
      %s432 = sphi 0, %s418
      %s436 = sphi 0, %s436
      %s438 = sphi 0, %s436
      %s439 = sphi 0, %s438
      %s453 = sphi 0, %s439
      %s457 = sphi 0, %s457
      %s459 = sphi 0, %s457
      %s460 = sphi 0, %s459
      %s474 = sphi 0, %s460
      %s478 = sphi 0, %s478
      %s480 = sphi 0, %s478
      %s481 = sphi 0, %s480
      %s495 = sphi 0, %s481
      %s499 = sphi 0, %s499
      %s501 = sphi 0, %s499
      %s502 = sphi 0, %s501
      %s516 = sphi 0, %s502
      %s520 = sphi 0, %s520
      %s522 = sphi 0, %s520
      %s523 = sphi 0, %s522
      %s537 = sphi 0, %s523
      %s541 = sphi 0, %s541
      %s543 = sphi 0, %s541
      %s544 = sphi 0, %s543
      %s558 = sphi 0, %s544
      %s562 = sphi 0, %s562
      %s564 = sphi 0, %s562
      %s565 = sphi 0, %s564
      %s579 = sphi 0, %s565
      %s583 = sphi 0, %s583
      %s585 = sphi 0, %s583
      %s586 = sphi 0, %s585
      %s600 = sphi 0, %s586
      %s604 = sphi 0, %s604
      %s606 = sphi 0, %s604
      %s607 = sphi 0, %s606
      %s621 = sphi 0, %s607
      %s625 = sphi 0, %s625
      %s627 = sphi 0, %s625
      %s628 = sphi 0, %s627
      %s642 = sphi 0, %s628
      %s648 = sphi 0, %s650
      %s651 = sphi 0, %s648
      %s652 = sphi 0, %s651
      %s668 = sphi 0, %s652
    $region4: #{decoder_layer.1} parent=1 // loop_header_branch
      %39 = sbr.rel (%p37) target = $region8
    $region5: #{decoder_layer.1} parent=1 // loop_body
      %s41 = ssub.s32 %s36, 1
      %s42 = ssub.s32 %s36, 2
      %s43 = sadd.s32 %s36, 1
      %s44 = ssub.s32 %s36, %s43
      %p45 = scmp.eq.s32.totalorder %s44, 0
      %s47 = sadd.s32 %s46, 1
      %s48 = scalar_select %p45, %s46, %s47
      %p51 = pneg %p45
      %p52 = scmp.eq.s32.totalorder %s36, 1
      %p53 = por %p51, %p52
      %p54 = scmp.ne.s32.totalorder %s46, %s49
      %p55 = scmp.eq.s32.totalorder %s36, 0
      %p56 = por %p54, %p55
      %p57 = scmp.ne.s32.totalorder %s46, %s49
      %p58 = scmp.eq.s32.totalorder %s41, 1
      %p59 = por %p57, %p58
      %p60 = scmp.ne.s32.totalorder %s49, %s50
      %p61 = scmp.eq.s32.totalorder %s41, 0
      %p62 = por %p60, %p61
      %p63 = scmp.ne.s32.totalorder %s49, %s50
      %p64 = scmp.eq.s32.totalorder %s42, 1
      %p65 = por %p63, %p64
      %p67 = scmp.ne.s32.totalorder %s50, %s66
      %p68 = scmp.eq.s32.totalorder %s42, 0
      %p69 = por %p67, %p68
      %s70 = ssub.s32 %s36, %s43
      %p71 = scmp.eq.s32.totalorder %s70, 0
      %s73 = sadd.s32 %s72, 1
      %s74 = scalar_select %p71, %s72, %s73
      %p77 = pneg %p71
      %p78 = scmp.eq.s32.totalorder %s36, 1
      %p79 = por %p77, %p78
      %p80 = scmp.ne.s32.totalorder %s72, %s75
      %p81 = scmp.eq.s32.totalorder %s36, 0
      %p82 = por %p80, %p81
      %p83 = scmp.ne.s32.totalorder %s72, %s75
      %p84 = scmp.eq.s32.totalorder %s41, 1
      %p85 = por %p83, %p84
      %p86 = scmp.ne.s32.totalorder %s75, %s76
      %p87 = scmp.eq.s32.totalorder %s41, 0
      %p88 = por %p86, %p87
      %p89 = scmp.ne.s32.totalorder %s75, %s76
      %p90 = scmp.eq.s32.totalorder %s42, 1
      %p91 = por %p89, %p90
      %p93 = scmp.ne.s32.totalorder %s76, %s92
      %p94 = scmp.eq.s32.totalorder %s42, 0
      %p95 = por %p93, %p94
      %s96 = ssub.s32 %s36, %s43
      %p97 = scmp.eq.s32.totalorder %s96, 0
      %s99 = sadd.s32 %s98, 1
      %s100 = scalar_select %p97, %s98, %s99
      %p103 = pneg %p97
      %p104 = scmp.eq.s32.totalorder %s36, 1
      %p105 = por %p103, %p104
      %p106 = scmp.ne.s32.totalorder %s98, %s101
      %p107 = scmp.eq.s32.totalorder %s36, 0
      %p108 = por %p106, %p107
      %p109 = scmp.ne.s32.totalorder %s98, %s101
      %p110 = scmp.eq.s32.totalorder %s41, 1
      %p111 = por %p109, %p110
      %p112 = scmp.ne.s32.totalorder %s101, %s102
      %p113 = scmp.eq.s32.totalorder %s41, 0
      %p114 = por %p112, %p113
      %p115 = scmp.ne.s32.totalorder %s101, %s102
      %p116 = scmp.eq.s32.totalorder %s42, 1
      %p117 = por %p115, %p116
      %p119 = scmp.ne.s32.totalorder %s102, %s118
      %p120 = scmp.eq.s32.totalorder %s42, 0
      %p121 = por %p119, %p120
      %s122 = ssub.s32 %s36, %s43
      %p123 = scmp.eq.s32.totalorder %s122, 0
      %s125 = sadd.s32 %s124, 1
      %s126 = scalar_select %p123, %s124, %s125
      %p129 = pneg %p123
      %p130 = scmp.eq.s32.totalorder %s36, 1
      %p131 = por %p129, %p130
      %p132 = scmp.ne.s32.totalorder %s124, %s127
      %p133 = scmp.eq.s32.totalorder %s36, 0
      %p134 = por %p132, %p133
      %p135 = scmp.ne.s32.totalorder %s124, %s127
      %p136 = scmp.eq.s32.totalorder %s41, 1
      %p137 = por %p135, %p136
      %p138 = scmp.ne.s32.totalorder %s127, %s128
      %p139 = scmp.eq.s32.totalorder %s41, 0
      %p140 = por %p138, %p139
      %p141 = scmp.ne.s32.totalorder %s127, %s128
      %p142 = scmp.eq.s32.totalorder %s42, 1
      %p143 = por %p141, %p142
      %p145 = scmp.ne.s32.totalorder %s128, %s144
      %p146 = scmp.eq.s32.totalorder %s42, 0
      %p147 = por %p145, %p146
      %s148 = ssub.s32 %s36, %s43
      %p149 = scmp.eq.s32.totalorder %s148, 0
      %s151 = sadd.s32 %s150, 1
      %s152 = scalar_select %p149, %s150, %s151
      %p155 = pneg %p149
      %p156 = scmp.eq.s32.totalorder %s36, 1
      %p157 = por %p155, %p156
      %p158 = scmp.ne.s32.totalorder %s150, %s153
      %p159 = scmp.eq.s32.totalorder %s36, 0
      %p160 = por %p158, %p159
      %p161 = scmp.ne.s32.totalorder %s150, %s153
      %p162 = scmp.eq.s32.totalorder %s41, 1
      %p163 = por %p161, %p162
      %p164 = scmp.ne.s32.totalorder %s153, %s154
      %p165 = scmp.eq.s32.totalorder %s41, 0
      %p166 = por %p164, %p165
      %p167 = scmp.ne.s32.totalorder %s153, %s154
      %p168 = scmp.eq.s32.totalorder %s42, 1
      %p169 = por %p167, %p168
      %p171 = scmp.ne.s32.totalorder %s154, %s170
      %p172 = scmp.eq.s32.totalorder %s42, 0
      %p173 = por %p171, %p172
      %s174 = ssub.s32 %s36, %s43
      %p175 = scmp.eq.s32.totalorder %s174, 0
      %s177 = sadd.s32 %s176, 1
      %s178 = scalar_select %p175, %s176, %s177
      %p181 = pneg %p175
      %p182 = scmp.eq.s32.totalorder %s36, 1
      %p183 = por %p181, %p182
      %p184 = scmp.ne.s32.totalorder %s176, %s179
      %p185 = scmp.eq.s32.totalorder %s36, 0
      %p186 = por %p184, %p185
      %p187 = scmp.ne.s32.totalorder %s176, %s179
      %p188 = scmp.eq.s32.totalorder %s41, 1
      %p189 = por %p187, %p188
      %p190 = scmp.ne.s32.totalorder %s179, %s180
      %p191 = scmp.eq.s32.totalorder %s41, 0
      %p192 = por %p190, %p191
      %p193 = scmp.ne.s32.totalorder %s179, %s180
      %p194 = scmp.eq.s32.totalorder %s42, 1
      %p195 = por %p193, %p194
      %p197 = scmp.ne.s32.totalorder %s180, %s196
      %p198 = scmp.eq.s32.totalorder %s42, 0
      %p199 = por %p197, %p198
      %s200 = ssub.s32 %s36, %s43
      %p201 = scmp.eq.s32.totalorder %s200, 0
      %s203 = sadd.s32 %s202, 1
      %s204 = scalar_select %p201, %s202, %s203
      %p207 = pneg %p201
      %p208 = scmp.eq.s32.totalorder %s36, 1
      %p209 = por %p207, %p208
      %p210 = scmp.ne.s32.totalorder %s202, %s205
      %p211 = scmp.eq.s32.totalorder %s36, 0
      %p212 = por %p210, %p211
      %p213 = scmp.ne.s32.totalorder %s202, %s205
      %p214 = scmp.eq.s32.totalorder %s41, 1
      %p215 = por %p213, %p214
      %p216 = scmp.ne.s32.totalorder %s205, %s206
      %p217 = scmp.eq.s32.totalorder %s41, 0
      %p218 = por %p216, %p217
      %p219 = scmp.ne.s32.totalorder %s205, %s206
      %p220 = scmp.eq.s32.totalorder %s42, 1
      %p221 = por %p219, %p220
      %p223 = scmp.ne.s32.totalorder %s206, %s222
      %p224 = scmp.eq.s32.totalorder %s42, 0
      %p225 = por %p223, %p224
      %s227 = sadd.s32 %s226, 1
      %p230 = scmp.eq.s32.totalorder %s36, 1
      %p231 = scmp.ne.s32.totalorder %s226, %s228
      %p232 = scmp.eq.s32.totalorder %s36, 0
      %p233 = por %p231, %p232
      %p234 = scmp.ne.s32.totalorder %s226, %s228
      %p235 = scmp.eq.s32.totalorder %s41, 1
      %p236 = por %p234, %p235
      %p237 = scmp.ne.s32.totalorder %s228, %s229
      %p238 = scmp.eq.s32.totalorder %s41, 0
      %p239 = por %p237, %p238
      %p240 = scmp.ne.s32.totalorder %s228, %s229
      %p241 = scmp.eq.s32.totalorder %s42, 1
      %p242 = por %p240, %p241
      %p244 = scmp.ne.s32.totalorder %s229, %s243
      %p245 = scmp.eq.s32.totalorder %s42, 0
      %p246 = por %p244, %p245
      %s248 = sadd.s32 %s247, 1
      %p251 = scmp.eq.s32.totalorder %s36, 1
      %p252 = scmp.ne.s32.totalorder %s247, %s249
      %p253 = scmp.eq.s32.totalorder %s36, 0
      %p254 = por %p252, %p253
      %p255 = scmp.ne.s32.totalorder %s247, %s249
      %p256 = scmp.eq.s32.totalorder %s41, 1
      %p257 = por %p255, %p256
      %p258 = scmp.ne.s32.totalorder %s249, %s250
      %p259 = scmp.eq.s32.totalorder %s41, 0
      %p260 = por %p258, %p259
      %p261 = scmp.ne.s32.totalorder %s249, %s250
      %p262 = scmp.eq.s32.totalorder %s42, 1
      %p263 = por %p261, %p262
      %p265 = scmp.ne.s32.totalorder %s250, %s264
      %p266 = scmp.eq.s32.totalorder %s42, 0
      %p267 = por %p265, %p266
      %s269 = sadd.s32 %s268, 1
      %p272 = scmp.eq.s32.totalorder %s36, 1
      %p273 = scmp.ne.s32.totalorder %s268, %s270
      %p274 = scmp.eq.s32.totalorder %s36, 0
      %p275 = por %p273, %p274
      %p276 = scmp.ne.s32.totalorder %s268, %s270
      %p277 = scmp.eq.s32.totalorder %s41, 1
      %p278 = por %p276, %p277
      %p279 = scmp.ne.s32.totalorder %s270, %s271
      %p280 = scmp.eq.s32.totalorder %s41, 0
      %p281 = por %p279, %p280
      %p282 = scmp.ne.s32.totalorder %s270, %s271
      %p283 = scmp.eq.s32.totalorder %s42, 1
      %p284 = por %p282, %p283
      %p286 = scmp.ne.s32.totalorder %s271, %s285
      %p287 = scmp.eq.s32.totalorder %s42, 0
      %p288 = por %p286, %p287
      %s290 = sadd.s32 %s289, 1
      %p293 = scmp.eq.s32.totalorder %s36, 1
      %p294 = scmp.ne.s32.totalorder %s289, %s291
      %p295 = scmp.eq.s32.totalorder %s36, 0
      %p296 = por %p294, %p295
      %p297 = scmp.ne.s32.totalorder %s289, %s291
      %p298 = scmp.eq.s32.totalorder %s41, 1
      %p299 = por %p297, %p298
      %p300 = scmp.ne.s32.totalorder %s291, %s292
      %p301 = scmp.eq.s32.totalorder %s41, 0
      %p302 = por %p300, %p301
      %p303 = scmp.ne.s32.totalorder %s291, %s292
      %p304 = scmp.eq.s32.totalorder %s42, 1
      %p305 = por %p303, %p304
      %p307 = scmp.ne.s32.totalorder %s292, %s306
      %p308 = scmp.eq.s32.totalorder %s42, 0
      %p309 = por %p307, %p308
      %s311 = sadd.s32 %s310, 1
      %p314 = scmp.eq.s32.totalorder %s36, 1
      %p315 = scmp.ne.s32.totalorder %s310, %s312
      %p316 = scmp.eq.s32.totalorder %s36, 0
      %p317 = por %p315, %p316
      %p318 = scmp.ne.s32.totalorder %s310, %s312
      %p319 = scmp.eq.s32.totalorder %s41, 1
      %p320 = por %p318, %p319
      %p321 = scmp.ne.s32.totalorder %s312, %s313
      %p322 = scmp.eq.s32.totalorder %s41, 0
      %p323 = por %p321, %p322
      %p324 = scmp.ne.s32.totalorder %s312, %s313
      %p325 = scmp.eq.s32.totalorder %s42, 1
      %p326 = por %p324, %p325
      %p328 = scmp.ne.s32.totalorder %s313, %s327
      %p329 = scmp.eq.s32.totalorder %s42, 0
      %p330 = por %p328, %p329
      %s332 = sadd.s32 %s331, 1
      %p335 = scmp.eq.s32.totalorder %s36, 1
      %p336 = scmp.ne.s32.totalorder %s331, %s333
      %p337 = scmp.eq.s32.totalorder %s36, 0
      %p338 = por %p336, %p337
      %p339 = scmp.ne.s32.totalorder %s331, %s333
      %p340 = scmp.eq.s32.totalorder %s41, 1
      %p341 = por %p339, %p340
      %p342 = scmp.ne.s32.totalorder %s333, %s334
      %p343 = scmp.eq.s32.totalorder %s41, 0
      %p344 = por %p342, %p343
      %p345 = scmp.ne.s32.totalorder %s333, %s334
      %p346 = scmp.eq.s32.totalorder %s42, 1
      %p347 = por %p345, %p346
      %p349 = scmp.ne.s32.totalorder %s334, %s348
      %p350 = scmp.eq.s32.totalorder %s42, 0
      %p351 = por %p349, %p350
      %s353 = sadd.s32 %s352, 1
      %p356 = scmp.eq.s32.totalorder %s36, 1
      %p357 = scmp.ne.s32.totalorder %s352, %s354
      %p358 = scmp.eq.s32.totalorder %s36, 0
      %p359 = por %p357, %p358
      %p360 = scmp.ne.s32.totalorder %s352, %s354
      %p361 = scmp.eq.s32.totalorder %s41, 1
      %p362 = por %p360, %p361
      %p363 = scmp.ne.s32.totalorder %s354, %s355
      %p364 = scmp.eq.s32.totalorder %s41, 0
      %p365 = por %p363, %p364
      %p366 = scmp.ne.s32.totalorder %s354, %s355
      %p367 = scmp.eq.s32.totalorder %s42, 1
      %p368 = por %p366, %p367
      %p370 = scmp.ne.s32.totalorder %s355, %s369
      %p371 = scmp.eq.s32.totalorder %s42, 0
      %p372 = por %p370, %p371
      %s374 = sadd.s32 %s373, 1
      %p377 = scmp.eq.s32.totalorder %s36, 1
      %p378 = scmp.ne.s32.totalorder %s373, %s375
      %p379 = scmp.eq.s32.totalorder %s36, 0
      %p380 = por %p378, %p379
      %p381 = scmp.ne.s32.totalorder %s373, %s375
      %p382 = scmp.eq.s32.totalorder %s41, 1
      %p383 = por %p381, %p382
      %p384 = scmp.ne.s32.totalorder %s375, %s376
      %p385 = scmp.eq.s32.totalorder %s41, 0
      %p386 = por %p384, %p385
      %p387 = scmp.ne.s32.totalorder %s375, %s376
      %p388 = scmp.eq.s32.totalorder %s42, 1
      %p389 = por %p387, %p388
      %p391 = scmp.ne.s32.totalorder %s376, %s390
      %p392 = scmp.eq.s32.totalorder %s42, 0
      %p393 = por %p391, %p392
      %s395 = sadd.s32 %s394, 1
      %p398 = scmp.eq.s32.totalorder %s36, 1
      %p399 = scmp.ne.s32.totalorder %s394, %s396
      %p400 = scmp.eq.s32.totalorder %s36, 0
      %p401 = por %p399, %p400
      %p402 = scmp.ne.s32.totalorder %s394, %s396
      %p403 = scmp.eq.s32.totalorder %s41, 1
      %p404 = por %p402, %p403
      %p405 = scmp.ne.s32.totalorder %s396, %s397
      %p406 = scmp.eq.s32.totalorder %s41, 0
      %p407 = por %p405, %p406
      %p408 = scmp.ne.s32.totalorder %s396, %s397
      %p409 = scmp.eq.s32.totalorder %s42, 1
      %p410 = por %p408, %p409
      %p412 = scmp.ne.s32.totalorder %s397, %s411
      %p413 = scmp.eq.s32.totalorder %s42, 0
      %p414 = por %p412, %p413
      %s416 = sadd.s32 %s415, 1
      %p419 = scmp.eq.s32.totalorder %s36, 1
      %p420 = scmp.ne.s32.totalorder %s415, %s417
      %p421 = scmp.eq.s32.totalorder %s36, 0
      %p422 = por %p420, %p421
      %p423 = scmp.ne.s32.totalorder %s415, %s417
      %p424 = scmp.eq.s32.totalorder %s41, 1
      %p425 = por %p423, %p424
      %p426 = scmp.ne.s32.totalorder %s417, %s418
      %p427 = scmp.eq.s32.totalorder %s41, 0
      %p428 = por %p426, %p427
      %p429 = scmp.ne.s32.totalorder %s417, %s418
      %p430 = scmp.eq.s32.totalorder %s42, 1
      %p431 = por %p429, %p430
      %p433 = scmp.ne.s32.totalorder %s418, %s432
      %p434 = scmp.eq.s32.totalorder %s42, 0
      %p435 = por %p433, %p434
      %s437 = sadd.s32 %s436, 1
      %p440 = scmp.eq.s32.totalorder %s36, 1
      %p441 = scmp.ne.s32.totalorder %s436, %s438
      %p442 = scmp.eq.s32.totalorder %s36, 0
      %p443 = por %p441, %p442
      %p444 = scmp.ne.s32.totalorder %s436, %s438
      %p445 = scmp.eq.s32.totalorder %s41, 1
      %p446 = por %p444, %p445
      %p447 = scmp.ne.s32.totalorder %s438, %s439
      %p448 = scmp.eq.s32.totalorder %s41, 0
      %p449 = por %p447, %p448
      %p450 = scmp.ne.s32.totalorder %s438, %s439
      %p451 = scmp.eq.s32.totalorder %s42, 1
      %p452 = por %p450, %p451
      %p454 = scmp.ne.s32.totalorder %s439, %s453
      %p455 = scmp.eq.s32.totalorder %s42, 0
      %p456 = por %p454, %p455
      %s458 = sadd.s32 %s457, 1
      %p461 = scmp.eq.s32.totalorder %s36, 1
      %p462 = scmp.ne.s32.totalorder %s457, %s459
      %p463 = scmp.eq.s32.totalorder %s36, 0
      %p464 = por %p462, %p463
      %p465 = scmp.ne.s32.totalorder %s457, %s459
      %p466 = scmp.eq.s32.totalorder %s41, 1
      %p467 = por %p465, %p466
      %p468 = scmp.ne.s32.totalorder %s459, %s460
      %p469 = scmp.eq.s32.totalorder %s41, 0
      %p470 = por %p468, %p469
      %p471 = scmp.ne.s32.totalorder %s459, %s460
      %p472 = scmp.eq.s32.totalorder %s42, 1
      %p473 = por %p471, %p472
      %p475 = scmp.ne.s32.totalorder %s460, %s474
      %p476 = scmp.eq.s32.totalorder %s42, 0
      %p477 = por %p475, %p476
      %s479 = sadd.s32 %s478, 1
      %p482 = scmp.eq.s32.totalorder %s36, 1
      %p483 = scmp.ne.s32.totalorder %s478, %s480
      %p484 = scmp.eq.s32.totalorder %s36, 0
      %p485 = por %p483, %p484
      %p486 = scmp.ne.s32.totalorder %s478, %s480
      %p487 = scmp.eq.s32.totalorder %s41, 1
      %p488 = por %p486, %p487
      %p489 = scmp.ne.s32.totalorder %s480, %s481
      %p490 = scmp.eq.s32.totalorder %s41, 0
      %p491 = por %p489, %p490
      %p492 = scmp.ne.s32.totalorder %s480, %s481
      %p493 = scmp.eq.s32.totalorder %s42, 1
      %p494 = por %p492, %p493
      %p496 = scmp.ne.s32.totalorder %s481, %s495
      %p497 = scmp.eq.s32.totalorder %s42, 0
      %p498 = por %p496, %p497
      %s500 = sadd.s32 %s499, 1
      %p503 = scmp.eq.s32.totalorder %s36, 1
      %p504 = scmp.ne.s32.totalorder %s499, %s501
      %p505 = scmp.eq.s32.totalorder %s36, 0
      %p506 = por %p504, %p505
      %p507 = scmp.ne.s32.totalorder %s499, %s501
      %p508 = scmp.eq.s32.totalorder %s41, 1
      %p509 = por %p507, %p508
      %p510 = scmp.ne.s32.totalorder %s501, %s502
      %p511 = scmp.eq.s32.totalorder %s41, 0
      %p512 = por %p510, %p511
      %p513 = scmp.ne.s32.totalorder %s501, %s502
      %p514 = scmp.eq.s32.totalorder %s42, 1
      %p515 = por %p513, %p514
      %p517 = scmp.ne.s32.totalorder %s502, %s516
      %p518 = scmp.eq.s32.totalorder %s42, 0
      %p519 = por %p517, %p518
      %s521 = sadd.s32 %s520, 1
      %p524 = scmp.eq.s32.totalorder %s36, 1
      %p525 = scmp.ne.s32.totalorder %s520, %s522
      %p526 = scmp.eq.s32.totalorder %s36, 0
      %p527 = por %p525, %p526
      %p528 = scmp.ne.s32.totalorder %s520, %s522
      %p529 = scmp.eq.s32.totalorder %s41, 1
      %p530 = por %p528, %p529
      %p531 = scmp.ne.s32.totalorder %s522, %s523
      %p532 = scmp.eq.s32.totalorder %s41, 0
      %p533 = por %p531, %p532
      %p534 = scmp.ne.s32.totalorder %s522, %s523
      %p535 = scmp.eq.s32.totalorder %s42, 1
      %p536 = por %p534, %p535
      %p538 = scmp.ne.s32.totalorder %s523, %s537
      %p539 = scmp.eq.s32.totalorder %s42, 0
      %p540 = por %p538, %p539
      %s542 = sadd.s32 %s541, 1
      %p545 = scmp.eq.s32.totalorder %s36, 1
      %p546 = scmp.ne.s32.totalorder %s541, %s543
      %p547 = scmp.eq.s32.totalorder %s36, 0
      %p548 = por %p546, %p547
      %p549 = scmp.ne.s32.totalorder %s541, %s543
      %p550 = scmp.eq.s32.totalorder %s41, 1
      %p551 = por %p549, %p550
      %p552 = scmp.ne.s32.totalorder %s543, %s544
      %p553 = scmp.eq.s32.totalorder %s41, 0
      %p554 = por %p552, %p553
      %p555 = scmp.ne.s32.totalorder %s543, %s544
      %p556 = scmp.eq.s32.totalorder %s42, 1
      %p557 = por %p555, %p556
      %p559 = scmp.ne.s32.totalorder %s544, %s558
      %p560 = scmp.eq.s32.totalorder %s42, 0
      %p561 = por %p559, %p560
      %s563 = sadd.s32 %s562, 1
      %p566 = scmp.eq.s32.totalorder %s36, 1
      %p567 = scmp.ne.s32.totalorder %s562, %s564
      %p568 = scmp.eq.s32.totalorder %s36, 0
      %p569 = por %p567, %p568
      %p570 = scmp.ne.s32.totalorder %s562, %s564
      %p571 = scmp.eq.s32.totalorder %s41, 1
      %p572 = por %p570, %p571
      %p573 = scmp.ne.s32.totalorder %s564, %s565
      %p574 = scmp.eq.s32.totalorder %s41, 0
      %p575 = por %p573, %p574
      %p576 = scmp.ne.s32.totalorder %s564, %s565
      %p577 = scmp.eq.s32.totalorder %s42, 1
      %p578 = por %p576, %p577
      %p580 = scmp.ne.s32.totalorder %s565, %s579
      %p581 = scmp.eq.s32.totalorder %s42, 0
      %p582 = por %p580, %p581
      %s584 = sadd.s32 %s583, 1
      %p587 = scmp.eq.s32.totalorder %s36, 1
      %p588 = scmp.ne.s32.totalorder %s583, %s585
      %p589 = scmp.eq.s32.totalorder %s36, 0
      %p590 = por %p588, %p589
      %p591 = scmp.ne.s32.totalorder %s583, %s585
      %p592 = scmp.eq.s32.totalorder %s41, 1
      %p593 = por %p591, %p592
      %p594 = scmp.ne.s32.totalorder %s585, %s586
      %p595 = scmp.eq.s32.totalorder %s41, 0
      %p596 = por %p594, %p595
      %p597 = scmp.ne.s32.totalorder %s585, %s586
      %p598 = scmp.eq.s32.totalorder %s42, 1
      %p599 = por %p597, %p598
      %p601 = scmp.ne.s32.totalorder %s586, %s600
      %p602 = scmp.eq.s32.totalorder %s42, 0
      %p603 = por %p601, %p602
      %s605 = sadd.s32 %s604, 1
      %p608 = scmp.eq.s32.totalorder %s36, 1
      %p609 = scmp.ne.s32.totalorder %s604, %s606
      %p610 = scmp.eq.s32.totalorder %s36, 0
      %p611 = por %p609, %p610
      %p612 = scmp.ne.s32.totalorder %s604, %s606
      %p613 = scmp.eq.s32.totalorder %s41, 1
      %p614 = por %p612, %p613
      %p615 = scmp.ne.s32.totalorder %s606, %s607
      %p616 = scmp.eq.s32.totalorder %s41, 0
      %p617 = por %p615, %p616
      %p618 = scmp.ne.s32.totalorder %s606, %s607
      %p619 = scmp.eq.s32.totalorder %s42, 1
      %p620 = por %p618, %p619
      %p622 = scmp.ne.s32.totalorder %s607, %s621
      %p623 = scmp.eq.s32.totalorder %s42, 0
      %p624 = por %p622, %p623
      %s626 = sadd.s32 %s625, 1
      %p629 = scmp.eq.s32.totalorder %s36, 1
      %p630 = scmp.ne.s32.totalorder %s625, %s627
      %p631 = scmp.eq.s32.totalorder %s36, 0
      %p632 = por %p630, %p631
      %p633 = scmp.ne.s32.totalorder %s625, %s627
      %p634 = scmp.eq.s32.totalorder %s41, 1
      %p635 = por %p633, %p634
      %p636 = scmp.ne.s32.totalorder %s627, %s628
      %p637 = scmp.eq.s32.totalorder %s41, 0
      %p638 = por %p636, %p637
      %p639 = scmp.ne.s32.totalorder %s627, %s628
      %p640 = scmp.eq.s32.totalorder %s42, 1
      %p641 = por %p639, %p640
      %p643 = scmp.ne.s32.totalorder %s628, %s642
      %p644 = scmp.eq.s32.totalorder %s42, 0
      %p645 = por %p643, %p644
      %s646 = ssub.s32 %s36, %s43
      %p647 = scmp.eq.s32.totalorder %s646, 0
      %s649 = sadd.s32 %s648, 1
      %s650 = scalar_select %p647, %s648, %s649
      %p653 = pneg %p647
      %p654 = scmp.eq.s32.totalorder %s36, 1
      %p655 = por %p653, %p654
      %p656 = scmp.ne.s32.totalorder %s648, %s651
      %p657 = scmp.eq.s32.totalorder %s36, 0
      %p658 = por %p656, %p657
      %p659 = scmp.ne.s32.totalorder %s648, %s651
      %p660 = scmp.eq.s32.totalorder %s41, 1
      %p661 = por %p659, %p660
      %p662 = scmp.ne.s32.totalorder %s651, %s652
      %p663 = scmp.eq.s32.totalorder %s41, 0
      %p664 = por %p662, %p663
      %p665 = scmp.ne.s32.totalorder %s651, %s652
      %p666 = scmp.eq.s32.totalorder %s42, 1
      %p667 = por %p665, %p666
      %p669 = scmp.ne.s32.totalorder %s652, %s668
      %p670 = scmp.eq.s32.totalorder %s42, 0
      %p671 = por %p669, %p670
      %p672 = scmp.le.s32.totalorder 1, %s36
      %p673 = scmp.lt.s32.totalorder %s36, 3
      %p674 = pnand %p672, %p673
      %p675 = pneg %p674
      // Predicated region
      $region9: #{decoder_layer.1} parent=5 // pred_check
        _
      $region10: #{decoder_layer.1} parent=5 // pred_check_branch
        %677 = sbr.rel (%p674) target = $region12
      $region11: #{decoder_layer.1} parent=5 // pred_region
        %s678 = ssub.s32 %s36, 1
        // Predicated region
        $region13: #{decoder_layer.1} parent=11 // pred_check
          %p679 = pneg %p239
        $region14: #{decoder_layer.1} parent=11 // pred_check_branch
          %681 = sbr.rel (%p679) target = $region16
        $region15: #{decoder_layer.1} parent=11 // pred_region
          _
        $region16: #{decoder_layer.1} parent=11 // pred_fallthru
          _
        // Predicated region
        $region17: #{decoder_layer.1} parent=11 // pred_check
          %p682 = pneg %p260
        $region18: #{decoder_layer.1} parent=11 // pred_check_branch
          %684 = sbr.rel (%p682) target = $region20
        $region19: #{decoder_layer.1} parent=11 // pred_region
          _
        $region20: #{decoder_layer.1} parent=11 // pred_fallthru
          _
        // Predicated region
        $region21: #{decoder_layer.1} parent=11 // pred_check
          %p685 = pneg %p281
        $region22: #{decoder_layer.1} parent=11 // pred_check_branch
          %687 = sbr.rel (%p685) target = $region24
        $region23: #{decoder_layer.1} parent=11 // pred_region
          _
        $region24: #{decoder_layer.1} parent=11 // pred_fallthru
          _
        // Predicated region
        $region25: #{decoder_layer.1} parent=11 // pred_check
          %p688 = pneg %p302
        $region26: #{decoder_layer.1} parent=11 // pred_check_branch
          %690 = sbr.rel (%p688) target = $region28
        $region27: #{decoder_layer.1} parent=11 // pred_region
          _
        $region28: #{decoder_layer.1} parent=11 // pred_fallthru
          _
        // Predicated region
        $region29: #{decoder_layer.1} parent=11 // pred_check
          %p691 = pneg %p323
        $region30: #{decoder_layer.1} parent=11 // pred_check_branch
          %693 = sbr.rel (%p691) target = $region32
        $region31: #{decoder_layer.1} parent=11 // pred_region
          _
        $region32: #{decoder_layer.1} parent=11 // pred_fallthru
          _
        // Predicated region
        $region33: #{decoder_layer.1} parent=11 // pred_check
          %p694 = pneg %p344
        $region34: #{decoder_layer.1} parent=11 // pred_check_branch
          %696 = sbr.rel (%p694) target = $region36
        $region35: #{decoder_layer.1} parent=11 // pred_region
          _
        $region36: #{decoder_layer.1} parent=11 // pred_fallthru
          _
        // Predicated region
        $region37: #{decoder_layer.1} parent=11 // pred_check
          %p697 = pneg %p365
        $region38: #{decoder_layer.1} parent=11 // pred_check_branch
          %699 = sbr.rel (%p697) target = $region40
        $region39: #{decoder_layer.1} parent=11 // pred_region
          _
        $region40: #{decoder_layer.1} parent=11 // pred_fallthru
          _
        // Predicated region
        $region41: #{decoder_layer.1} parent=11 // pred_check
          %p700 = pneg %p386
        $region42: #{decoder_layer.1} parent=11 // pred_check_branch
          %702 = sbr.rel (%p700) target = $region44
        $region43: #{decoder_layer.1} parent=11 // pred_region
          _
        $region44: #{decoder_layer.1} parent=11 // pred_fallthru
          _
        // Predicated region
        $region45: #{decoder_layer.1} parent=11 // pred_check
          %p703 = pneg %p407
        $region46: #{decoder_layer.1} parent=11 // pred_check_branch
          %705 = sbr.rel (%p703) target = $region48
        $region47: #{decoder_layer.1} parent=11 // pred_region
          _
        $region48: #{decoder_layer.1} parent=11 // pred_fallthru
          _
        // Predicated region
        $region49: #{decoder_layer.1} parent=11 // pred_check
          %p706 = pneg %p428
        $region50: #{decoder_layer.1} parent=11 // pred_check_branch
          %708 = sbr.rel (%p706) target = $region52
        $region51: #{decoder_layer.1} parent=11 // pred_region
          _
        $region52: #{decoder_layer.1} parent=11 // pred_fallthru
          _
        // Predicated region
        $region53: #{decoder_layer.1} parent=11 // pred_check
          %p709 = pneg %p449
        $region54: #{decoder_layer.1} parent=11 // pred_check_branch
          %711 = sbr.rel (%p709) target = $region56
        $region55: #{decoder_layer.1} parent=11 // pred_region
          _
        $region56: #{decoder_layer.1} parent=11 // pred_fallthru
          _
        // Predicated region
        $region57: #{decoder_layer.1} parent=11 // pred_check
          %p712 = pneg %p470
        $region58: #{decoder_layer.1} parent=11 // pred_check_branch
          %714 = sbr.rel (%p712) target = $region60
        $region59: #{decoder_layer.1} parent=11 // pred_region
          _
        $region60: #{decoder_layer.1} parent=11 // pred_fallthru
          _
        // Predicated region
        $region61: #{decoder_layer.1} parent=11 // pred_check
          %p715 = pneg %p491
        $region62: #{decoder_layer.1} parent=11 // pred_check_branch
          %717 = sbr.rel (%p715) target = $region64
        $region63: #{decoder_layer.1} parent=11 // pred_region
          _
        $region64: #{decoder_layer.1} parent=11 // pred_fallthru
          _
        // Predicated region
        $region65: #{decoder_layer.1} parent=11 // pred_check
          %p718 = pneg %p512
        $region66: #{decoder_layer.1} parent=11 // pred_check_branch
          %720 = sbr.rel (%p718) target = $region68
        $region67: #{decoder_layer.1} parent=11 // pred_region
          _
        $region68: #{decoder_layer.1} parent=11 // pred_fallthru
          _
        // Predicated region
        $region69: #{decoder_layer.1} parent=11 // pred_check
          %p721 = pneg %p533
        $region70: #{decoder_layer.1} parent=11 // pred_check_branch
          %723 = sbr.rel (%p721) target = $region72
        $region71: #{decoder_layer.1} parent=11 // pred_region
          _
        $region72: #{decoder_layer.1} parent=11 // pred_fallthru
          _
        // Predicated region
        $region73: #{decoder_layer.1} parent=11 // pred_check
          %p724 = pneg %p554
        $region74: #{decoder_layer.1} parent=11 // pred_check_branch
          %726 = sbr.rel (%p724) target = $region76
        $region75: #{decoder_layer.1} parent=11 // pred_region
          _
        $region76: #{decoder_layer.1} parent=11 // pred_fallthru
          _
        // Predicated region
        $region77: #{decoder_layer.1} parent=11 // pred_check
          %p727 = pneg %p575
        $region78: #{decoder_layer.1} parent=11 // pred_check_branch
          %729 = sbr.rel (%p727) target = $region80
        $region79: #{decoder_layer.1} parent=11 // pred_region
          _
        $region80: #{decoder_layer.1} parent=11 // pred_fallthru
          _
        // Predicated region
        $region81: #{decoder_layer.1} parent=11 // pred_check
          %p730 = pneg %p596
        $region82: #{decoder_layer.1} parent=11 // pred_check_branch
          %732 = sbr.rel (%p730) target = $region84
        $region83: #{decoder_layer.1} parent=11 // pred_region
          _
        $region84: #{decoder_layer.1} parent=11 // pred_fallthru
          _
        // Predicated region
        $region85: #{decoder_layer.1} parent=11 // pred_check
          %p733 = pneg %p617
        $region86: #{decoder_layer.1} parent=11 // pred_check_branch
          %735 = sbr.rel (%p733) target = $region88
        $region87: #{decoder_layer.1} parent=11 // pred_region
          _
        $region88: #{decoder_layer.1} parent=11 // pred_fallthru
          _
        // Predicated region
        $region89: #{decoder_layer.1} parent=11 // pred_check
          %p736 = pneg %p638
        $region90: #{decoder_layer.1} parent=11 // pred_check_branch
          %738 = sbr.rel (%p736) target = $region92
        $region91: #{decoder_layer.1} parent=11 // pred_region
          _
        $region92: #{decoder_layer.1} parent=11 // pred_fallthru
          _
      $region12: #{decoder_layer.1} parent=5 // pred_fallthru
        _
      %p739 = scmp.lt.s32.totalorder %s36, 2
      // Predicated region
      $region93: #{decoder_layer.1} parent=5 // pred_check
        %p740 = pneg %p739
      $region94: #{decoder_layer.1} parent=5 // pred_check_branch
        %742 = sbr.rel (%p740) target = $region96
      $region95: #{decoder_layer.1} parent=5 // pred_region
        // Predicated region
        $region97: #{decoder_layer.1} parent=95 // pred_check
          %p743 = pneg %p56
        $region98: #{decoder_layer.1} parent=95 // pred_check_branch
          %745 = sbr.rel (%p743) target = $region100
        $region99: #{decoder_layer.1} parent=95 // pred_region
          %p746 = scmp.lt.s32.totalorder %s36, 1
          %s747 = scalar_select %p746, %s36, 1
          %s748 = smul.addr %s747, 8
          %s749 = scalar_lea.vmem %s0, %s748
        $region100: #{decoder_layer.1} parent=95 // pred_fallthru
          _
        // Predicated region
        $region101: #{decoder_layer.1} parent=95 // pred_check
          %p750 = pneg %p82
        $region102: #{decoder_layer.1} parent=95 // pred_check_branch
          %752 = sbr.rel (%p750) target = $region104
        $region103: #{decoder_layer.1} parent=95 // pred_region
          %p753 = scmp.lt.s32.totalorder %s36, 1
          %s754 = scalar_select %p753, %s36, 1
          %s755 = smul.addr %s754, 8
          %s756 = scalar_lea.vmem %s1, %s755
        $region104: #{decoder_layer.1} parent=95 // pred_fallthru
          _
        // Predicated region
        $region105: #{decoder_layer.1} parent=95 // pred_check
          %p757 = pneg %p108
        $region106: #{decoder_layer.1} parent=95 // pred_check_branch
          %759 = sbr.rel (%p757) target = $region108
        $region107: #{decoder_layer.1} parent=95 // pred_region
          %p760 = scmp.lt.s32.totalorder %s36, 1
          %s761 = scalar_select %p760, %s36, 1
          %s762 = scalar_lea.vmem %s2, %s761
        $region108: #{decoder_layer.1} parent=95 // pred_fallthru
          _
        // Predicated region
        $region109: #{decoder_layer.1} parent=95 // pred_check
          %p763 = pneg %p134
        $region110: #{decoder_layer.1} parent=95 // pred_check_branch
          %765 = sbr.rel (%p763) target = $region112
        $region111: #{decoder_layer.1} parent=95 // pred_region
          %p766 = scmp.lt.s32.totalorder %s36, 1
          %s767 = scalar_select %p766, %s36, 1
          %s768 = scalar_lea.vmem %s3, %s767
        $region112: #{decoder_layer.1} parent=95 // pred_fallthru
          _
        // Predicated region
        $region113: #{decoder_layer.1} parent=95 // pred_check
          %p769 = pneg %p160
        $region114: #{decoder_layer.1} parent=95 // pred_check_branch
          %771 = sbr.rel (%p769) target = $region116
        $region115: #{decoder_layer.1} parent=95 // pred_region
          %p772 = scmp.lt.s32.totalorder %s36, 1
          %s773 = scalar_select %p772, %s36, 1
          %s774 = scalar_lea.vmem %s4, %s773
        $region116: #{decoder_layer.1} parent=95 // pred_fallthru
          _
        // Predicated region
        $region117: #{decoder_layer.1} parent=95 // pred_check
          %p775 = pneg %p186
        $region118: #{decoder_layer.1} parent=95 // pred_check_branch
          %777 = sbr.rel (%p775) target = $region120
        $region119: #{decoder_layer.1} parent=95 // pred_region
          %p778 = scmp.lt.s32.totalorder %s36, 1
          %s779 = scalar_select %p778, %s36, 1
          %s780 = scalar_lea.vmem %s5, %s779
        $region120: #{decoder_layer.1} parent=95 // pred_fallthru
          _
        // Predicated region
        $region121: #{decoder_layer.1} parent=95 // pred_check
          %p781 = pneg %p212
        $region122: #{decoder_layer.1} parent=95 // pred_check_branch
          %783 = sbr.rel (%p781) target = $region124
        $region123: #{decoder_layer.1} parent=95 // pred_region
          %p784 = scmp.lt.s32.totalorder %s36, 1
          %s785 = scalar_select %p784, %s36, 1
          %s786 = scalar_lea.vmem %s6, %s785
        $region124: #{decoder_layer.1} parent=95 // pred_fallthru
          _
      $region96: #{decoder_layer.1} parent=5 // pred_fallthru
        _
      %p787 = scmp.le.s32.totalorder 1, %s36
      %p788 = scmp.lt.s32.totalorder %s36, 3
      %p789 = pnand %p787, %p788
      %p790 = pneg %p789
      // Predicated region
      $region125: #{decoder_layer.1} parent=5 // pred_check
        _
      $region126: #{decoder_layer.1} parent=5 // pred_check_branch
        %792 = sbr.rel (%p789) target = $region128
      $region127: #{decoder_layer.1} parent=5 // pred_region
        %s793 = ssub.s32 %s36, 1
        %p794 = scmp.lt.s32.totalorder %s41, 1
        %s795 = scalar_select %p794, %s41, 1
        %s796 = smul.addr %s795, 8
        %s797 = scalar_lea.vmem %s0, %s796
        %p798 = pneg %p62
        %p799 = pneg %p59
        %p800 = scmp.lt.s32.totalorder %s41, 1
        %s801 = scalar_select %p800, %s41, 1
        %s802 = smul.addr %s801, 8
        %s803 = scalar_lea.vmem %s1, %s802
        %p804 = pneg %p88
        %p805 = pneg %p85
        %p806 = scmp.lt.s32.totalorder %s41, 1
        %s807 = scalar_select %p806, %s41, 1
        %s808 = scalar_lea.vmem %s2, %s807
        %p809 = pneg %p114
        %p810 = pneg %p111
        %p811 = scmp.lt.s32.totalorder %s41, 1
        %s812 = scalar_select %p811, %s41, 1
        %s813 = scalar_lea.vmem %s3, %s812
        %p814 = pneg %p140
        %p815 = pneg %p137
        %p816 = scmp.lt.s32.totalorder %s41, 1
        %s817 = scalar_select %p816, %s41, 1
        %s818 = scalar_lea.vmem %s4, %s817
        %p819 = pneg %p166
        %p820 = pneg %p163
        %p821 = scmp.lt.s32.totalorder %s41, 1
        %s822 = scalar_select %p821, %s41, 1
        %s823 = scalar_lea.vmem %s5, %s822
        %p824 = pneg %p192
        %p825 = pneg %p189
        %p826 = scmp.lt.s32.totalorder %s41, 1
        %s827 = scalar_select %p826, %s41, 1
        %s828 = scalar_lea.vmem %s6, %s827
        %p829 = pneg %p218
        %p830 = pneg %p215
        %p831 = pneg %p239
        %p832 = pneg %p236
        %p833 = pneg %p260
        %p834 = pneg %p257
        %p835 = pneg %p281
        %p836 = pneg %p278
        %p837 = pneg %p302
        %p838 = pneg %p299
        %p839 = pneg %p323
        %p840 = pneg %p320
        %p841 = pneg %p344
        %p842 = pneg %p341
        %p843 = pneg %p365
        %p844 = pneg %p362
        %p845 = pneg %p386
        %p846 = pneg %p383
        %p847 = pneg %p407
        %p848 = pneg %p404
        %p849 = pneg %p428
        %p850 = pneg %p425
        %p851 = pneg %p449
        %p852 = pneg %p446
        %p853 = pneg %p470
        %p854 = pneg %p467
        %p855 = pneg %p491
        %p856 = pneg %p488
        %p857 = pneg %p512
        %p858 = pneg %p509
        %p859 = pneg %p533
        %p860 = pneg %p530
        %p861 = pneg %p554
        %p862 = pneg %p551
        %p863 = pneg %p575
        %p864 = pneg %p572
        %p865 = pneg %p596
        %p866 = pneg %p593
        %p867 = pneg %p617
        %p868 = pneg %p614
        %p869 = pneg %p638
        %p870 = pneg %p635
        %p871 = pneg %p664
        %p872 = pneg %p661
        %s873 = sand.u32 %s651, 1
        %s874 = scalar_lea.sflag [#allocation3], %s873
        %s875 = sand.u32 %s651, 1
        %s876 = smul.addr %s875, 8
        %s877 = scalar_lea.vmem [#allocation2], %s876
        %p878 = scmp.lt.s32.totalorder %s41, 1
        %s879 = scalar_select %p878, %s41, 1
        %s880 = smul.addr %s879, 8
        %s881 = scalar_lea.vmem %s0, %s880
        %p882 = scmp.lt.s32.totalorder %s41, 1
        %s883 = scalar_select %p882, %s41, 1
        %s884 = smul.addr %s883, 8
        %s885 = scalar_lea.vmem %s1, %s884
        %p886 = scmp.lt.s32.totalorder %s41, 1
        %s887 = scalar_select %p886, %s41, 1
        %s888 = scalar_lea.vmem %s2, %s887
        %p889 = scmp.lt.s32.totalorder %s41, 1
        %s890 = scalar_select %p889, %s41, 1
        %s891 = scalar_lea.vmem %s3, %s890
        %p892 = scmp.lt.s32.totalorder %s41, 1
        %s893 = scalar_select %p892, %s41, 1
        %s894 = scalar_lea.vmem %s4, %s893
        %p895 = scmp.lt.s32.totalorder %s41, 1
        %s896 = scalar_select %p895, %s41, 1
        %s897 = scalar_lea.vmem %s5, %s896
        %p898 = scmp.lt.s32.totalorder %s41, 1
        %s899 = scalar_select %p898, %s41, 1
        %s900 = scalar_lea.vmem %s6, %s899
        %v902 = vld [vmem:[%s881] sm:$0xff]
        %v903 = vld [vmem:[%s894] sm:$0x1]
        %v904 = vld [vmem:[%s7] sm:$0xff]
        %v905 = vld [vmem:[%s7 + $0x8] sm:$0xff]
        %v906 = vld [vmem:[%s7 + $0x10] sm:$0xff]
        %v907 = vld [vmem:[%s7 + $0x18] sm:$0xff]
        %v908 = vld [vmem:[%s8] sm:$0x1]
        %v909 = vxor.u32 %v903, 2147483648
        %v910 = vmul.f32 %v909, 1.442695
        %v911 = vpow.pop %v910
        %v912 = vadd.f32 %v911, 1.0
        %v913 = vrcp.pop %v912
        %v914 = vmul.f32 1.0, %v913
        %v915 = vmul.f32 %v903, %v914
        %vm916 = vcmask 261120
        %v918 = vsel %vm916, %v915, 0
        %920 = vmatprep.subr.mxu0 0.0
        %921 = vmatpush1.msra.mxu0 %v904
        %922 = vmatprep.subr.mxu0 0.0
        %923 = vmatpush1.msra.mxu0 %v905
        %924 = vmatprep.subr.mxu0 0.0
        %925 = vmatpush1.msra.mxu0 %v906
        %926 = vmatprep.subr.mxu0 0.0
        %927 = vmatpush1.msra.mxu0 %v907
        %928 = vmatprep.subr.mxu0 0.0
        %929 = vmatpush1.msra.mxu0 0.0
        %930 = vmatprep.subr.mxu0 0.0
        %931 = vmatpush1.msra.mxu0 0.0
        %932 = vmatprep.subr.mxu0 0.0
        %933 = vmatpush1.msra.mxu0 0.0
        %934 = vmatprep.subr.mxu0 0.0
        %935 = vmatpush1.msra.mxu0 0.0
        %936 = vmatprep.subr.mxu0 0.0
        %937 = vmatpush1.msra.mxu0 0.0
        %938 = vmatprep.subr.mxu0 0.0
        %939 = vmatpush1.msra.mxu0 0.0
        %940 = vmatprep.subr.mxu0 0.0
        %941 = vmatpush1.msra.mxu0 0.0
        %942 = vmatprep.subr.mxu0 0.0
        %943 = vmatpush1.msra.mxu0 0.0
        %944 = vmatprep.subr.mxu0 0.0
        %945 = vmatpush1.msra.mxu0 0.0
        %946 = vmatprep.subr.mxu0 0.0
        %947 = vmatpush1.msra.mxu0 0.0
        %948 = vmatprep.subr.mxu0 0.0
        %949 = vmatpush1.msra.mxu0 0.0
        %950 = vmatprep.subr.mxu0 0.0
        %951 = vmatpush1.msra.mxu0 0.0
        %952 = vmatprep.subr.mxu0 0.0
        %953 = vmatpush1.msra.mxu0 0.0
        %954 = vmatprep.subr.mxu0 0.0
        %955 = vmatpush1.msra.mxu0 0.0
        %956 = vmatprep.subr.mxu0 0.0
        %957 = vmatpush1.msra.mxu0 0.0
        %958 = vmatprep.subr.mxu0 0.0
        %959 = vmatpush1.msra.mxu0 0.0
        %960 = vmatprep.subr.mxu0 0.0
        %961 = vmatpush1.msra.mxu0 0.0
        %962 = vmatprep.subr.mxu0 0.0
        %963 = vmatpush1.msra.mxu0 0.0
        %964 = vmatprep.subr.mxu0 0.0
        %965 = vmatpush1.msra.mxu0 0.0
        %966 = vmatprep.subr.mxu0 0.0
        %967 = vmatpush1.msra.mxu0 0.0
        %968 = vmatprep.subr.mxu0 0.0
        %969 = vmatpush1.msra.mxu0 0.0
        %970 = vmatprep.subr.mxu0 0.0
        %971 = vmatpush1.msra.mxu0 0.0
        %972 = vmatprep.subr.mxu0 0.0
        %973 = vmatpush1.msra.mxu0 0.0
        %974 = vmatprep.subr.mxu0 0.0
        %975 = vmatpush1.msra.mxu0 0.0
        %976 = vmatprep.subr.mxu0 0.0
        %977 = vmatpush1.msra.mxu0 0.0
        %978 = vmatprep.subr.mxu0 0.0
        %979 = vmatpush1.msra.mxu0 0.0
        %980 = vmatprep.subr.mxu0 0.0
        %981 = vmatpush1.msra.mxu0 0.0
        %982 = vmatprep.subr.mxu0 0.0
        %983 = vmatpush1.msra.mxu0 0.0
        %984 = vmatprep.mubr.f32.mxu0 0.0
        %985 = vmatmul.mubr.f32.gmra.mrb[0].mxu0 %v918
        %v986 = vpop.f32.mrb[0].mxu0
        %v987 = vadd.f32 %v908, %v986
        %v988 = vpop.f32.mrb[0].mxu0
        %989 = vdwg.mxu0
        %v990 = vsel %vm916, %v902, 0.0
        %991 = vadd.xlane.f32.xlu0 %v990
        %v992 = vpop.xlane.xlu0 %991
        %v993 = vrcp.pop 32.0
        %v994 = vmul.f32 %v992, %v993
        %v995 = vsub.f32 %v902, %v994
        %v996 = vmul.f32 %v995, %v995
        %v997 = vsel %vm916, %v996, 0.0
        %998 = vadd.xlane.f32.xlu0 %v997
        %v999 = vpop.xlane.xlu0 %998
        %v1000 = vmul.f32 %v999, %v993
        %v1001 = vadd.f32 %v1000, 1e-05
        %v1002 = vrsqrt.pop %v1001
        %v1003 = vmul.f32 %v995, %v1002
        %v1004 = vadd.f32 %v987, 1.0
        %v1005 = vlaneseq
        %v1006 = vshrl.u32 %v1005, 7
        %v1007 = vsub.s32 0, %v1006
        %v1008 = vrot.slane %v1004, %v1007
        %v1009 = vmul.f32 %v1003, %v1008
        %v1010 = vlaneseq
        %v1011 = vshrl.u32 %v1010, 7
        %v1012 = vsub.s32 0, %v1011
        %v1013 = vrot.slane %v987, %v1012
        %1015 = vrot.lane.b32.xlu0 %v1013, 96
        %v1016 = vpop.permute.xlu0 %1015
        %v1018 = vadd.f32 %v1009, %v1016
        %v1019 = vld [vmem:[%s13] sm:$0xff]
        %v1020 = vld [vmem:[%s13 + $0x8] sm:$0xff]
        %v1021 = vld [vmem:[%s13 + $0x10] sm:$0xff]
        %v1022 = vld [vmem:[%s13 + $0x18] sm:$0xff]
        %v1023 = vld [vmem:[%s14] sm:$0x1]
        %v1024 = vpack.c.bf16 %v1018, %v1018
        %v1025 = vpack.c.bf16 %v1020, %v1019
        %v1026 = vpack.c.bf16 %v1022, %v1021
        %v1028 = vlaneseq
        %v1029 = vshrl.u32 %v1028, 7
        %v1030 = vsub.s32 0, %v1029
        %v1031 = vrot.slane %v1023, %v1030
        %v1034 = vsel %vm916, %v1024, 0
        %1036 = vmatprep.subr.bf16.mxu0 0
        %1037 = vmatpush1.bf16.msra.mxu0 %v1025
        %1038 = vmatprep.subr.bf16.mxu0 0
        %1039 = vmatpush1.bf16.msra.mxu0 %v1026
        %1040 = vmatprep.subr.bf16.mxu0 0
        %1041 = vmatpush1.bf16.msra.mxu0 0
        %1042 = vmatprep.subr.bf16.mxu0 0
        %1043 = vmatpush1.bf16.msra.mxu0 0
        %1044 = vmatprep.subr.bf16.mxu0 0
        %1045 = vmatpush1.bf16.msra.mxu0 0
        %1046 = vmatprep.subr.bf16.mxu0 0
        %1047 = vmatpush1.bf16.msra.mxu0 0
        %1048 = vmatprep.subr.bf16.mxu0 0
        %1049 = vmatpush1.bf16.msra.mxu0 0
        %1050 = vmatprep.subr.bf16.mxu0 0
        %1051 = vmatpush1.bf16.msra.mxu0 0
        %1052 = vmatprep.subr.bf16.mxu0 0
        %1053 = vmatpush1.bf16.msra.mxu0 0
        %1054 = vmatprep.subr.bf16.mxu0 0
        %1055 = vmatpush1.bf16.msra.mxu0 0
        %1056 = vmatprep.subr.bf16.mxu0 0
        %1057 = vmatpush1.bf16.msra.mxu0 0
        %1058 = vmatprep.subr.bf16.mxu0 0
        %1059 = vmatpush1.bf16.msra.mxu0 0
        %1060 = vmatprep.subr.bf16.mxu0 0
        %1061 = vmatpush1.bf16.msra.mxu0 0
        %1062 = vmatprep.subr.bf16.mxu0 0
        %1063 = vmatpush1.bf16.msra.mxu0 0
        %1064 = vmatprep.subr.bf16.mxu0 0
        %1065 = vmatpush1.bf16.msra.mxu0 0
        %1066 = vmatprep.subr.bf16.mxu0 0
        %1067 = vmatpush1.bf16.msra.mxu0 0
        %1068 = vmatprep.mubr.bf16.mxu0 0
        %1069 = vmatmul.mubr.bf16.gmra.mrb[0].mxu0 %v1034
        %v1070 = vpop.f32.mrb[0].mxu0
        %v1071 = vadd.f32 %v1031, %v1070
        %v1072 = vpop.f32.mrb[0].mxu0
        %v1073 = vpop.f32.mrb[0].mxu0
        %v1074 = vpop.f32.mrb[0].mxu0
        %1075 = vdwg.mxu0
        %v1076 = vld [vmem:[%s888] sm:$0x1]
        %v1077 = vld [vmem:[%s15] sm:$0xff]
        %v1078 = vld [vmem:[%s15 + $0x8] sm:$0xff]
        %v1079 = vld [vmem:[%s15 + $0x10] sm:$0xff]
        %v1080 = vld [vmem:[%s15 + $0x18] sm:$0xff]
        %v1081 = vld [vmem:[%s16] sm:$0x1]
        %vm1082 = vcmp.gt.f32.partialorder %v1076, 0.5
        %v1084 = vlaneseq
        %v1085 = vshrl.u32 %v1084, 7
        %v1086 = vsub.s32 0, %v1085
        %v1087 = vrot.slane %v1081, %v1086
        %v1089 = vadd.f32 %v902, %v1087
        %v1090 = vpack.c.bf16 %v1071, %v1071
        %1092 = vrot.lane.b32.xlu0 %v1090, 96
        %v1093 = vpop.permute.xlu0 %1092
        %vm1094 = vcmask 64512
        %v1096 = vsel %vm1094, %v1090, 0
        %v1099 = vsel %vm1094, %v1093, 0
        %1101 = vmatprep.subr.bf16.mxu0 0
        %1102 = vmatpush1.bf16.xpose.msra.mxu0 %v1099
        %1103 = vmatprep.subr.bf16.mxu0 0
        %1104 = vmatpush1.bf16.xpose.msra.mxu0 0
        %1105 = vmatprep.subr.bf16.mxu0 0
        %1106 = vmatpush1.bf16.xpose.msra.mxu0 0
        %1107 = vmatprep.subr.bf16.mxu0 0
        %1108 = vmatpush1.bf16.xpose.msra.mxu0 0
        %1109 = vmatprep.subr.bf16.mxu0 0
        %1110 = vmatpush1.bf16.xpose.msra.mxu0 0
        %1111 = vmatprep.subr.bf16.mxu0 0
        %1112 = vmatpush1.bf16.xpose.msra.mxu0 0
        %1113 = vmatprep.subr.bf16.mxu0 0
        %1114 = vmatpush1.bf16.xpose.msra.mxu0 0
        %1115 = vmatprep.subr.bf16.mxu0 0
        %1116 = vmatpush1.bf16.xpose.msra.mxu0 0
        %1117 = vmatprep.subr.bf16.mxu0 0
        %1118 = vmatpush1.bf16.xpose.msra.mxu0 0
        %1119 = vmatprep.subr.bf16.mxu0 0
        %1120 = vmatpush1.bf16.xpose.msra.mxu0 0
        %1121 = vmatprep.subr.bf16.mxu0 0
        %1122 = vmatpush1.bf16.xpose.msra.mxu0 0
        %1123 = vmatprep.subr.bf16.mxu0 0
        %1124 = vmatpush1.bf16.xpose.msra.mxu0 0
        %1125 = vmatprep.subr.bf16.mxu0 0
        %1126 = vmatpush1.bf16.xpose.msra.mxu0 0
        %1127 = vmatprep.subr.bf16.mxu0 0
        %1128 = vmatpush1.bf16.xpose.msra.mxu0 0
        %1129 = vmatprep.subr.bf16.mxu0 0
        %1130 = vmatpush1.bf16.xpose.msra.mxu0 0
        %1131 = vmatprep.subr.bf16.mxu0 0
        %1132 = vmatpush1.bf16.xpose.msra.mxu0 0
        %1133 = vmatprep.mubr.bf16.mxu0 0
        %1134 = vmatmul.mubr.bf16.gmra.mrb[0].mxu0 %v1096
        %v1135 = vpop.f32.mrb[0].mxu0
        %v1136 = vadd.f32 0.0, %v1135
        %v1137 = vpop.f32.mrb[0].mxu0
        %v1138 = vpop.f32.mrb[0].mxu0
        %v1139 = vpop.f32.mrb[0].mxu0
        %1140 = vdwg.mxu0
        %v1141 = vsel %vm1082, 1, 0
        %v1142 = vlaneseq
        %v1143 = vshrl.u32 %v1142, 7
        %v1144 = vsub.s32 0, %v1143
        %v1145 = vrot.slane %v1141, %v1144
        %vm1146 = vcmp.eq.s32.totalorder %v1145, 1
        %v1147 = vsel %vm1146, %v1136, -1e+30
        %v1148 = vsel %vm1094, %v1147, -inf
        %1149 = vmax.xlane.f32.xlu0 %v1148
        %v1150 = vpop.xlane.xlu0 %1149
        %v1151 = vsub.f32 %v1147, %v1150
        %v1152 = vmul.f32 %v1151, 1.442695
        %v1153 = vpow.pop %v1152
        %v1154 = vsel %vm1094, %v1153, 0.0
        %1155 = vadd.xlane.f32.xlu0 %v1154
        %v1156 = vpop.xlane.xlu0 %1155
        %v1157 = vrcp.pop %v1156
        %v1158 = vmul.f32 %v1153, %v1157
        %v1159 = vpack.c.bf16 %v1158, %v1158
        %1160 = vrot.lane.b32.xlu0 %v1090, 64
        %v1161 = vpop.permute.xlu0 %1160
        %v1163 = vsel %vm1094, %v1159, 0
        %vm1165 = vcmask 1043456
        %v1167 = vsel %vm1165, %v1161, 0
        %1169 = vmatprep.subr.bf16.mxu0 0
        %1170 = vmatpush1.bf16.msra.mxu0 %v1167
        %1171 = vmatprep.subr.bf16.mxu0 0
        %1172 = vmatpush1.bf16.msra.mxu0 0
        %1173 = vmatprep.subr.bf16.mxu0 0
        %1174 = vmatpush1.bf16.msra.mxu0 0
        %1175 = vmatprep.subr.bf16.mxu0 0
        %1176 = vmatpush1.bf16.msra.mxu0 0
        %1177 = vmatprep.subr.bf16.mxu0 0
        %1178 = vmatpush1.bf16.msra.mxu0 0
        %1179 = vmatprep.subr.bf16.mxu0 0
        %1180 = vmatpush1.bf16.msra.mxu0 0
        %1181 = vmatprep.subr.bf16.mxu0 0
        %1182 = vmatpush1.bf16.msra.mxu0 0
        %1183 = vmatprep.subr.bf16.mxu0 0
        %1184 = vmatpush1.bf16.msra.mxu0 0
        %1185 = vmatprep.subr.bf16.mxu0 0
        %1186 = vmatpush1.bf16.msra.mxu0 0
        %1187 = vmatprep.subr.bf16.mxu0 0
        %1188 = vmatpush1.bf16.msra.mxu0 0
        %1189 = vmatprep.subr.bf16.mxu0 0
        %1190 = vmatpush1.bf16.msra.mxu0 0
        %1191 = vmatprep.subr.bf16.mxu0 0
        %1192 = vmatpush1.bf16.msra.mxu0 0
        %1193 = vmatprep.subr.bf16.mxu0 0
        %1194 = vmatpush1.bf16.msra.mxu0 0
        %1195 = vmatprep.subr.bf16.mxu0 0
        %1196 = vmatpush1.bf16.msra.mxu0 0
        %1197 = vmatprep.subr.bf16.mxu0 0
        %1198 = vmatpush1.bf16.msra.mxu0 0
        %1199 = vmatprep.subr.bf16.mxu0 0
        %1200 = vmatpush1.bf16.msra.mxu0 0
        %1201 = vmatprep.mubr.bf16.mxu0 0
        %1202 = vmatmul.mubr.bf16.gmra.mrb[0].mxu0 %v1163
        %v1203 = vpop.f32.mrb[0].mxu0
        %v1204 = vadd.f32 0.0, %v1203
        %v1205 = vpop.f32.mrb[0].mxu0
        %v1206 = vpop.f32.mrb[0].mxu0
        %v1207 = vpop.f32.mrb[0].mxu0
        %1208 = vdwg.mxu0
        %v1209 = vpack.c.bf16 %v1204, %v1204
        %v1210 = vpack.c.bf16 %v1077, %v1077
        %v1212 = vsel %vm1094, %v1209, 0
        %v1215 = vsel %vm1165, %v1210, 0
        %1217 = vmatprep.subr.bf16.mxu0 0
        %1218 = vmatpush1.bf16.msra.mxu0 %v1215
        %1219 = vmatprep.subr.bf16.mxu0 0
        %1220 = vmatpush1.bf16.msra.mxu0 0
        %1221 = vmatprep.subr.bf16.mxu0 0
        %1222 = vmatpush1.bf16.msra.mxu0 0
        %1223 = vmatprep.subr.bf16.mxu0 0
        %1224 = vmatpush1.bf16.msra.mxu0 0
        %1225 = vmatprep.subr.bf16.mxu0 0
        %1226 = vmatpush1.bf16.msra.mxu0 0
        %1227 = vmatprep.subr.bf16.mxu0 0
        %1228 = vmatpush1.bf16.msra.mxu0 0
        %1229 = vmatprep.subr.bf16.mxu0 0
        %1230 = vmatpush1.bf16.msra.mxu0 0
        %1231 = vmatprep.subr.bf16.mxu0 0
        %1232 = vmatpush1.bf16.msra.mxu0 0
        %1233 = vmatprep.subr.bf16.mxu0 0
        %1234 = vmatpush1.bf16.msra.mxu0 0
        %1235 = vmatprep.subr.bf16.mxu0 0
        %1236 = vmatpush1.bf16.msra.mxu0 0
        %1237 = vmatprep.subr.bf16.mxu0 0
        %1238 = vmatpush1.bf16.msra.mxu0 0
        %1239 = vmatprep.subr.bf16.mxu0 0
        %1240 = vmatpush1.bf16.msra.mxu0 0
        %1241 = vmatprep.subr.bf16.mxu0 0
        %1242 = vmatpush1.bf16.msra.mxu0 0
        %1243 = vmatprep.subr.bf16.mxu0 0
        %1244 = vmatpush1.bf16.msra.mxu0 0
        %1245 = vmatprep.subr.bf16.mxu0 0
        %1246 = vmatpush1.bf16.msra.mxu0 0
        %1247 = vmatprep.subr.bf16.mxu0 0
        %1248 = vmatpush1.bf16.msra.mxu0 0
        %1249 = vmatprep.mubr.bf16.mxu0 0
        %1250 = vmatmul.mubr.bf16.gmra.mrb[0].mxu0 %v1212
        %v1251 = vpop.f32.mrb[0].mxu0
        %v1252 = vadd.f32 0.0, %v1251
        %v1253 = vpop.f32.mrb[0].mxu0
        %v1254 = vpop.f32.mrb[0].mxu0
        %v1255 = vpop.f32.mrb[0].mxu0
        %1256 = vdwg.mxu0
        %v1257 = vadd.f32 %v1089, %v1252
        %1258 = vrot.lane.b32.xlu0 %v1090, 120
        %v1259 = vpop.permute.xlu0 %1258
        %1260 = vrot.lane.b32.xlu0 %v1090, 88
        %v1261 = vpop.permute.xlu0 %1260
        %v1263 = vsel %vm1094, %v1259, 0
        %v1266 = vsel %vm1094, %v1261, 0
        %1268 = vmatprep.subr.bf16.mxu0 0
        %1269 = vmatpush1.bf16.xpose.msra.mxu0 %v1266
        %1270 = vmatprep.subr.bf16.mxu0 0
        %1271 = vmatpush1.bf16.xpose.msra.mxu0 0
        %1272 = vmatprep.subr.bf16.mxu0 0
        %1273 = vmatpush1.bf16.xpose.msra.mxu0 0
        %1274 = vmatprep.subr.bf16.mxu0 0
        %1275 = vmatpush1.bf16.xpose.msra.mxu0 0
        %1276 = vmatprep.subr.bf16.mxu0 0
        %1277 = vmatpush1.bf16.xpose.msra.mxu0 0
        %1278 = vmatprep.subr.bf16.mxu0 0
        %1279 = vmatpush1.bf16.xpose.msra.mxu0 0
        %1280 = vmatprep.subr.bf16.mxu0 0
        %1281 = vmatpush1.bf16.xpose.msra.mxu0 0
        %1282 = vmatprep.subr.bf16.mxu0 0
        %1283 = vmatpush1.bf16.xpose.msra.mxu0 0
        %1284 = vmatprep.subr.bf16.mxu0 0
        %1285 = vmatpush1.bf16.xpose.msra.mxu0 0
        %1286 = vmatprep.subr.bf16.mxu0 0
        %1287 = vmatpush1.bf16.xpose.msra.mxu0 0
        %1288 = vmatprep.subr.bf16.mxu0 0
        %1289 = vmatpush1.bf16.xpose.msra.mxu0 0
        %1290 = vmatprep.subr.bf16.mxu0 0
        %1291 = vmatpush1.bf16.xpose.msra.mxu0 0
        %1292 = vmatprep.subr.bf16.mxu0 0
        %1293 = vmatpush1.bf16.xpose.msra.mxu0 0
        %1294 = vmatprep.subr.bf16.mxu0 0
        %1295 = vmatpush1.bf16.xpose.msra.mxu0 0
        %1296 = vmatprep.subr.bf16.mxu0 0
        %1297 = vmatpush1.bf16.xpose.msra.mxu0 0
        %1298 = vmatprep.subr.bf16.mxu0 0
        %1299 = vmatpush1.bf16.xpose.msra.mxu0 0
        %1300 = vmatprep.mubr.bf16.mxu0 0
        %1301 = vmatmul.mubr.bf16.gmra.mrb[0].mxu0 %v1263
        %v1302 = vpop.f32.mrb[0].mxu0
        %v1303 = vadd.f32 0.0, %v1302
        %v1304 = vpop.f32.mrb[0].mxu0
        %v1305 = vpop.f32.mrb[0].mxu0
        %v1306 = vpop.f32.mrb[0].mxu0
        %1307 = vdwg.mxu0
        %v1308 = vsel %vm1146, %v1303, -1e+30
        %v1309 = vsel %vm1094, %v1308, -inf
        %1310 = vmax.xlane.f32.xlu0 %v1309
        %v1311 = vpop.xlane.xlu0 %1310
        %v1312 = vsub.f32 %v1308, %v1311
        %v1313 = vmul.f32 %v1312, 1.442695
        %v1314 = vpow.pop %v1313
        %v1315 = vsel %vm1094, %v1314, 0.0
        %1316 = vadd.xlane.f32.xlu0 %v1315
        %v1317 = vpop.xlane.xlu0 %1316
        %v1318 = vrcp.pop %v1317
        %v1319 = vmul.f32 %v1314, %v1318
        %v1320 = vpack.c.bf16 %v1319, %v1319
        %1321 = vrot.lane.b32.xlu0 %v1090, 56
        %v1322 = vpop.permute.xlu0 %1321
        %v1324 = vsel %vm1094, %v1320, 0
        %v1327 = vsel %vm1165, %v1322, 0
        %1329 = vmatprep.subr.bf16.mxu0 0
        %1330 = vmatpush1.bf16.msra.mxu0 %v1327
        %1331 = vmatprep.subr.bf16.mxu0 0
        %1332 = vmatpush1.bf16.msra.mxu0 0
        %1333 = vmatprep.subr.bf16.mxu0 0
        %1334 = vmatpush1.bf16.msra.mxu0 0
        %1335 = vmatprep.subr.bf16.mxu0 0
        %1336 = vmatpush1.bf16.msra.mxu0 0
        %1337 = vmatprep.subr.bf16.mxu0 0
        %1338 = vmatpush1.bf16.msra.mxu0 0
        %1339 = vmatprep.subr.bf16.mxu0 0
        %1340 = vmatpush1.bf16.msra.mxu0 0
        %1341 = vmatprep.subr.bf16.mxu0 0
        %1342 = vmatpush1.bf16.msra.mxu0 0
        %1343 = vmatprep.subr.bf16.mxu0 0
        %1344 = vmatpush1.bf16.msra.mxu0 0
        %1345 = vmatprep.subr.bf16.mxu0 0
        %1346 = vmatpush1.bf16.msra.mxu0 0
        %1347 = vmatprep.subr.bf16.mxu0 0
        %1348 = vmatpush1.bf16.msra.mxu0 0
        %1349 = vmatprep.subr.bf16.mxu0 0
        %1350 = vmatpush1.bf16.msra.mxu0 0
        %1351 = vmatprep.subr.bf16.mxu0 0
        %1352 = vmatpush1.bf16.msra.mxu0 0
        %1353 = vmatprep.subr.bf16.mxu0 0
        %1354 = vmatpush1.bf16.msra.mxu0 0
        %1355 = vmatprep.subr.bf16.mxu0 0
        %1356 = vmatpush1.bf16.msra.mxu0 0
        %1357 = vmatprep.subr.bf16.mxu0 0
        %1358 = vmatpush1.bf16.msra.mxu0 0
        %1359 = vmatprep.subr.bf16.mxu0 0
        %1360 = vmatpush1.bf16.msra.mxu0 0
        %1361 = vmatprep.mubr.bf16.mxu0 0
        %1362 = vmatmul.mubr.bf16.gmra.mrb[0].mxu0 %v1324
        %v1363 = vpop.f32.mrb[0].mxu0
        %v1364 = vadd.f32 0.0, %v1363
        %v1365 = vpop.f32.mrb[0].mxu0
        %v1366 = vpop.f32.mrb[0].mxu0
        %v1367 = vpop.f32.mrb[0].mxu0
        %1368 = vdwg.mxu0
        %v1369 = vpack.c.bf16 %v1364, %v1364
        %v1370 = vpack.c.bf16 %v1078, %v1078
        %v1372 = vsel %vm1094, %v1369, 0
        %v1375 = vsel %vm1165, %v1370, 0
        %1377 = vmatprep.subr.bf16.mxu0 0
        %1378 = vmatpush1.bf16.msra.mxu0 %v1375
        %1379 = vmatprep.subr.bf16.mxu0 0
        %1380 = vmatpush1.bf16.msra.mxu0 0
        %1381 = vmatprep.subr.bf16.mxu0 0
        %1382 = vmatpush1.bf16.msra.mxu0 0
        %1383 = vmatprep.subr.bf16.mxu0 0
        %1384 = vmatpush1.bf16.msra.mxu0 0
        %1385 = vmatprep.subr.bf16.mxu0 0
        %1386 = vmatpush1.bf16.msra.mxu0 0
        %1387 = vmatprep.subr.bf16.mxu0 0
        %1388 = vmatpush1.bf16.msra.mxu0 0
        %1389 = vmatprep.subr.bf16.mxu0 0
        %1390 = vmatpush1.bf16.msra.mxu0 0
        %1391 = vmatprep.subr.bf16.mxu0 0
        %1392 = vmatpush1.bf16.msra.mxu0 0
        %1393 = vmatprep.subr.bf16.mxu0 0
        %1394 = vmatpush1.bf16.msra.mxu0 0
        %1395 = vmatprep.subr.bf16.mxu0 0
        %1396 = vmatpush1.bf16.msra.mxu0 0
        %1397 = vmatprep.subr.bf16.mxu0 0
        %1398 = vmatpush1.bf16.msra.mxu0 0
        %1399 = vmatprep.subr.bf16.mxu0 0
        %1400 = vmatpush1.bf16.msra.mxu0 0
        %1401 = vmatprep.subr.bf16.mxu0 0
        %1402 = vmatpush1.bf16.msra.mxu0 0
        %1403 = vmatprep.subr.bf16.mxu0 0
        %1404 = vmatpush1.bf16.msra.mxu0 0
        %1405 = vmatprep.subr.bf16.mxu0 0
        %1406 = vmatpush1.bf16.msra.mxu0 0
        %1407 = vmatprep.subr.bf16.mxu0 0
        %1408 = vmatpush1.bf16.msra.mxu0 0
        %1409 = vmatprep.mubr.bf16.mxu0 0
        %1410 = vmatmul.mubr.bf16.gmra.mrb[0].mxu0 %v1372
        %v1411 = vpop.f32.mrb[0].mxu0
        %v1412 = vadd.f32 0.0, %v1411
        %v1413 = vpop.f32.mrb[0].mxu0
        %v1414 = vpop.f32.mrb[0].mxu0
        %v1415 = vpop.f32.mrb[0].mxu0
        %1416 = vdwg.mxu0
        %v1417 = vadd.f32 %v1257, %v1412
        %1418 = vrot.lane.b32.xlu0 %v1090, 112
        %v1419 = vpop.permute.xlu0 %1418
        %1420 = vrot.lane.b32.xlu0 %v1090, 80
        %v1421 = vpop.permute.xlu0 %1420
        %v1423 = vsel %vm1094, %v1419, 0
        %v1426 = vsel %vm1094, %v1421, 0
        %1428 = vmatprep.subr.bf16.mxu0 0
        %1429 = vmatpush1.bf16.xpose.msra.mxu0 %v1426
        %1430 = vmatprep.subr.bf16.mxu0 0
        %1431 = vmatpush1.bf16.xpose.msra.mxu0 0
        %1432 = vmatprep.subr.bf16.mxu0 0
        %1433 = vmatpush1.bf16.xpose.msra.mxu0 0
        %1434 = vmatprep.subr.bf16.mxu0 0
        %1435 = vmatpush1.bf16.xpose.msra.mxu0 0
        %1436 = vmatprep.subr.bf16.mxu0 0
        %1437 = vmatpush1.bf16.xpose.msra.mxu0 0
        %1438 = vmatprep.subr.bf16.mxu0 0
        %1439 = vmatpush1.bf16.xpose.msra.mxu0 0
        %1440 = vmatprep.subr.bf16.mxu0 0
        %1441 = vmatpush1.bf16.xpose.msra.mxu0 0
        %1442 = vmatprep.subr.bf16.mxu0 0
        %1443 = vmatpush1.bf16.xpose.msra.mxu0 0
        %1444 = vmatprep.subr.bf16.mxu0 0
        %1445 = vmatpush1.bf16.xpose.msra.mxu0 0
        %1446 = vmatprep.subr.bf16.mxu0 0
        %1447 = vmatpush1.bf16.xpose.msra.mxu0 0
        %1448 = vmatprep.subr.bf16.mxu0 0
        %1449 = vmatpush1.bf16.xpose.msra.mxu0 0
        %1450 = vmatprep.subr.bf16.mxu0 0
        %1451 = vmatpush1.bf16.xpose.msra.mxu0 0
        %1452 = vmatprep.subr.bf16.mxu0 0
        %1453 = vmatpush1.bf16.xpose.msra.mxu0 0
        %1454 = vmatprep.subr.bf16.mxu0 0
        %1455 = vmatpush1.bf16.xpose.msra.mxu0 0
        %1456 = vmatprep.subr.bf16.mxu0 0
        %1457 = vmatpush1.bf16.xpose.msra.mxu0 0
        %1458 = vmatprep.subr.bf16.mxu0 0
        %1459 = vmatpush1.bf16.xpose.msra.mxu0 0
        %1460 = vmatprep.mubr.bf16.mxu0 0
        %1461 = vmatmul.mubr.bf16.gmra.mrb[0].mxu0 %v1423
        %v1462 = vpop.f32.mrb[0].mxu0
        %v1463 = vadd.f32 0.0, %v1462
        %v1464 = vpop.f32.mrb[0].mxu0
        %v1465 = vpop.f32.mrb[0].mxu0
        %v1466 = vpop.f32.mrb[0].mxu0
        %1467 = vdwg.mxu0
        %v1468 = vsel %vm1146, %v1463, -1e+30
        %v1469 = vsel %vm1094, %v1468, -inf
        %1470 = vmax.xlane.f32.xlu0 %v1469
        %v1471 = vpop.xlane.xlu0 %1470
        %v1472 = vsub.f32 %v1468, %v1471
        %v1473 = vmul.f32 %v1472, 1.442695
        %v1474 = vpow.pop %v1473
        %v1475 = vsel %vm1094, %v1474, 0.0
        %1476 = vadd.xlane.f32.xlu0 %v1475
        %v1477 = vpop.xlane.xlu0 %1476
        %v1478 = vrcp.pop %v1477
        %v1479 = vmul.f32 %v1474, %v1478
        %v1480 = vpack.c.bf16 %v1479, %v1479
        %1481 = vrot.lane.b32.xlu0 %v1090, 48
        %v1482 = vpop.permute.xlu0 %1481
        %v1484 = vsel %vm1094, %v1480, 0
        %v1487 = vsel %vm1165, %v1482, 0
        %1489 = vmatprep.subr.bf16.mxu0 0
        %1490 = vmatpush1.bf16.msra.mxu0 %v1487
        %1491 = vmatprep.subr.bf16.mxu0 0
        %1492 = vmatpush1.bf16.msra.mxu0 0
        %1493 = vmatprep.subr.bf16.mxu0 0
        %1494 = vmatpush1.bf16.msra.mxu0 0
        %1495 = vmatprep.subr.bf16.mxu0 0
        %1496 = vmatpush1.bf16.msra.mxu0 0
        %1497 = vmatprep.subr.bf16.mxu0 0
        %1498 = vmatpush1.bf16.msra.mxu0 0
        %1499 = vmatprep.subr.bf16.mxu0 0
        %1500 = vmatpush1.bf16.msra.mxu0 0
        %1501 = vmatprep.subr.bf16.mxu0 0
        %1502 = vmatpush1.bf16.msra.mxu0 0
        %1503 = vmatprep.subr.bf16.mxu0 0
        %1504 = vmatpush1.bf16.msra.mxu0 0
        %1505 = vmatprep.subr.bf16.mxu0 0
        %1506 = vmatpush1.bf16.msra.mxu0 0
        %1507 = vmatprep.subr.bf16.mxu0 0
        %1508 = vmatpush1.bf16.msra.mxu0 0
        %1509 = vmatprep.subr.bf16.mxu0 0
        %1510 = vmatpush1.bf16.msra.mxu0 0
        %1511 = vmatprep.subr.bf16.mxu0 0
        %1512 = vmatpush1.bf16.msra.mxu0 0
        %1513 = vmatprep.subr.bf16.mxu0 0
        %1514 = vmatpush1.bf16.msra.mxu0 0
        %1515 = vmatprep.subr.bf16.mxu0 0
        %1516 = vmatpush1.bf16.msra.mxu0 0
        %1517 = vmatprep.subr.bf16.mxu0 0
        %1518 = vmatpush1.bf16.msra.mxu0 0
        %1519 = vmatprep.subr.bf16.mxu0 0
        %1520 = vmatpush1.bf16.msra.mxu0 0
        %1521 = vmatprep.mubr.bf16.mxu0 0
        %1522 = vmatmul.mubr.bf16.gmra.mrb[0].mxu0 %v1484
        %v1523 = vpop.f32.mrb[0].mxu0
        %v1524 = vadd.f32 0.0, %v1523
        %v1525 = vpop.f32.mrb[0].mxu0
        %v1526 = vpop.f32.mrb[0].mxu0
        %v1527 = vpop.f32.mrb[0].mxu0
        %1528 = vdwg.mxu0
        %v1529 = vpack.c.bf16 %v1524, %v1524
        %v1530 = vpack.c.bf16 %v1079, %v1079
        %v1532 = vsel %vm1094, %v1529, 0
        %v1535 = vsel %vm1165, %v1530, 0
        %1537 = vmatprep.subr.bf16.mxu0 0
        %1538 = vmatpush1.bf16.msra.mxu0 %v1535
        %1539 = vmatprep.subr.bf16.mxu0 0
        %1540 = vmatpush1.bf16.msra.mxu0 0
        %1541 = vmatprep.subr.bf16.mxu0 0
        %1542 = vmatpush1.bf16.msra.mxu0 0
        %1543 = vmatprep.subr.bf16.mxu0 0
        %1544 = vmatpush1.bf16.msra.mxu0 0
        %1545 = vmatprep.subr.bf16.mxu0 0
        %1546 = vmatpush1.bf16.msra.mxu0 0
        %1547 = vmatprep.subr.bf16.mxu0 0
        %1548 = vmatpush1.bf16.msra.mxu0 0
        %1549 = vmatprep.subr.bf16.mxu0 0
        %1550 = vmatpush1.bf16.msra.mxu0 0
        %1551 = vmatprep.subr.bf16.mxu0 0
        %1552 = vmatpush1.bf16.msra.mxu0 0
        %1553 = vmatprep.subr.bf16.mxu0 0
        %1554 = vmatpush1.bf16.msra.mxu0 0
        %1555 = vmatprep.subr.bf16.mxu0 0
        %1556 = vmatpush1.bf16.msra.mxu0 0
        %1557 = vmatprep.subr.bf16.mxu0 0
        %1558 = vmatpush1.bf16.msra.mxu0 0
        %1559 = vmatprep.subr.bf16.mxu0 0
        %1560 = vmatpush1.bf16.msra.mxu0 0
        %1561 = vmatprep.subr.bf16.mxu0 0
        %1562 = vmatpush1.bf16.msra.mxu0 0
        %1563 = vmatprep.subr.bf16.mxu0 0
        %1564 = vmatpush1.bf16.msra.mxu0 0
        %1565 = vmatprep.subr.bf16.mxu0 0
        %1566 = vmatpush1.bf16.msra.mxu0 0
        %1567 = vmatprep.subr.bf16.mxu0 0
        %1568 = vmatpush1.bf16.msra.mxu0 0
        %1569 = vmatprep.mubr.bf16.mxu0 0
        %1570 = vmatmul.mubr.bf16.gmra.mrb[0].mxu0 %v1532
        %v1571 = vpop.f32.mrb[0].mxu0
        %v1572 = vadd.f32 0.0, %v1571
        %v1573 = vpop.f32.mrb[0].mxu0
        %v1574 = vpop.f32.mrb[0].mxu0
        %v1575 = vpop.f32.mrb[0].mxu0
        %1576 = vdwg.mxu0
        %v1577 = vadd.f32 %v1417, %v1572
        %1578 = vrot.lane.b32.xlu0 %v1090, 104
        %v1579 = vpop.permute.xlu0 %1578
        %1580 = vrot.lane.b32.xlu0 %v1090, 72
        %v1581 = vpop.permute.xlu0 %1580
        %v1583 = vsel %vm1094, %v1579, 0
        %v1586 = vsel %vm1094, %v1581, 0
        %1588 = vmatprep.subr.bf16.mxu0 0
        %1589 = vmatpush1.bf16.xpose.msra.mxu0 %v1586
        %1590 = vmatprep.subr.bf16.mxu0 0
        %1591 = vmatpush1.bf16.xpose.msra.mxu0 0
        %1592 = vmatprep.subr.bf16.mxu0 0
        %1593 = vmatpush1.bf16.xpose.msra.mxu0 0
        %1594 = vmatprep.subr.bf16.mxu0 0
        %1595 = vmatpush1.bf16.xpose.msra.mxu0 0
        %1596 = vmatprep.subr.bf16.mxu0 0
        %1597 = vmatpush1.bf16.xpose.msra.mxu0 0
        %1598 = vmatprep.subr.bf16.mxu0 0
        %1599 = vmatpush1.bf16.xpose.msra.mxu0 0
        %1600 = vmatprep.subr.bf16.mxu0 0
        %1601 = vmatpush1.bf16.xpose.msra.mxu0 0
        %1602 = vmatprep.subr.bf16.mxu0 0
        %1603 = vmatpush1.bf16.xpose.msra.mxu0 0
        %1604 = vmatprep.subr.bf16.mxu0 0
        %1605 = vmatpush1.bf16.xpose.msra.mxu0 0
        %1606 = vmatprep.subr.bf16.mxu0 0
        %1607 = vmatpush1.bf16.xpose.msra.mxu0 0
        %1608 = vmatprep.subr.bf16.mxu0 0
        %1609 = vmatpush1.bf16.xpose.msra.mxu0 0
        %1610 = vmatprep.subr.bf16.mxu0 0
        %1611 = vmatpush1.bf16.xpose.msra.mxu0 0
        %1612 = vmatprep.subr.bf16.mxu0 0
        %1613 = vmatpush1.bf16.xpose.msra.mxu0 0
        %1614 = vmatprep.subr.bf16.mxu0 0
        %1615 = vmatpush1.bf16.xpose.msra.mxu0 0
        %1616 = vmatprep.subr.bf16.mxu0 0
        %1617 = vmatpush1.bf16.xpose.msra.mxu0 0
        %1618 = vmatprep.subr.bf16.mxu0 0
        %1619 = vmatpush1.bf16.xpose.msra.mxu0 0
        %1620 = vmatprep.mubr.bf16.mxu0 0
        %1621 = vmatmul.mubr.bf16.gmra.mrb[0].mxu0 %v1583
        %v1622 = vpop.f32.mrb[0].mxu0
        %v1623 = vadd.f32 0.0, %v1622
        %v1624 = vpop.f32.mrb[0].mxu0
        %v1625 = vpop.f32.mrb[0].mxu0
        %v1626 = vpop.f32.mrb[0].mxu0
        %1627 = vdwg.mxu0
        %v1628 = vsel %vm1146, %v1623, -1e+30
        %v1629 = vsel %vm1094, %v1628, -inf
        %1630 = vmax.xlane.f32.xlu0 %v1629
        %v1631 = vpop.xlane.xlu0 %1630
        %v1632 = vsub.f32 %v1628, %v1631
        %v1633 = vmul.f32 %v1632, 1.442695
        %v1634 = vpow.pop %v1633
        %v1635 = vsel %vm1094, %v1634, 0.0
        %1636 = vadd.xlane.f32.xlu0 %v1635
        %v1637 = vpop.xlane.xlu0 %1636
        %v1638 = vrcp.pop %v1637
        %v1639 = vmul.f32 %v1634, %v1638
        %v1640 = vpack.c.bf16 %v1639, %v1639
        %1641 = vrot.lane.b32.xlu0 %v1090, 40
        %v1642 = vpop.permute.xlu0 %1641
        %v1644 = vsel %vm1094, %v1640, 0
        %v1647 = vsel %vm1165, %v1642, 0
        %1649 = vmatprep.subr.bf16.mxu0 0
        %1650 = vmatpush1.bf16.msra.mxu0 %v1647
        %1651 = vmatprep.subr.bf16.mxu0 0
        %1652 = vmatpush1.bf16.msra.mxu0 0
        %1653 = vmatprep.subr.bf16.mxu0 0
        %1654 = vmatpush1.bf16.msra.mxu0 0
        %1655 = vmatprep.subr.bf16.mxu0 0
        %1656 = vmatpush1.bf16.msra.mxu0 0
        %1657 = vmatprep.subr.bf16.mxu0 0
        %1658 = vmatpush1.bf16.msra.mxu0 0
        %1659 = vmatprep.subr.bf16.mxu0 0
        %1660 = vmatpush1.bf16.msra.mxu0 0
        %1661 = vmatprep.subr.bf16.mxu0 0
        %1662 = vmatpush1.bf16.msra.mxu0 0
        %1663 = vmatprep.subr.bf16.mxu0 0
        %1664 = vmatpush1.bf16.msra.mxu0 0
        %1665 = vmatprep.subr.bf16.mxu0 0
        %1666 = vmatpush1.bf16.msra.mxu0 0
        %1667 = vmatprep.subr.bf16.mxu0 0
        %1668 = vmatpush1.bf16.msra.mxu0 0
        %1669 = vmatprep.subr.bf16.mxu0 0
        %1670 = vmatpush1.bf16.msra.mxu0 0
        %1671 = vmatprep.subr.bf16.mxu0 0
        %1672 = vmatpush1.bf16.msra.mxu0 0
        %1673 = vmatprep.subr.bf16.mxu0 0
        %1674 = vmatpush1.bf16.msra.mxu0 0
        %1675 = vmatprep.subr.bf16.mxu0 0
        %1676 = vmatpush1.bf16.msra.mxu0 0
        %1677 = vmatprep.subr.bf16.mxu0 0
        %1678 = vmatpush1.bf16.msra.mxu0 0
        %1679 = vmatprep.subr.bf16.mxu0 0
        %1680 = vmatpush1.bf16.msra.mxu0 0
        %1681 = vmatprep.mubr.bf16.mxu0 0
        %1682 = vmatmul.mubr.bf16.gmra.mrb[0].mxu0 %v1644
        %v1683 = vpop.f32.mrb[0].mxu0
        %v1684 = vadd.f32 0.0, %v1683
        %v1685 = vpop.f32.mrb[0].mxu0
        %v1686 = vpop.f32.mrb[0].mxu0
        %v1687 = vpop.f32.mrb[0].mxu0
        %1688 = vdwg.mxu0
        %v1689 = vpack.c.bf16 %v1684, %v1684
        %v1690 = vpack.c.bf16 %v1080, %v1080
        %v1692 = vsel %vm1094, %v1689, 0
        %v1695 = vsel %vm1165, %v1690, 0
        %1697 = vmatprep.subr.bf16.mxu0 0
        %1698 = vmatpush1.bf16.msra.mxu0 %v1695
        %1699 = vmatprep.subr.bf16.mxu0 0
        %1700 = vmatpush1.bf16.msra.mxu0 0
        %1701 = vmatprep.subr.bf16.mxu0 0
        %1702 = vmatpush1.bf16.msra.mxu0 0
        %1703 = vmatprep.subr.bf16.mxu0 0
        %1704 = vmatpush1.bf16.msra.mxu0 0
        %1705 = vmatprep.subr.bf16.mxu0 0
        %1706 = vmatpush1.bf16.msra.mxu0 0
        %1707 = vmatprep.subr.bf16.mxu0 0
        %1708 = vmatpush1.bf16.msra.mxu0 0
        %1709 = vmatprep.subr.bf16.mxu0 0
        %1710 = vmatpush1.bf16.msra.mxu0 0
        %1711 = vmatprep.subr.bf16.mxu0 0
        %1712 = vmatpush1.bf16.msra.mxu0 0
        %1713 = vmatprep.subr.bf16.mxu0 0
        %1714 = vmatpush1.bf16.msra.mxu0 0
        %1715 = vmatprep.subr.bf16.mxu0 0
        %1716 = vmatpush1.bf16.msra.mxu0 0
        %1717 = vmatprep.subr.bf16.mxu0 0
        %1718 = vmatpush1.bf16.msra.mxu0 0
        %1719 = vmatprep.subr.bf16.mxu0 0
        %1720 = vmatpush1.bf16.msra.mxu0 0
        %1721 = vmatprep.subr.bf16.mxu0 0
        %1722 = vmatpush1.bf16.msra.mxu0 0
        %1723 = vmatprep.subr.bf16.mxu0 0
        %1724 = vmatpush1.bf16.msra.mxu0 0
        %1725 = vmatprep.subr.bf16.mxu0 0
        %1726 = vmatpush1.bf16.msra.mxu0 0
        %1727 = vmatprep.subr.bf16.mxu0 0
        %1728 = vmatpush1.bf16.msra.mxu0 0
        %1729 = vmatprep.mubr.bf16.mxu0 0
        %1730 = vmatmul.mubr.bf16.gmra.mrb[0].mxu0 %v1692
        %v1731 = vpop.f32.mrb[0].mxu0
        %v1732 = vadd.f32 0.0, %v1731
        %v1733 = vpop.f32.mrb[0].mxu0
        %v1734 = vpop.f32.mrb[0].mxu0
        %v1735 = vpop.f32.mrb[0].mxu0
        %1736 = vdwg.mxu0
        %v1737 = vadd.f32 %v1577, %v1732
        %v1738 = vld [vmem:[%s897] sm:$0x1]
        %v1739 = vld [vmem:[%s9] sm:$0xff]
        %v1740 = vld [vmem:[%s9 + $0x8] sm:$0xff]
        %v1741 = vld [vmem:[%s9 + $0x10] sm:$0xff]
        %v1742 = vld [vmem:[%s9 + $0x18] sm:$0xff]
        %v1743 = vld [vmem:[%s10] sm:$0x1]
        %v1744 = vxor.u32 %v1738, 2147483648
        %v1745 = vmul.f32 %v1744, 1.442695
        %v1746 = vpow.pop %v1745
        %v1747 = vadd.f32 %v1746, 1.0
        %v1748 = vrcp.pop %v1747
        %v1749 = vmul.f32 1.0, %v1748
        %v1750 = vmul.f32 %v1738, %v1749
        %v1752 = vsel %vm916, %v1750, 0
        %1754 = vmatprep.subr.mxu0 0.0
        %1755 = vmatpush1.msra.mxu0 %v1739
        %1756 = vmatprep.subr.mxu0 0.0
        %1757 = vmatpush1.msra.mxu0 %v1740
        %1758 = vmatprep.subr.mxu0 0.0
        %1759 = vmatpush1.msra.mxu0 %v1741
        %1760 = vmatprep.subr.mxu0 0.0
        %1761 = vmatpush1.msra.mxu0 %v1742
        %1762 = vmatprep.subr.mxu0 0.0
        %1763 = vmatpush1.msra.mxu0 0.0
        %1764 = vmatprep.subr.mxu0 0.0
        %1765 = vmatpush1.msra.mxu0 0.0
        %1766 = vmatprep.subr.mxu0 0.0
        %1767 = vmatpush1.msra.mxu0 0.0
        %1768 = vmatprep.subr.mxu0 0.0
        %1769 = vmatpush1.msra.mxu0 0.0
        %1770 = vmatprep.subr.mxu0 0.0
        %1771 = vmatpush1.msra.mxu0 0.0
        %1772 = vmatprep.subr.mxu0 0.0
        %1773 = vmatpush1.msra.mxu0 0.0
        %1774 = vmatprep.subr.mxu0 0.0
        %1775 = vmatpush1.msra.mxu0 0.0
        %1776 = vmatprep.subr.mxu0 0.0
        %1777 = vmatpush1.msra.mxu0 0.0
        %1778 = vmatprep.subr.mxu0 0.0
        %1779 = vmatpush1.msra.mxu0 0.0
        %1780 = vmatprep.subr.mxu0 0.0
        %1781 = vmatpush1.msra.mxu0 0.0
        %1782 = vmatprep.subr.mxu0 0.0
        %1783 = vmatpush1.msra.mxu0 0.0
        %1784 = vmatprep.subr.mxu0 0.0
        %1785 = vmatpush1.msra.mxu0 0.0
        %1786 = vmatprep.subr.mxu0 0.0
        %1787 = vmatpush1.msra.mxu0 0.0
        %1788 = vmatprep.subr.mxu0 0.0
        %1789 = vmatpush1.msra.mxu0 0.0
        %1790 = vmatprep.subr.mxu0 0.0
        %1791 = vmatpush1.msra.mxu0 0.0
        %1792 = vmatprep.subr.mxu0 0.0
        %1793 = vmatpush1.msra.mxu0 0.0
        %1794 = vmatprep.subr.mxu0 0.0
        %1795 = vmatpush1.msra.mxu0 0.0
        %1796 = vmatprep.subr.mxu0 0.0
        %1797 = vmatpush1.msra.mxu0 0.0
        %1798 = vmatprep.subr.mxu0 0.0
        %1799 = vmatpush1.msra.mxu0 0.0
        %1800 = vmatprep.subr.mxu0 0.0
        %1801 = vmatpush1.msra.mxu0 0.0
        %1802 = vmatprep.subr.mxu0 0.0
        %1803 = vmatpush1.msra.mxu0 0.0
        %1804 = vmatprep.subr.mxu0 0.0
        %1805 = vmatpush1.msra.mxu0 0.0
        %1806 = vmatprep.subr.mxu0 0.0
        %1807 = vmatpush1.msra.mxu0 0.0
        %1808 = vmatprep.subr.mxu0 0.0
        %1809 = vmatpush1.msra.mxu0 0.0
        %1810 = vmatprep.subr.mxu0 0.0
        %1811 = vmatpush1.msra.mxu0 0.0
        %1812 = vmatprep.subr.mxu0 0.0
        %1813 = vmatpush1.msra.mxu0 0.0
        %1814 = vmatprep.subr.mxu0 0.0
        %1815 = vmatpush1.msra.mxu0 0.0
        %1816 = vmatprep.subr.mxu0 0.0
        %1817 = vmatpush1.msra.mxu0 0.0
        %1818 = vmatprep.mubr.f32.mxu0 0.0
        %1819 = vmatmul.mubr.f32.gmra.mrb[0].mxu0 %v1752
        %v1820 = vpop.f32.mrb[0].mxu0
        %v1821 = vadd.f32 %v1743, %v1820
        %v1822 = vpop.f32.mrb[0].mxu0
        %1823 = vdwg.mxu0
        %v1824 = vsel %vm916, %v1737, 0.0
        %1825 = vadd.xlane.f32.xlu0 %v1824
        %v1826 = vpop.xlane.xlu0 %1825
        %v1827 = vmul.f32 %v1826, %v993
        %v1828 = vsub.f32 %v1737, %v1827
        %v1829 = vmul.f32 %v1828, %v1828
        %v1830 = vsel %vm916, %v1829, 0.0
        %1831 = vadd.xlane.f32.xlu0 %v1830
        %v1832 = vpop.xlane.xlu0 %1831
        %v1833 = vmul.f32 %v1832, %v993
        %v1834 = vadd.f32 %v1833, 1e-05
        %v1835 = vrsqrt.pop %v1834
        %v1836 = vmul.f32 %v1828, %v1835
        %v1837 = vadd.f32 %v1821, 1.0
        %v1838 = vlaneseq
        %v1839 = vshrl.u32 %v1838, 7
        %v1840 = vsub.s32 0, %v1839
        %v1841 = vrot.slane %v1837, %v1840
        %v1842 = vmul.f32 %v1836, %v1841
        %v1843 = vlaneseq
        %v1844 = vshrl.u32 %v1843, 7
        %v1845 = vsub.s32 0, %v1844
        %v1846 = vrot.slane %v1821, %v1845
        %1848 = vrot.lane.b32.xlu0 %v1846, 96
        %v1849 = vpop.permute.xlu0 %1848
        %v1851 = vadd.f32 %v1842, %v1849
        %v1852 = vld [vmem:[%s17] sm:$0xff]
        %v1853 = vld [vmem:[%s17 + $0x8] sm:$0xff]
        %v1854 = vld [vmem:[%s17 + $0x10] sm:$0xff]
        %v1855 = vld [vmem:[%s17 + $0x18] sm:$0xff]
        %v1856 = vld [vmem:[%s18] sm:$0x1]
        %v1857 = vpack.c.bf16 %v1851, %v1851
        %v1858 = vpack.c.bf16 %v1853, %v1852
        %v1859 = vpack.c.bf16 %v1855, %v1854
        %v1861 = vlaneseq
        %v1862 = vshrl.u32 %v1861, 7
        %v1863 = vsub.s32 0, %v1862
        %v1864 = vrot.slane %v1856, %v1863
        %v1867 = vsel %vm916, %v1857, 0
        %1869 = vmatprep.subr.bf16.mxu0 0
        %1870 = vmatpush1.bf16.msra.mxu0 %v1858
        %1871 = vmatprep.subr.bf16.mxu0 0
        %1872 = vmatpush1.bf16.msra.mxu0 %v1859
        %1873 = vmatprep.subr.bf16.mxu0 0
        %1874 = vmatpush1.bf16.msra.mxu0 0
        %1875 = vmatprep.subr.bf16.mxu0 0
        %1876 = vmatpush1.bf16.msra.mxu0 0
        %1877 = vmatprep.subr.bf16.mxu0 0
        %1878 = vmatpush1.bf16.msra.mxu0 0
        %1879 = vmatprep.subr.bf16.mxu0 0
        %1880 = vmatpush1.bf16.msra.mxu0 0
        %1881 = vmatprep.subr.bf16.mxu0 0
        %1882 = vmatpush1.bf16.msra.mxu0 0
        %1883 = vmatprep.subr.bf16.mxu0 0
        %1884 = vmatpush1.bf16.msra.mxu0 0
        %1885 = vmatprep.subr.bf16.mxu0 0
        %1886 = vmatpush1.bf16.msra.mxu0 0
        %1887 = vmatprep.subr.bf16.mxu0 0
        %1888 = vmatpush1.bf16.msra.mxu0 0
        %1889 = vmatprep.subr.bf16.mxu0 0
        %1890 = vmatpush1.bf16.msra.mxu0 0
        %1891 = vmatprep.subr.bf16.mxu0 0
        %1892 = vmatpush1.bf16.msra.mxu0 0
        %1893 = vmatprep.subr.bf16.mxu0 0
        %1894 = vmatpush1.bf16.msra.mxu0 0
        %1895 = vmatprep.subr.bf16.mxu0 0
        %1896 = vmatpush1.bf16.msra.mxu0 0
        %1897 = vmatprep.subr.bf16.mxu0 0
        %1898 = vmatpush1.bf16.msra.mxu0 0
        %1899 = vmatprep.subr.bf16.mxu0 0
        %1900 = vmatpush1.bf16.msra.mxu0 0
        %1901 = vmatprep.mubr.bf16.mxu0 0
        %1902 = vmatmul.mubr.bf16.gmra.mrb[0].mxu0 %v1867
        %v1903 = vpop.f32.mrb[0].mxu0
        %v1904 = vadd.f32 %v1864, %v1903
        %v1905 = vpop.f32.mrb[0].mxu0
        %v1906 = vpop.f32.mrb[0].mxu0
        %v1907 = vpop.f32.mrb[0].mxu0
        %1908 = vdwg.mxu0
        %v1909 = vld [vmem:[%s885] sm:$0xff]
        %v1910 = vld [vmem:[%s19] sm:$0xff]
        %v1911 = vld [vmem:[%s19 + $0x8] sm:$0xff]
        %v1912 = vld [vmem:[%s19 + $0x10] sm:$0xff]
        %v1913 = vld [vmem:[%s19 + $0x18] sm:$0xff]
        %v1914 = vld [vmem:[%s20] sm:$0x1]
        %v1915 = vpack.c.bf16 %v1909, %v1909
        %v1916 = vpack.c.bf16 %v1911, %v1910
        %v1917 = vpack.c.bf16 %v1913, %v1912
        %v1919 = vlaneseq
        %v1920 = vshrl.u32 %v1919, 7
        %v1921 = vsub.s32 0, %v1920
        %v1922 = vrot.slane %v1914, %v1921
        %v1925 = vsel %vm916, %v1915, 0
        %1927 = vmatprep.subr.bf16.mxu0 0
        %1928 = vmatpush1.bf16.msra.mxu0 %v1916
        %1929 = vmatprep.subr.bf16.mxu0 0
        %1930 = vmatpush1.bf16.msra.mxu0 %v1917
        %1931 = vmatprep.subr.bf16.mxu0 0
        %1932 = vmatpush1.bf16.msra.mxu0 0
        %1933 = vmatprep.subr.bf16.mxu0 0
        %1934 = vmatpush1.bf16.msra.mxu0 0
        %1935 = vmatprep.subr.bf16.mxu0 0
        %1936 = vmatpush1.bf16.msra.mxu0 0
        %1937 = vmatprep.subr.bf16.mxu0 0
        %1938 = vmatpush1.bf16.msra.mxu0 0
        %1939 = vmatprep.subr.bf16.mxu0 0
        %1940 = vmatpush1.bf16.msra.mxu0 0
        %1941 = vmatprep.subr.bf16.mxu0 0
        %1942 = vmatpush1.bf16.msra.mxu0 0
        %1943 = vmatprep.subr.bf16.mxu0 0
        %1944 = vmatpush1.bf16.msra.mxu0 0
        %1945 = vmatprep.subr.bf16.mxu0 0
        %1946 = vmatpush1.bf16.msra.mxu0 0
        %1947 = vmatprep.subr.bf16.mxu0 0
        %1948 = vmatpush1.bf16.msra.mxu0 0
        %1949 = vmatprep.subr.bf16.mxu0 0
        %1950 = vmatpush1.bf16.msra.mxu0 0
        %1951 = vmatprep.subr.bf16.mxu0 0
        %1952 = vmatpush1.bf16.msra.mxu0 0
        %1953 = vmatprep.subr.bf16.mxu0 0
        %1954 = vmatpush1.bf16.msra.mxu0 0
        %1955 = vmatprep.subr.bf16.mxu0 0
        %1956 = vmatpush1.bf16.msra.mxu0 0
        %1957 = vmatprep.subr.bf16.mxu0 0
        %1958 = vmatpush1.bf16.msra.mxu0 0
        %1959 = vmatprep.mubr.bf16.mxu0 0
        %1960 = vmatmul.mubr.bf16.gmra.mrb[0].mxu0 %v1925
        %v1961 = vpop.f32.mrb[0].mxu0
        %v1962 = vadd.f32 %v1922, %v1961
        %v1963 = vpop.f32.mrb[0].mxu0
        %v1964 = vpop.f32.mrb[0].mxu0
        %v1965 = vpop.f32.mrb[0].mxu0
        %1966 = vdwg.mxu0
        %v1967 = vld [vmem:[%s891] sm:$0x1]
        %v1968 = vld [vmem:[%s21] sm:$0xff]
        %v1969 = vld [vmem:[%s21 + $0x8] sm:$0xff]
        %v1970 = vld [vmem:[%s21 + $0x10] sm:$0xff]
        %v1971 = vld [vmem:[%s21 + $0x18] sm:$0xff]
        %v1972 = vld [vmem:[%s22] sm:$0x1]
        %vm1973 = vcmp.gt.f32.partialorder %v1967, 0.5
        %v1975 = vlaneseq
        %v1976 = vshrl.u32 %v1975, 7
        %v1977 = vsub.s32 0, %v1976
        %v1978 = vrot.slane %v1972, %v1977
        %v1980 = vadd.f32 %v1737, %v1978
        %v1981 = vpack.c.bf16 %v1904, %v1904
        %v1982 = vpack.c.bf16 %v1962, %v1962
        %v1984 = vsel %vm1094, %v1981, 0
        %v1987 = vsel %vm1094, %v1982, 0
        %1989 = vmatprep.subr.bf16.mxu0 0
        %1990 = vmatpush1.bf16.xpose.msra.mxu0 %v1987
        %1991 = vmatprep.subr.bf16.mxu0 0
        %1992 = vmatpush1.bf16.xpose.msra.mxu0 0
        %1993 = vmatprep.subr.bf16.mxu0 0
        %1994 = vmatpush1.bf16.xpose.msra.mxu0 0
        %1995 = vmatprep.subr.bf16.mxu0 0
        %1996 = vmatpush1.bf16.xpose.msra.mxu0 0
        %1997 = vmatprep.subr.bf16.mxu0 0
        %1998 = vmatpush1.bf16.xpose.msra.mxu0 0
        %1999 = vmatprep.subr.bf16.mxu0 0
        %2000 = vmatpush1.bf16.xpose.msra.mxu0 0
        %2001 = vmatprep.subr.bf16.mxu0 0
        %2002 = vmatpush1.bf16.xpose.msra.mxu0 0
        %2003 = vmatprep.subr.bf16.mxu0 0
        %2004 = vmatpush1.bf16.xpose.msra.mxu0 0
        %2005 = vmatprep.subr.bf16.mxu0 0
        %2006 = vmatpush1.bf16.xpose.msra.mxu0 0
        %2007 = vmatprep.subr.bf16.mxu0 0
        %2008 = vmatpush1.bf16.xpose.msra.mxu0 0
        %2009 = vmatprep.subr.bf16.mxu0 0
        %2010 = vmatpush1.bf16.xpose.msra.mxu0 0
        %2011 = vmatprep.subr.bf16.mxu0 0
        %2012 = vmatpush1.bf16.xpose.msra.mxu0 0
        %2013 = vmatprep.subr.bf16.mxu0 0
        %2014 = vmatpush1.bf16.xpose.msra.mxu0 0
        %2015 = vmatprep.subr.bf16.mxu0 0
        %2016 = vmatpush1.bf16.xpose.msra.mxu0 0
        %2017 = vmatprep.subr.bf16.mxu0 0
        %2018 = vmatpush1.bf16.xpose.msra.mxu0 0
        %2019 = vmatprep.subr.bf16.mxu0 0
        %2020 = vmatpush1.bf16.xpose.msra.mxu0 0
        %2021 = vmatprep.mubr.bf16.mxu0 0
        %2022 = vmatmul.mubr.bf16.gmra.mrb[0].mxu0 %v1984
        %v2023 = vpop.f32.mrb[0].mxu0
        %v2024 = vadd.f32 0.0, %v2023
        %v2025 = vpop.f32.mrb[0].mxu0
        %v2026 = vpop.f32.mrb[0].mxu0
        %v2027 = vpop.f32.mrb[0].mxu0
        %2028 = vdwg.mxu0
        %v2029 = vsel %vm1973, 1, 0
        %v2030 = vlaneseq
        %v2031 = vshrl.u32 %v2030, 7
        %v2032 = vsub.s32 0, %v2031
        %v2033 = vrot.slane %v2029, %v2032
        %vm2034 = vcmp.eq.s32.totalorder %v2033, 1
        %v2035 = vsel %vm2034, %v2024, -1e+30
        %v2036 = vsel %vm1094, %v2035, -inf
        %2037 = vmax.xlane.f32.xlu0 %v2036
        %v2038 = vpop.xlane.xlu0 %2037
        %v2039 = vsub.f32 %v2035, %v2038
        %v2040 = vmul.f32 %v2039, 1.442695
        %v2041 = vpow.pop %v2040
        %v2042 = vsel %vm1094, %v2041, 0.0
        %2043 = vadd.xlane.f32.xlu0 %v2042
        %v2044 = vpop.xlane.xlu0 %2043
        %v2045 = vrcp.pop %v2044
        %v2046 = vmul.f32 %v2041, %v2045
        %v2047 = vpack.c.bf16 %v2046, %v2046
        %2049 = vrot.lane.b32.xlu0 %v1982, 96
        %v2050 = vpop.permute.xlu0 %2049
        %v2052 = vsel %vm1094, %v2047, 0
        %v2055 = vsel %vm1165, %v2050, 0
        %2057 = vmatprep.subr.bf16.mxu0 0
        %2058 = vmatpush1.bf16.msra.mxu0 %v2055
        %2059 = vmatprep.subr.bf16.mxu0 0
        %2060 = vmatpush1.bf16.msra.mxu0 0
        %2061 = vmatprep.subr.bf16.mxu0 0
        %2062 = vmatpush1.bf16.msra.mxu0 0
        %2063 = vmatprep.subr.bf16.mxu0 0
        %2064 = vmatpush1.bf16.msra.mxu0 0
        %2065 = vmatprep.subr.bf16.mxu0 0
        %2066 = vmatpush1.bf16.msra.mxu0 0
        %2067 = vmatprep.subr.bf16.mxu0 0
        %2068 = vmatpush1.bf16.msra.mxu0 0
        %2069 = vmatprep.subr.bf16.mxu0 0
        %2070 = vmatpush1.bf16.msra.mxu0 0
        %2071 = vmatprep.subr.bf16.mxu0 0
        %2072 = vmatpush1.bf16.msra.mxu0 0
        %2073 = vmatprep.subr.bf16.mxu0 0
        %2074 = vmatpush1.bf16.msra.mxu0 0
        %2075 = vmatprep.subr.bf16.mxu0 0
        %2076 = vmatpush1.bf16.msra.mxu0 0
        %2077 = vmatprep.subr.bf16.mxu0 0
        %2078 = vmatpush1.bf16.msra.mxu0 0
        %2079 = vmatprep.subr.bf16.mxu0 0
        %2080 = vmatpush1.bf16.msra.mxu0 0
        %2081 = vmatprep.subr.bf16.mxu0 0
        %2082 = vmatpush1.bf16.msra.mxu0 0
        %2083 = vmatprep.subr.bf16.mxu0 0
        %2084 = vmatpush1.bf16.msra.mxu0 0
        %2085 = vmatprep.subr.bf16.mxu0 0
        %2086 = vmatpush1.bf16.msra.mxu0 0
        %2087 = vmatprep.subr.bf16.mxu0 0
        %2088 = vmatpush1.bf16.msra.mxu0 0
        %2089 = vmatprep.mubr.bf16.mxu0 0
        %2090 = vmatmul.mubr.bf16.gmra.mrb[0].mxu0 %v2052
        %v2091 = vpop.f32.mrb[0].mxu0
        %v2092 = vadd.f32 0.0, %v2091
        %v2093 = vpop.f32.mrb[0].mxu0
        %v2094 = vpop.f32.mrb[0].mxu0
        %v2095 = vpop.f32.mrb[0].mxu0
        %2096 = vdwg.mxu0
        %v2097 = vpack.c.bf16 %v2092, %v2092
        %v2098 = vpack.c.bf16 %v1968, %v1968
        %v2100 = vsel %vm1094, %v2097, 0
        %v2103 = vsel %vm1165, %v2098, 0
        %2105 = vmatprep.subr.bf16.mxu0 0
        %2106 = vmatpush1.bf16.msra.mxu0 %v2103
        %2107 = vmatprep.subr.bf16.mxu0 0
        %2108 = vmatpush1.bf16.msra.mxu0 0
        %2109 = vmatprep.subr.bf16.mxu0 0
        %2110 = vmatpush1.bf16.msra.mxu0 0
        %2111 = vmatprep.subr.bf16.mxu0 0
        %2112 = vmatpush1.bf16.msra.mxu0 0
        %2113 = vmatprep.subr.bf16.mxu0 0
        %2114 = vmatpush1.bf16.msra.mxu0 0
        %2115 = vmatprep.subr.bf16.mxu0 0
        %2116 = vmatpush1.bf16.msra.mxu0 0
        %2117 = vmatprep.subr.bf16.mxu0 0
        %2118 = vmatpush1.bf16.msra.mxu0 0
        %2119 = vmatprep.subr.bf16.mxu0 0
        %2120 = vmatpush1.bf16.msra.mxu0 0
        %2121 = vmatprep.subr.bf16.mxu0 0
        %2122 = vmatpush1.bf16.msra.mxu0 0
        %2123 = vmatprep.subr.bf16.mxu0 0
        %2124 = vmatpush1.bf16.msra.mxu0 0
        %2125 = vmatprep.subr.bf16.mxu0 0
        %2126 = vmatpush1.bf16.msra.mxu0 0
        %2127 = vmatprep.subr.bf16.mxu0 0
        %2128 = vmatpush1.bf16.msra.mxu0 0
        %2129 = vmatprep.subr.bf16.mxu0 0
        %2130 = vmatpush1.bf16.msra.mxu0 0
        %2131 = vmatprep.subr.bf16.mxu0 0
        %2132 = vmatpush1.bf16.msra.mxu0 0
        %2133 = vmatprep.subr.bf16.mxu0 0
        %2134 = vmatpush1.bf16.msra.mxu0 0
        %2135 = vmatprep.subr.bf16.mxu0 0
        %2136 = vmatpush1.bf16.msra.mxu0 0
        %2137 = vmatprep.mubr.bf16.mxu0 0
        %2138 = vmatmul.mubr.bf16.gmra.mrb[0].mxu0 %v2100
        %v2139 = vpop.f32.mrb[0].mxu0
        %v2140 = vadd.f32 0.0, %v2139
        %v2141 = vpop.f32.mrb[0].mxu0
        %v2142 = vpop.f32.mrb[0].mxu0
        %v2143 = vpop.f32.mrb[0].mxu0
        %2144 = vdwg.mxu0
        %v2145 = vadd.f32 %v1980, %v2140
        %2147 = vrot.lane.b32.xlu0 %v1981, 120
        %v2148 = vpop.permute.xlu0 %2147
        %2149 = vrot.lane.b32.xlu0 %v1982, 120
        %v2150 = vpop.permute.xlu0 %2149
        %v2152 = vsel %vm1094, %v2148, 0
        %v2155 = vsel %vm1094, %v2150, 0
        %2157 = vmatprep.subr.bf16.mxu0 0
        %2158 = vmatpush1.bf16.xpose.msra.mxu0 %v2155
        %2159 = vmatprep.subr.bf16.mxu0 0
        %2160 = vmatpush1.bf16.xpose.msra.mxu0 0
        %2161 = vmatprep.subr.bf16.mxu0 0
        %2162 = vmatpush1.bf16.xpose.msra.mxu0 0
        %2163 = vmatprep.subr.bf16.mxu0 0
        %2164 = vmatpush1.bf16.xpose.msra.mxu0 0
        %2165 = vmatprep.subr.bf16.mxu0 0
        %2166 = vmatpush1.bf16.xpose.msra.mxu0 0
        %2167 = vmatprep.subr.bf16.mxu0 0
        %2168 = vmatpush1.bf16.xpose.msra.mxu0 0
        %2169 = vmatprep.subr.bf16.mxu0 0
        %2170 = vmatpush1.bf16.xpose.msra.mxu0 0
        %2171 = vmatprep.subr.bf16.mxu0 0
        %2172 = vmatpush1.bf16.xpose.msra.mxu0 0
        %2173 = vmatprep.subr.bf16.mxu0 0
        %2174 = vmatpush1.bf16.xpose.msra.mxu0 0
        %2175 = vmatprep.subr.bf16.mxu0 0
        %2176 = vmatpush1.bf16.xpose.msra.mxu0 0
        %2177 = vmatprep.subr.bf16.mxu0 0
        %2178 = vmatpush1.bf16.xpose.msra.mxu0 0
        %2179 = vmatprep.subr.bf16.mxu0 0
        %2180 = vmatpush1.bf16.xpose.msra.mxu0 0
        %2181 = vmatprep.subr.bf16.mxu0 0
        %2182 = vmatpush1.bf16.xpose.msra.mxu0 0
        %2183 = vmatprep.subr.bf16.mxu0 0
        %2184 = vmatpush1.bf16.xpose.msra.mxu0 0
        %2185 = vmatprep.subr.bf16.mxu0 0
        %2186 = vmatpush1.bf16.xpose.msra.mxu0 0
        %2187 = vmatprep.subr.bf16.mxu0 0
        %2188 = vmatpush1.bf16.xpose.msra.mxu0 0
        %2189 = vmatprep.mubr.bf16.mxu0 0
        %2190 = vmatmul.mubr.bf16.gmra.mrb[0].mxu0 %v2152
        %v2191 = vpop.f32.mrb[0].mxu0
        %v2192 = vadd.f32 0.0, %v2191
        %v2193 = vpop.f32.mrb[0].mxu0
        %v2194 = vpop.f32.mrb[0].mxu0
        %v2195 = vpop.f32.mrb[0].mxu0
        %2196 = vdwg.mxu0
        %v2197 = vsel %vm2034, %v2192, -1e+30
        %v2198 = vsel %vm1094, %v2197, -inf
        %2199 = vmax.xlane.f32.xlu0 %v2198
        %v2200 = vpop.xlane.xlu0 %2199
        %v2201 = vsub.f32 %v2197, %v2200
        %v2202 = vmul.f32 %v2201, 1.442695
        %v2203 = vpow.pop %v2202
        %v2204 = vsel %vm1094, %v2203, 0.0
        %2205 = vadd.xlane.f32.xlu0 %v2204
        %v2206 = vpop.xlane.xlu0 %2205
        %v2207 = vrcp.pop %v2206
        %v2208 = vmul.f32 %v2203, %v2207
        %v2209 = vpack.c.bf16 %v2208, %v2208
        %2210 = vrot.lane.b32.xlu0 %v1982, 88
        %v2211 = vpop.permute.xlu0 %2210
        %v2213 = vsel %vm1094, %v2209, 0
        %v2216 = vsel %vm1165, %v2211, 0
        %2218 = vmatprep.subr.bf16.mxu0 0
        %2219 = vmatpush1.bf16.msra.mxu0 %v2216
        %2220 = vmatprep.subr.bf16.mxu0 0
        %2221 = vmatpush1.bf16.msra.mxu0 0
        %2222 = vmatprep.subr.bf16.mxu0 0
        %2223 = vmatpush1.bf16.msra.mxu0 0
        %2224 = vmatprep.subr.bf16.mxu0 0
        %2225 = vmatpush1.bf16.msra.mxu0 0
        %2226 = vmatprep.subr.bf16.mxu0 0
        %2227 = vmatpush1.bf16.msra.mxu0 0
        %2228 = vmatprep.subr.bf16.mxu0 0
        %2229 = vmatpush1.bf16.msra.mxu0 0
        %2230 = vmatprep.subr.bf16.mxu0 0
        %2231 = vmatpush1.bf16.msra.mxu0 0
        %2232 = vmatprep.subr.bf16.mxu0 0
        %2233 = vmatpush1.bf16.msra.mxu0 0
        %2234 = vmatprep.subr.bf16.mxu0 0
        %2235 = vmatpush1.bf16.msra.mxu0 0
        %2236 = vmatprep.subr.bf16.mxu0 0
        %2237 = vmatpush1.bf16.msra.mxu0 0
        %2238 = vmatprep.subr.bf16.mxu0 0
        %2239 = vmatpush1.bf16.msra.mxu0 0
        %2240 = vmatprep.subr.bf16.mxu0 0
        %2241 = vmatpush1.bf16.msra.mxu0 0
        %2242 = vmatprep.subr.bf16.mxu0 0
        %2243 = vmatpush1.bf16.msra.mxu0 0
        %2244 = vmatprep.subr.bf16.mxu0 0
        %2245 = vmatpush1.bf16.msra.mxu0 0
        %2246 = vmatprep.subr.bf16.mxu0 0
        %2247 = vmatpush1.bf16.msra.mxu0 0
        %2248 = vmatprep.subr.bf16.mxu0 0
        %2249 = vmatpush1.bf16.msra.mxu0 0
        %2250 = vmatprep.mubr.bf16.mxu0 0
        %2251 = vmatmul.mubr.bf16.gmra.mrb[0].mxu0 %v2213
        %v2252 = vpop.f32.mrb[0].mxu0
        %v2253 = vadd.f32 0.0, %v2252
        %v2254 = vpop.f32.mrb[0].mxu0
        %v2255 = vpop.f32.mrb[0].mxu0
        %v2256 = vpop.f32.mrb[0].mxu0
        %2257 = vdwg.mxu0
        %v2258 = vpack.c.bf16 %v2253, %v2253
        %v2259 = vpack.c.bf16 %v1969, %v1969
        %v2261 = vsel %vm1094, %v2258, 0
        %v2264 = vsel %vm1165, %v2259, 0
        %2266 = vmatprep.subr.bf16.mxu0 0
        %2267 = vmatpush1.bf16.msra.mxu0 %v2264
        %2268 = vmatprep.subr.bf16.mxu0 0
        %2269 = vmatpush1.bf16.msra.mxu0 0
        %2270 = vmatprep.subr.bf16.mxu0 0
        %2271 = vmatpush1.bf16.msra.mxu0 0
        %2272 = vmatprep.subr.bf16.mxu0 0
        %2273 = vmatpush1.bf16.msra.mxu0 0
        %2274 = vmatprep.subr.bf16.mxu0 0
        %2275 = vmatpush1.bf16.msra.mxu0 0
        %2276 = vmatprep.subr.bf16.mxu0 0
        %2277 = vmatpush1.bf16.msra.mxu0 0
        %2278 = vmatprep.subr.bf16.mxu0 0
        %2279 = vmatpush1.bf16.msra.mxu0 0
        %2280 = vmatprep.subr.bf16.mxu0 0
        %2281 = vmatpush1.bf16.msra.mxu0 0
        %2282 = vmatprep.subr.bf16.mxu0 0
        %2283 = vmatpush1.bf16.msra.mxu0 0
        %2284 = vmatprep.subr.bf16.mxu0 0
        %2285 = vmatpush1.bf16.msra.mxu0 0
        %2286 = vmatprep.subr.bf16.mxu0 0
        %2287 = vmatpush1.bf16.msra.mxu0 0
        %2288 = vmatprep.subr.bf16.mxu0 0
        %2289 = vmatpush1.bf16.msra.mxu0 0
        %2290 = vmatprep.subr.bf16.mxu0 0
        %2291 = vmatpush1.bf16.msra.mxu0 0
        %2292 = vmatprep.subr.bf16.mxu0 0
        %2293 = vmatpush1.bf16.msra.mxu0 0
        %2294 = vmatprep.subr.bf16.mxu0 0
        %2295 = vmatpush1.bf16.msra.mxu0 0
        %2296 = vmatprep.subr.bf16.mxu0 0
        %2297 = vmatpush1.bf16.msra.mxu0 0
        %2298 = vmatprep.mubr.bf16.mxu0 0
        %2299 = vmatmul.mubr.bf16.gmra.mrb[0].mxu0 %v2261
        %v2300 = vpop.f32.mrb[0].mxu0
        %v2301 = vadd.f32 0.0, %v2300
        %v2302 = vpop.f32.mrb[0].mxu0
        %v2303 = vpop.f32.mrb[0].mxu0
        %v2304 = vpop.f32.mrb[0].mxu0
        %2305 = vdwg.mxu0
        %v2306 = vadd.f32 %v2145, %v2301
        %2307 = vrot.lane.b32.xlu0 %v1981, 112
        %v2308 = vpop.permute.xlu0 %2307
        %2309 = vrot.lane.b32.xlu0 %v1982, 112
        %v2310 = vpop.permute.xlu0 %2309
        %v2312 = vsel %vm1094, %v2308, 0
        %v2315 = vsel %vm1094, %v2310, 0
        %2317 = vmatprep.subr.bf16.mxu0 0
        %2318 = vmatpush1.bf16.xpose.msra.mxu0 %v2315
        %2319 = vmatprep.subr.bf16.mxu0 0
        %2320 = vmatpush1.bf16.xpose.msra.mxu0 0
        %2321 = vmatprep.subr.bf16.mxu0 0
        %2322 = vmatpush1.bf16.xpose.msra.mxu0 0
        %2323 = vmatprep.subr.bf16.mxu0 0
        %2324 = vmatpush1.bf16.xpose.msra.mxu0 0
        %2325 = vmatprep.subr.bf16.mxu0 0
        %2326 = vmatpush1.bf16.xpose.msra.mxu0 0
        %2327 = vmatprep.subr.bf16.mxu0 0
        %2328 = vmatpush1.bf16.xpose.msra.mxu0 0
        %2329 = vmatprep.subr.bf16.mxu0 0
        %2330 = vmatpush1.bf16.xpose.msra.mxu0 0
        %2331 = vmatprep.subr.bf16.mxu0 0
        %2332 = vmatpush1.bf16.xpose.msra.mxu0 0
        %2333 = vmatprep.subr.bf16.mxu0 0
        %2334 = vmatpush1.bf16.xpose.msra.mxu0 0
        %2335 = vmatprep.subr.bf16.mxu0 0
        %2336 = vmatpush1.bf16.xpose.msra.mxu0 0
        %2337 = vmatprep.subr.bf16.mxu0 0
        %2338 = vmatpush1.bf16.xpose.msra.mxu0 0
        %2339 = vmatprep.subr.bf16.mxu0 0
        %2340 = vmatpush1.bf16.xpose.msra.mxu0 0
        %2341 = vmatprep.subr.bf16.mxu0 0
        %2342 = vmatpush1.bf16.xpose.msra.mxu0 0
        %2343 = vmatprep.subr.bf16.mxu0 0
        %2344 = vmatpush1.bf16.xpose.msra.mxu0 0
        %2345 = vmatprep.subr.bf16.mxu0 0
        %2346 = vmatpush1.bf16.xpose.msra.mxu0 0
        %2347 = vmatprep.subr.bf16.mxu0 0
        %2348 = vmatpush1.bf16.xpose.msra.mxu0 0
        %2349 = vmatprep.mubr.bf16.mxu0 0
        %2350 = vmatmul.mubr.bf16.gmra.mrb[0].mxu0 %v2312
        %v2351 = vpop.f32.mrb[0].mxu0
        %v2352 = vadd.f32 0.0, %v2351
        %v2353 = vpop.f32.mrb[0].mxu0
        %v2354 = vpop.f32.mrb[0].mxu0
        %v2355 = vpop.f32.mrb[0].mxu0
        %2356 = vdwg.mxu0
        %v2357 = vsel %vm2034, %v2352, -1e+30
        %v2358 = vsel %vm1094, %v2357, -inf
        %2359 = vmax.xlane.f32.xlu0 %v2358
        %v2360 = vpop.xlane.xlu0 %2359
        %v2361 = vsub.f32 %v2357, %v2360
        %v2362 = vmul.f32 %v2361, 1.442695
        %v2363 = vpow.pop %v2362
        %v2364 = vsel %vm1094, %v2363, 0.0
        %2365 = vadd.xlane.f32.xlu0 %v2364
        %v2366 = vpop.xlane.xlu0 %2365
        %v2367 = vrcp.pop %v2366
        %v2368 = vmul.f32 %v2363, %v2367
        %v2369 = vpack.c.bf16 %v2368, %v2368
        %2370 = vrot.lane.b32.xlu0 %v1982, 80
        %v2371 = vpop.permute.xlu0 %2370
        %v2373 = vsel %vm1094, %v2369, 0
        %v2376 = vsel %vm1165, %v2371, 0
        %2378 = vmatprep.subr.bf16.mxu0 0
        %2379 = vmatpush1.bf16.msra.mxu0 %v2376
        %2380 = vmatprep.subr.bf16.mxu0 0
        %2381 = vmatpush1.bf16.msra.mxu0 0
        %2382 = vmatprep.subr.bf16.mxu0 0
        %2383 = vmatpush1.bf16.msra.mxu0 0
        %2384 = vmatprep.subr.bf16.mxu0 0
        %2385 = vmatpush1.bf16.msra.mxu0 0
        %2386 = vmatprep.subr.bf16.mxu0 0
        %2387 = vmatpush1.bf16.msra.mxu0 0
        %2388 = vmatprep.subr.bf16.mxu0 0
        %2389 = vmatpush1.bf16.msra.mxu0 0
        %2390 = vmatprep.subr.bf16.mxu0 0
        %2391 = vmatpush1.bf16.msra.mxu0 0
        %2392 = vmatprep.subr.bf16.mxu0 0
        %2393 = vmatpush1.bf16.msra.mxu0 0
        %2394 = vmatprep.subr.bf16.mxu0 0
        %2395 = vmatpush1.bf16.msra.mxu0 0
        %2396 = vmatprep.subr.bf16.mxu0 0
        %2397 = vmatpush1.bf16.msra.mxu0 0
        %2398 = vmatprep.subr.bf16.mxu0 0
        %2399 = vmatpush1.bf16.msra.mxu0 0
        %2400 = vmatprep.subr.bf16.mxu0 0
        %2401 = vmatpush1.bf16.msra.mxu0 0
        %2402 = vmatprep.subr.bf16.mxu0 0
        %2403 = vmatpush1.bf16.msra.mxu0 0
        %2404 = vmatprep.subr.bf16.mxu0 0
        %2405 = vmatpush1.bf16.msra.mxu0 0
        %2406 = vmatprep.subr.bf16.mxu0 0
        %2407 = vmatpush1.bf16.msra.mxu0 0
        %2408 = vmatprep.subr.bf16.mxu0 0
        %2409 = vmatpush1.bf16.msra.mxu0 0
        %2410 = vmatprep.mubr.bf16.mxu0 0
        %2411 = vmatmul.mubr.bf16.gmra.mrb[0].mxu0 %v2373
        %v2412 = vpop.f32.mrb[0].mxu0
        %v2413 = vadd.f32 0.0, %v2412
        %v2414 = vpop.f32.mrb[0].mxu0
        %v2415 = vpop.f32.mrb[0].mxu0
        %v2416 = vpop.f32.mrb[0].mxu0
        %2417 = vdwg.mxu0
        %v2418 = vpack.c.bf16 %v2413, %v2413
        %v2419 = vpack.c.bf16 %v1970, %v1970
        %v2421 = vsel %vm1094, %v2418, 0
        %v2424 = vsel %vm1165, %v2419, 0
        %2426 = vmatprep.subr.bf16.mxu0 0
        %2427 = vmatpush1.bf16.msra.mxu0 %v2424
        %2428 = vmatprep.subr.bf16.mxu0 0
        %2429 = vmatpush1.bf16.msra.mxu0 0
        %2430 = vmatprep.subr.bf16.mxu0 0
        %2431 = vmatpush1.bf16.msra.mxu0 0
        %2432 = vmatprep.subr.bf16.mxu0 0
        %2433 = vmatpush1.bf16.msra.mxu0 0
        %2434 = vmatprep.subr.bf16.mxu0 0
        %2435 = vmatpush1.bf16.msra.mxu0 0
        %2436 = vmatprep.subr.bf16.mxu0 0
        %2437 = vmatpush1.bf16.msra.mxu0 0
        %2438 = vmatprep.subr.bf16.mxu0 0
        %2439 = vmatpush1.bf16.msra.mxu0 0
        %2440 = vmatprep.subr.bf16.mxu0 0
        %2441 = vmatpush1.bf16.msra.mxu0 0
        %2442 = vmatprep.subr.bf16.mxu0 0
        %2443 = vmatpush1.bf16.msra.mxu0 0
        %2444 = vmatprep.subr.bf16.mxu0 0
        %2445 = vmatpush1.bf16.msra.mxu0 0
        %2446 = vmatprep.subr.bf16.mxu0 0
        %2447 = vmatpush1.bf16.msra.mxu0 0
        %2448 = vmatprep.subr.bf16.mxu0 0
        %2449 = vmatpush1.bf16.msra.mxu0 0
        %2450 = vmatprep.subr.bf16.mxu0 0
        %2451 = vmatpush1.bf16.msra.mxu0 0
        %2452 = vmatprep.subr.bf16.mxu0 0
        %2453 = vmatpush1.bf16.msra.mxu0 0
        %2454 = vmatprep.subr.bf16.mxu0 0
        %2455 = vmatpush1.bf16.msra.mxu0 0
        %2456 = vmatprep.subr.bf16.mxu0 0
        %2457 = vmatpush1.bf16.msra.mxu0 0
        %2458 = vmatprep.mubr.bf16.mxu0 0
        %2459 = vmatmul.mubr.bf16.gmra.mrb[0].mxu0 %v2421
        %v2460 = vpop.f32.mrb[0].mxu0
        %v2461 = vadd.f32 0.0, %v2460
        %v2462 = vpop.f32.mrb[0].mxu0
        %v2463 = vpop.f32.mrb[0].mxu0
        %v2464 = vpop.f32.mrb[0].mxu0
        %2465 = vdwg.mxu0
        %v2466 = vadd.f32 %v2306, %v2461
        %2467 = vrot.lane.b32.xlu0 %v1981, 104
        %v2468 = vpop.permute.xlu0 %2467
        %2469 = vrot.lane.b32.xlu0 %v1982, 104
        %v2470 = vpop.permute.xlu0 %2469
        %v2472 = vsel %vm1094, %v2468, 0
        %v2475 = vsel %vm1094, %v2470, 0
        %2477 = vmatprep.subr.bf16.mxu0 0
        %2478 = vmatpush1.bf16.xpose.msra.mxu0 %v2475
        %2479 = vmatprep.subr.bf16.mxu0 0
        %2480 = vmatpush1.bf16.xpose.msra.mxu0 0
        %2481 = vmatprep.subr.bf16.mxu0 0
        %2482 = vmatpush1.bf16.xpose.msra.mxu0 0
        %2483 = vmatprep.subr.bf16.mxu0 0
        %2484 = vmatpush1.bf16.xpose.msra.mxu0 0
        %2485 = vmatprep.subr.bf16.mxu0 0
        %2486 = vmatpush1.bf16.xpose.msra.mxu0 0
        %2487 = vmatprep.subr.bf16.mxu0 0
        %2488 = vmatpush1.bf16.xpose.msra.mxu0 0
        %2489 = vmatprep.subr.bf16.mxu0 0
        %2490 = vmatpush1.bf16.xpose.msra.mxu0 0
        %2491 = vmatprep.subr.bf16.mxu0 0
        %2492 = vmatpush1.bf16.xpose.msra.mxu0 0
        %2493 = vmatprep.subr.bf16.mxu0 0
        %2494 = vmatpush1.bf16.xpose.msra.mxu0 0
        %2495 = vmatprep.subr.bf16.mxu0 0
        %2496 = vmatpush1.bf16.xpose.msra.mxu0 0
        %2497 = vmatprep.subr.bf16.mxu0 0
        %2498 = vmatpush1.bf16.xpose.msra.mxu0 0
        %2499 = vmatprep.subr.bf16.mxu0 0
        %2500 = vmatpush1.bf16.xpose.msra.mxu0 0
        %2501 = vmatprep.subr.bf16.mxu0 0
        %2502 = vmatpush1.bf16.xpose.msra.mxu0 0
        %2503 = vmatprep.subr.bf16.mxu0 0
        %2504 = vmatpush1.bf16.xpose.msra.mxu0 0
        %2505 = vmatprep.subr.bf16.mxu0 0
        %2506 = vmatpush1.bf16.xpose.msra.mxu0 0
        %2507 = vmatprep.subr.bf16.mxu0 0
        %2508 = vmatpush1.bf16.xpose.msra.mxu0 0
        %2509 = vmatprep.mubr.bf16.mxu0 0
        %2510 = vmatmul.mubr.bf16.gmra.mrb[0].mxu0 %v2472
        %v2511 = vpop.f32.mrb[0].mxu0
        %v2512 = vadd.f32 0.0, %v2511
        %v2513 = vpop.f32.mrb[0].mxu0
        %v2514 = vpop.f32.mrb[0].mxu0
        %v2515 = vpop.f32.mrb[0].mxu0
        %2516 = vdwg.mxu0
        %v2517 = vsel %vm2034, %v2512, -1e+30
        %v2518 = vsel %vm1094, %v2517, -inf
        %2519 = vmax.xlane.f32.xlu0 %v2518
        %v2520 = vpop.xlane.xlu0 %2519
        %v2521 = vsub.f32 %v2517, %v2520
        %v2522 = vmul.f32 %v2521, 1.442695
        %v2523 = vpow.pop %v2522
        %v2524 = vsel %vm1094, %v2523, 0.0
        %2525 = vadd.xlane.f32.xlu0 %v2524
        %v2526 = vpop.xlane.xlu0 %2525
        %v2527 = vrcp.pop %v2526
        %v2528 = vmul.f32 %v2523, %v2527
        %v2529 = vpack.c.bf16 %v2528, %v2528
        %2530 = vrot.lane.b32.xlu0 %v1982, 72
        %v2531 = vpop.permute.xlu0 %2530
        %v2533 = vsel %vm1094, %v2529, 0
        %v2536 = vsel %vm1165, %v2531, 0
        %2538 = vmatprep.subr.bf16.mxu0 0
        %2539 = vmatpush1.bf16.msra.mxu0 %v2536
        %2540 = vmatprep.subr.bf16.mxu0 0
        %2541 = vmatpush1.bf16.msra.mxu0 0
        %2542 = vmatprep.subr.bf16.mxu0 0
        %2543 = vmatpush1.bf16.msra.mxu0 0
        %2544 = vmatprep.subr.bf16.mxu0 0
        %2545 = vmatpush1.bf16.msra.mxu0 0
        %2546 = vmatprep.subr.bf16.mxu0 0
        %2547 = vmatpush1.bf16.msra.mxu0 0
        %2548 = vmatprep.subr.bf16.mxu0 0
        %2549 = vmatpush1.bf16.msra.mxu0 0
        %2550 = vmatprep.subr.bf16.mxu0 0
        %2551 = vmatpush1.bf16.msra.mxu0 0
        %2552 = vmatprep.subr.bf16.mxu0 0
        %2553 = vmatpush1.bf16.msra.mxu0 0
        %2554 = vmatprep.subr.bf16.mxu0 0
        %2555 = vmatpush1.bf16.msra.mxu0 0
        %2556 = vmatprep.subr.bf16.mxu0 0
        %2557 = vmatpush1.bf16.msra.mxu0 0
        %2558 = vmatprep.subr.bf16.mxu0 0
        %2559 = vmatpush1.bf16.msra.mxu0 0
        %2560 = vmatprep.subr.bf16.mxu0 0
        %2561 = vmatpush1.bf16.msra.mxu0 0
        %2562 = vmatprep.subr.bf16.mxu0 0
        %2563 = vmatpush1.bf16.msra.mxu0 0
        %2564 = vmatprep.subr.bf16.mxu0 0
        %2565 = vmatpush1.bf16.msra.mxu0 0
        %2566 = vmatprep.subr.bf16.mxu0 0
        %2567 = vmatpush1.bf16.msra.mxu0 0
        %2568 = vmatprep.subr.bf16.mxu0 0
        %2569 = vmatpush1.bf16.msra.mxu0 0
        %2570 = vmatprep.mubr.bf16.mxu0 0
        %2571 = vmatmul.mubr.bf16.gmra.mrb[0].mxu0 %v2533
        %v2572 = vpop.f32.mrb[0].mxu0
        %v2573 = vadd.f32 0.0, %v2572
        %v2574 = vpop.f32.mrb[0].mxu0
        %v2575 = vpop.f32.mrb[0].mxu0
        %v2576 = vpop.f32.mrb[0].mxu0
        %2577 = vdwg.mxu0
        %v2578 = vpack.c.bf16 %v2573, %v2573
        %v2579 = vpack.c.bf16 %v1971, %v1971
        %v2581 = vsel %vm1094, %v2578, 0
        %v2584 = vsel %vm1165, %v2579, 0
        %2586 = vmatprep.subr.bf16.mxu0 0
        %2587 = vmatpush1.bf16.msra.mxu0 %v2584
        %2588 = vmatprep.subr.bf16.mxu0 0
        %2589 = vmatpush1.bf16.msra.mxu0 0
        %2590 = vmatprep.subr.bf16.mxu0 0
        %2591 = vmatpush1.bf16.msra.mxu0 0
        %2592 = vmatprep.subr.bf16.mxu0 0
        %2593 = vmatpush1.bf16.msra.mxu0 0
        %2594 = vmatprep.subr.bf16.mxu0 0
        %2595 = vmatpush1.bf16.msra.mxu0 0
        %2596 = vmatprep.subr.bf16.mxu0 0
        %2597 = vmatpush1.bf16.msra.mxu0 0
        %2598 = vmatprep.subr.bf16.mxu0 0
        %2599 = vmatpush1.bf16.msra.mxu0 0
        %2600 = vmatprep.subr.bf16.mxu0 0
        %2601 = vmatpush1.bf16.msra.mxu0 0
        %2602 = vmatprep.subr.bf16.mxu0 0
        %2603 = vmatpush1.bf16.msra.mxu0 0
        %2604 = vmatprep.subr.bf16.mxu0 0
        %2605 = vmatpush1.bf16.msra.mxu0 0
        %2606 = vmatprep.subr.bf16.mxu0 0
        %2607 = vmatpush1.bf16.msra.mxu0 0
        %2608 = vmatprep.subr.bf16.mxu0 0
        %2609 = vmatpush1.bf16.msra.mxu0 0
        %2610 = vmatprep.subr.bf16.mxu0 0
        %2611 = vmatpush1.bf16.msra.mxu0 0
        %2612 = vmatprep.subr.bf16.mxu0 0
        %2613 = vmatpush1.bf16.msra.mxu0 0
        %2614 = vmatprep.subr.bf16.mxu0 0
        %2615 = vmatpush1.bf16.msra.mxu0 0
        %2616 = vmatprep.subr.bf16.mxu0 0
        %2617 = vmatpush1.bf16.msra.mxu0 0
        %2618 = vmatprep.mubr.bf16.mxu0 0
        %2619 = vmatmul.mubr.bf16.gmra.mrb[0].mxu0 %v2581
        %v2620 = vpop.f32.mrb[0].mxu0
        %v2621 = vadd.f32 0.0, %v2620
        %v2622 = vpop.f32.mrb[0].mxu0
        %v2623 = vpop.f32.mrb[0].mxu0
        %v2624 = vpop.f32.mrb[0].mxu0
        %2625 = vdwg.mxu0
        %v2626 = vadd.f32 %v2466, %v2621
        %v2627 = vld [vmem:[%s900] sm:$0x1]
        %v2628 = vld [vmem:[%s11] sm:$0xff]
        %v2629 = vld [vmem:[%s11 + $0x8] sm:$0xff]
        %v2630 = vld [vmem:[%s11 + $0x10] sm:$0xff]
        %v2631 = vld [vmem:[%s11 + $0x18] sm:$0xff]
        %v2632 = vld [vmem:[%s12] sm:$0x1]
        %v2633 = vxor.u32 %v2627, 2147483648
        %v2634 = vmul.f32 %v2633, 1.442695
        %v2635 = vpow.pop %v2634
        %v2636 = vadd.f32 %v2635, 1.0
        %v2637 = vrcp.pop %v2636
        %v2638 = vmul.f32 1.0, %v2637
        %v2639 = vmul.f32 %v2627, %v2638
        %v2641 = vsel %vm916, %v2639, 0
        %2643 = vmatprep.subr.mxu0 0.0
        %2644 = vmatpush1.msra.mxu0 %v2628
        %2645 = vmatprep.subr.mxu0 0.0
        %2646 = vmatpush1.msra.mxu0 %v2629
        %2647 = vmatprep.subr.mxu0 0.0
        %2648 = vmatpush1.msra.mxu0 %v2630
        %2649 = vmatprep.subr.mxu0 0.0
        %2650 = vmatpush1.msra.mxu0 %v2631
        %2651 = vmatprep.subr.mxu0 0.0
        %2652 = vmatpush1.msra.mxu0 0.0
        %2653 = vmatprep.subr.mxu0 0.0
        %2654 = vmatpush1.msra.mxu0 0.0
        %2655 = vmatprep.subr.mxu0 0.0
        %2656 = vmatpush1.msra.mxu0 0.0
        %2657 = vmatprep.subr.mxu0 0.0
        %2658 = vmatpush1.msra.mxu0 0.0
        %2659 = vmatprep.subr.mxu0 0.0
        %2660 = vmatpush1.msra.mxu0 0.0
        %2661 = vmatprep.subr.mxu0 0.0
        %2662 = vmatpush1.msra.mxu0 0.0
        %2663 = vmatprep.subr.mxu0 0.0
        %2664 = vmatpush1.msra.mxu0 0.0
        %2665 = vmatprep.subr.mxu0 0.0
        %2666 = vmatpush1.msra.mxu0 0.0
        %2667 = vmatprep.subr.mxu0 0.0
        %2668 = vmatpush1.msra.mxu0 0.0
        %2669 = vmatprep.subr.mxu0 0.0
        %2670 = vmatpush1.msra.mxu0 0.0
        %2671 = vmatprep.subr.mxu0 0.0
        %2672 = vmatpush1.msra.mxu0 0.0
        %2673 = vmatprep.subr.mxu0 0.0
        %2674 = vmatpush1.msra.mxu0 0.0
        %2675 = vmatprep.subr.mxu0 0.0
        %2676 = vmatpush1.msra.mxu0 0.0
        %2677 = vmatprep.subr.mxu0 0.0
        %2678 = vmatpush1.msra.mxu0 0.0
        %2679 = vmatprep.subr.mxu0 0.0
        %2680 = vmatpush1.msra.mxu0 0.0
        %2681 = vmatprep.subr.mxu0 0.0
        %2682 = vmatpush1.msra.mxu0 0.0
        %2683 = vmatprep.subr.mxu0 0.0
        %2684 = vmatpush1.msra.mxu0 0.0
        %2685 = vmatprep.subr.mxu0 0.0
        %2686 = vmatpush1.msra.mxu0 0.0
        %2687 = vmatprep.subr.mxu0 0.0
        %2688 = vmatpush1.msra.mxu0 0.0
        %2689 = vmatprep.subr.mxu0 0.0
        %2690 = vmatpush1.msra.mxu0 0.0
        %2691 = vmatprep.subr.mxu0 0.0
        %2692 = vmatpush1.msra.mxu0 0.0
        %2693 = vmatprep.subr.mxu0 0.0
        %2694 = vmatpush1.msra.mxu0 0.0
        %2695 = vmatprep.subr.mxu0 0.0
        %2696 = vmatpush1.msra.mxu0 0.0
        %2697 = vmatprep.subr.mxu0 0.0
        %2698 = vmatpush1.msra.mxu0 0.0
        %2699 = vmatprep.subr.mxu0 0.0
        %2700 = vmatpush1.msra.mxu0 0.0
        %2701 = vmatprep.subr.mxu0 0.0
        %2702 = vmatpush1.msra.mxu0 0.0
        %2703 = vmatprep.subr.mxu0 0.0
        %2704 = vmatpush1.msra.mxu0 0.0
        %2705 = vmatprep.subr.mxu0 0.0
        %2706 = vmatpush1.msra.mxu0 0.0
        %2707 = vmatprep.mubr.f32.mxu0 0.0
        %2708 = vmatmul.mubr.f32.gmra.mrb[0].mxu0 %v2641
        %v2709 = vpop.f32.mrb[0].mxu0
        %v2710 = vadd.f32 %v2632, %v2709
        %v2711 = vpop.f32.mrb[0].mxu0
        %2712 = vdwg.mxu0
        %v2713 = vsel %vm916, %v2626, 0.0
        %2714 = vadd.xlane.f32.xlu0 %v2713
        %v2715 = vpop.xlane.xlu0 %2714
        %v2716 = vmul.f32 %v2715, %v993
        %v2717 = vsub.f32 %v2626, %v2716
        %v2718 = vmul.f32 %v2717, %v2717
        %v2719 = vsel %vm916, %v2718, 0.0
        %2720 = vadd.xlane.f32.xlu0 %v2719
        %v2721 = vpop.xlane.xlu0 %2720
        %v2722 = vmul.f32 %v2721, %v993
        %v2723 = vadd.f32 %v2722, 1e-05
        %v2724 = vrsqrt.pop %v2723
        %v2725 = vmul.f32 %v2717, %v2724
        %v2726 = vadd.f32 %v2710, 1.0
        %v2727 = vlaneseq
        %v2728 = vshrl.u32 %v2727, 7
        %v2729 = vsub.s32 0, %v2728
        %v2730 = vrot.slane %v2726, %v2729
        %v2731 = vmul.f32 %v2725, %v2730
        %v2732 = vlaneseq
        %v2733 = vshrl.u32 %v2732, 7
        %v2734 = vsub.s32 0, %v2733
        %v2735 = vrot.slane %v2710, %v2734
        %2737 = vrot.lane.b32.xlu0 %v2735, 96
        %v2738 = vpop.permute.xlu0 %2737
        %v2740 = vadd.f32 %v2731, %v2738
        %v2741 = vld [vmem:[%s23] sm:$0xff]
        %v2742 = vld [vmem:[%s23 + $0x8] sm:$0xff]
        %v2743 = vld [vmem:[%s23 + $0x10] sm:$0xff]
        %v2744 = vld [vmem:[%s23 + $0x18] sm:$0xff]
        %v2745 = vld [vmem:[%s24] sm:$0x1]
        %v2746 = vpack.c.bf16 %v2740, %v2740
        %v2747 = vpack.c.bf16 %v2742, %v2741
        %v2748 = vpack.c.bf16 %v2744, %v2743
        %v2750 = vlaneseq
        %v2751 = vshrl.u32 %v2750, 7
        %v2752 = vsub.s32 0, %v2751
        %v2753 = vrot.slane %v2745, %v2752
        %v2756 = vsel %vm916, %v2746, 0
        %2758 = vmatprep.subr.bf16.mxu0 0
        %2759 = vmatpush1.bf16.msra.mxu0 %v2747
        %2760 = vmatprep.subr.bf16.mxu0 0
        %2761 = vmatpush1.bf16.msra.mxu0 %v2748
        %2762 = vmatprep.subr.bf16.mxu0 0
        %2763 = vmatpush1.bf16.msra.mxu0 0
        %2764 = vmatprep.subr.bf16.mxu0 0
        %2765 = vmatpush1.bf16.msra.mxu0 0
        %2766 = vmatprep.subr.bf16.mxu0 0
        %2767 = vmatpush1.bf16.msra.mxu0 0
        %2768 = vmatprep.subr.bf16.mxu0 0
        %2769 = vmatpush1.bf16.msra.mxu0 0
        %2770 = vmatprep.subr.bf16.mxu0 0
        %2771 = vmatpush1.bf16.msra.mxu0 0
        %2772 = vmatprep.subr.bf16.mxu0 0
        %2773 = vmatpush1.bf16.msra.mxu0 0
        %2774 = vmatprep.subr.bf16.mxu0 0
        %2775 = vmatpush1.bf16.msra.mxu0 0
        %2776 = vmatprep.subr.bf16.mxu0 0
        %2777 = vmatpush1.bf16.msra.mxu0 0
        %2778 = vmatprep.subr.bf16.mxu0 0
        %2779 = vmatpush1.bf16.msra.mxu0 0
        %2780 = vmatprep.subr.bf16.mxu0 0
        %2781 = vmatpush1.bf16.msra.mxu0 0
        %2782 = vmatprep.subr.bf16.mxu0 0
        %2783 = vmatpush1.bf16.msra.mxu0 0
        %2784 = vmatprep.subr.bf16.mxu0 0
        %2785 = vmatpush1.bf16.msra.mxu0 0
        %2786 = vmatprep.subr.bf16.mxu0 0
        %2787 = vmatpush1.bf16.msra.mxu0 0
        %2788 = vmatprep.subr.bf16.mxu0 0
        %2789 = vmatpush1.bf16.msra.mxu0 0
        %2790 = vmatprep.mubr.bf16.mxu0 0
        %2791 = vmatmul.mubr.bf16.gmra.mrb[0].mxu0 %v2756
        %v2792 = vpop.f32.mrb[0].mxu0
        %v2793 = vadd.f32 %v2753, %v2792
        %v2794 = vpop.f32.mrb[0].mxu0
        %v2795 = vpop.f32.mrb[0].mxu0
        %v2796 = vpop.f32.mrb[0].mxu0
        %2797 = vdwg.mxu0
        %v2798 = vmul.f32 %v2793, 0.5
        %v2799 = vmul.f32 %v2793, 0.044715
        %v2800 = vmul.f32 %v2799, %v2793
        %v2801 = vmul.f32 %v2800, %v2793
        %v2802 = vadd.f32 %v2793, %v2801
        %v2803 = vmul.f32 %v2802, 0.7978846
        %v2804 = vtanh.pop %v2803
        %v2805 = vadd.f32 %v2804, 1.0
        %v2806 = vmul.f32 %v2798, %v2805
        %v2807 = vld [vmem:[%s25] sm:$0xff]
        %v2808 = vld [vmem:[%s25 + $0x8] sm:$0xff]
        %v2809 = vld [vmem:[%s25 + $0x10] sm:$0xff]
        %v2810 = vld [vmem:[%s25 + $0x18] sm:$0xff]
        %v2811 = vld [vmem:[%s25 + $0x20] sm:$0xff]
        %v2812 = vld [vmem:[%s25 + $0x28] sm:$0xff]
        %v2813 = vld [vmem:[%s25 + $0x30] sm:$0xff]
        %v2814 = vld [vmem:[%s25 + $0x38] sm:$0xff]
        %v2815 = vld [vmem:[%s26] sm:$0x1]
        %v2816 = vpack.c.bf16 %v2806, %v2806
        %v2817 = vpack.c.bf16 %v2808, %v2807
        %v2818 = vpack.c.bf16 %v2810, %v2809
        %v2819 = vpack.c.bf16 %v2812, %v2811
        %v2820 = vpack.c.bf16 %v2814, %v2813
        %v2822 = vlaneseq
        %v2823 = vshrl.u32 %v2822, 7
        %v2824 = vsub.s32 0, %v2823
        %v2825 = vrot.slane %v2815, %v2824
        %vm2827 = vcmask 523264
        %v2829 = vsel %vm2827, %v2816, 0
        %2831 = vmatprep.subr.bf16.mxu0 0
        %2832 = vmatpush1.bf16.msra.mxu0 %v2817
        %2833 = vmatprep.subr.bf16.mxu0 0
        %2834 = vmatpush1.bf16.msra.mxu0 %v2818
        %2835 = vmatprep.subr.bf16.mxu0 0
        %2836 = vmatpush1.bf16.msra.mxu0 %v2819
        %2837 = vmatprep.subr.bf16.mxu0 0
        %2838 = vmatpush1.bf16.msra.mxu0 %v2820
        %2839 = vmatprep.subr.bf16.mxu0 0
        %2840 = vmatpush1.bf16.msra.mxu0 0
        %2841 = vmatprep.subr.bf16.mxu0 0
        %2842 = vmatpush1.bf16.msra.mxu0 0
        %2843 = vmatprep.subr.bf16.mxu0 0
        %2844 = vmatpush1.bf16.msra.mxu0 0
        %2845 = vmatprep.subr.bf16.mxu0 0
        %2846 = vmatpush1.bf16.msra.mxu0 0
        %2847 = vmatprep.subr.bf16.mxu0 0
        %2848 = vmatpush1.bf16.msra.mxu0 0
        %2849 = vmatprep.subr.bf16.mxu0 0
        %2850 = vmatpush1.bf16.msra.mxu0 0
        %2851 = vmatprep.subr.bf16.mxu0 0
        %2852 = vmatpush1.bf16.msra.mxu0 0
        %2853 = vmatprep.subr.bf16.mxu0 0
        %2854 = vmatpush1.bf16.msra.mxu0 0
        %2855 = vmatprep.subr.bf16.mxu0 0
        %2856 = vmatpush1.bf16.msra.mxu0 0
        %2857 = vmatprep.subr.bf16.mxu0 0
        %2858 = vmatpush1.bf16.msra.mxu0 0
        %2859 = vmatprep.subr.bf16.mxu0 0
        %2860 = vmatpush1.bf16.msra.mxu0 0
        %2861 = vmatprep.subr.bf16.mxu0 0
        %2862 = vmatpush1.bf16.msra.mxu0 0
        %2863 = vmatprep.mubr.bf16.mxu0 0
        %2864 = vmatmul.mubr.bf16.gmra.mrb[0].mxu0 %v2829
        %v2865 = vpop.f32.mrb[0].mxu0
        %v2866 = vadd.f32 %v2825, %v2865
        %v2867 = vpop.f32.mrb[0].mxu0
        %v2868 = vpop.f32.mrb[0].mxu0
        %v2869 = vpop.f32.mrb[0].mxu0
        %2870 = vdwg.mxu0
        %v2871 = vadd.f32 %v2626, %v2866
        %2872 = vst.msk [vmem:[%s877] sm:$0xff] %vm916, %v2871
        %s2873 = sand.u32 %s651, 1
        %s2874 = scalar_lea.sflag [#allocation3], %s2873
        %s2875 = sand.u32 %s651, 1
        %s2876 = smul.addr %s2875, 8
        %s2877 = scalar_lea.vmem [#allocation2], %s2876
        // Predicated region
        $region129: #{decoder_layer.1} parent=127 // pred_check
          %p2878 = pneg %p661
        $region130: #{decoder_layer.1} parent=127 // pred_check_branch
          %2880 = sbr.rel (%p2878) target = $region132
        $region131: #{decoder_layer.1} parent=127 // pred_region
          %s2882 = ssub.s32 128, 128
          %2883 = vsyncadd %s2874, %s2882
          %s2884 = smul.addr %s41, 128
          %s2885 = scalar_lea.hbm %s27, %s2884
          %s2887 = sshll.u32 %s2877, 4
          %s2888 = int_to_ptr.vmem [resolvable:$true] %s2887
          %2890 = dma.vmem_to_hbm [thread:$0]  %s2888, 128, %s2885, %s2874
        $region132: #{decoder_layer.1} parent=127 // pred_fallthru
          _
      $region128: #{decoder_layer.1} parent=5 // pred_fallthru
        _
      %p2891 = scmp.le.s32.totalorder 2, %s36
      // Predicated region
      $region133: #{decoder_layer.1} parent=5 // pred_check
        %p2892 = pneg %p2891
      $region134: #{decoder_layer.1} parent=5 // pred_check_branch
        %2894 = sbr.rel (%p2892) target = $region136
      $region135: #{decoder_layer.1} parent=5 // pred_region
        %s2895 = ssub.s32 %s36, 2
        // Predicated region
        $region137: #{decoder_layer.1} parent=135 // pred_check
          %p2896 = pneg %p667
        $region138: #{decoder_layer.1} parent=135 // pred_check_branch
          %2898 = sbr.rel (%p2896) target = $region140
        $region139: #{decoder_layer.1} parent=135 // pred_region
          %s2899 = sand.u32 %s652, 1
          %s2900 = scalar_lea.sflag [#allocation3], %s2899
          %s2901 = sand.u32 %s652, 1
          %s2902 = smul.addr %s2901, 8
          %s2903 = scalar_lea.vmem [#allocation2], %s2902
          %2904 = dma.done %s2900, 128
        $region140: #{decoder_layer.1} parent=135 // pred_fallthru
          _
      $region136: #{decoder_layer.1} parent=5 // pred_fallthru
        _
    $region6: #{decoder_layer.1} parent=1 // loop_footer
      %s40 = sadd.s32 1, %s36
    $region7: #{decoder_layer.1} parent=1 // loop_footer_branch
      %35 = sbr.rel target = $region3
    $region8: #{decoder_layer.1} parent=1 // loop_exit
      _
    %2905 = vsyncpa [#allocation3], 1
    %s2906 = scalar_lea.sflag [#allocation3], 1
    %2907 = vsyncpa %s2906, 1

</llo_original>
